<compile_context>
chip_gen: v7x
topology: tpu7x:2x2x1
jax: 0.10.0
libtpu: 0.0.40
codegen_flags: <defaults>
</compile_context>

<pallas_src>
import functools

import numpy as np
import jax
import jax.numpy as jnp
from jax.experimental import pallas as pl
from jax.experimental.pallas import tpu as pltpu

LN_EPS = 1e-5
NEG_INF = -1e30                    # cross-window block-diagonal mask value
VMEM_LIMIT = 48 * 1024 * 1024      # explicit scoped-VMEM limit: above the
                                   # 16/32 MiB defaults, below v7x's 64 MiB
ROW_TILE_CAP = 512                 # rows/tile for LN & linear kernels
ATTN_ROW_CAP = 256                 # TW*W target (~MXU tile on v6e/v7x)


# ----------------------------------------------------------------------------
# small helpers
# ----------------------------------------------------------------------------
def _round_up(x, m):
    return ((x + m - 1) // m) * m


def _pick_tm(m, row_bytes, resident_bytes):
    """Row tile for the LN / linear kernels.

    Single-TC chips (v5e/v6e): the grid is a serial loop, so take the largest
    tile that fits the VMEM budget (no megacore halving).  When m exceeds the
    cap there are automatically >= 2 blocks, which also feeds both v7x cores
    through the "parallel" grid axis."""
    if m <= ROW_TILE_CAP:
        return m                             # one block == full dim (always legal)
    budget = (3 * VMEM_LIMIT) // 4 - resident_bytes
    tm = min(ROW_TILE_CAP, max(8, budget // max(row_bytes, 1)))
    return max(8, (tm // 8) * 8)


def _pick_window_tile(n_windows, batch, window, num_heads, row_cap=ATTN_ROW_CAP):
    """Windows per attention tile (TW).

    TW must (a) divide B*nW so the grid is exact, (b) divide nW or be a
    multiple of nW so tiles never straddle window/batch boundaries, and
    (c) give TW*W % 8 == 0 (sublane tiling) unless the tile spans everything.
    Among valid TW take the largest with TW*W <= row_cap and a sane bias-mask
    footprint; the batch is folded into the tile when nW*W is small so each
    grid step moves a few hundred KiB instead of a 7-row window."""
    bw = batch * n_windows
    valid = []
    for tw in range(1, bw + 1):
        if bw % tw:
            continue
        if not (n_windows % tw == 0 or tw % n_windows == 0):
            continue
        if (tw * window) % 8 != 0 and tw != bw:
            continue
        valid.append(tw)
    good = [t for t in valid
            if t * window <= row_cap
            and num_heads * (t * window) ** 2 * 8 <= (16 << 20)]
    return max(good) if good else min(valid)


def _erf(x):
    """Abramowitz & Stegun 7.1.26 erf, |err| < 1.5e-7, built only from ops
    with guaranteed Mosaic lowerings (exp / mul / add / abs / where)."""
    a1, a2, a3, a4, a5 = (0.254829592, -0.284496736, 1.421413741,
                          -1.453152027, 1.061405429)
    pc = 0.3275911
    ax = jnp.abs(x)
    t = 1.0 / (1.0 + pc * ax)
    poly = ((((a5 * t + a4) * t + a3) * t + a2) * t + a1) * t
    y = 1.0 - poly * jnp.exp(-ax * ax)
    return jnp.where(x < 0.0, -y, y)


def _gelu_exact(x):
    """Exact (erf) GELU, matching torch.nn.GELU() to ~1e-7."""
    return 0.5 * x * (1.0 + _erf(x * 0.7071067811865476))


# ----------------------------------------------------------------------------
# Pallas kernels
# ----------------------------------------------------------------------------
def _ln_qkv_kernel(x_ref, g_ref, b_ref, w_ref, bias_ref, o_ref):
    """o[0|1|2] = bf16(LayerNorm(x) @ Wqkv + b) split into q / k / v planes."""
    x = x_ref[...].astype(jnp.float32)                       # (TM, C)
    mu = jnp.mean(x, axis=-1, keepdims=True)
    xc = x - mu
    var = jnp.mean(xc * xc, axis=-1, keepdims=True)
    y = (xc * jax.lax.rsqrt(var + LN_EPS)) * g_ref[...] + b_ref[...]
    z = jnp.dot(y.astype(jnp.bfloat16), w_ref[...],
                preferred_element_type=jnp.float32) + bias_ref[...]
    z = z.astype(jnp.bfloat16)                               # (TM, 3C)
    c = x_ref.shape[-1]
    o_ref[0] = z[:, :c]
    o_ref[1] = z[:, c:2 * c]
    o_ref[2] = z[:, 2 * c:]


def _window_attn_kernel(qkv_ref, bm_ref, o_ref, *, num_heads, scale):
    """Block-diagonal windowed MHSA over a tile of R = TW*W rows.

    One (R, hd) x (hd, R) GEMM per head; cross-window / cross-batch pairs are
    suppressed by NEG_INF already folded into bm.  Head outputs are written
    directly into o_ref lane slices (no concatenate / repack)."""
    q = qkv_ref[0]                                           # (R, C) bf16
    k = qkv_ref[1]
    v = qkv_ref[2]
    rows, c = q.shape
    hd = c // num_heads
    for h in range(num_heads):                               # static unroll
        sl = slice(h * hd, (h + 1) * hd)
        s = jax.lax.dot_general(q[:, sl], k[:, sl],
                                (((1,), (1,)), ((), ())),
                                preferred_element_type=jnp.float32)   # (R, R)
        s = s * scale + bm_ref[0, h]          # rel-pos bias + shift + block-diag
        s = s - jnp.max(s, axis=-1, keepdims=True)
        p = jnp.exp(s)
        p = p / jnp.sum(p, axis=-1, keepdims=True)           # exact softmax
        o_ref[:, sl] = jnp.dot(p.astype(jnp.bfloat16), v[:, sl],
                               preferred_element_type=jnp.float32
                               ).astype(o_ref.dtype)


def _linear_res_kernel(x_ref, w_ref, bias_ref, r_ref, o_ref):
    """o = x @ W + bias + residual (f32 residual stream)."""
    z = jnp.dot(x_ref[...].astype(jnp.bfloat16), w_ref[...],
                preferred_element_type=jnp.float32)
    o_ref[...] = z + bias_ref[...] + r_ref[...]


def _ln_mlp_kernel(x_ref, g_ref, b_ref, w1_ref, b1_ref, w2_ref, b2_ref, o_ref):
    """o = x + fc2(GELU(fc1(LayerNorm(x)))) - whole MLP branch in one kernel,
    the (TM, 4C) hidden activation never leaves VMEM."""
    x = x_ref[...].astype(jnp.float32)                       # (TM, C)
    mu = jnp.mean(x, axis=-1, keepdims=True)
    xc = x - mu
    var = jnp.mean(xc * xc, axis=-1, keepdims=True)
    y = (xc * jax.lax.rsqrt(var + LN_EPS)) * g_ref[...] + b_ref[...]
    h = jnp.dot(y.astype(jnp.bfloat16), w1_ref[...],
                preferred_element_type=jnp.float32) + b1_ref[...]
    h = _gelu_exact(h)
    z = jnp.dot(h.astype(jnp.bfloat16), w2_ref[...],
                preferred_element_type=jnp.float32) + b2_ref[...]
    o_ref[...] = x + z


# ----------------------------------------------------------------------------
# pallas_call wrappers
# ----------------------------------------------------------------------------
def _cparams():
    return pltpu.CompilerParams(dimension_semantics=("parallel",),
                                vmem_limit_bytes=VMEM_LIMIT)


def ln_qkv(x2, gamma, beta, w, bias):
    m, c = x2.shape
    tm = _pick_tm(m, row_bytes=36 * c, resident_bytes=4 * w.size)
    return pl.pallas_call(
        _ln_qkv_kernel,
        out_shape=jax.ShapeDtypeStruct((3, m, c), jnp.bfloat16),
        grid=(pl.cdiv(m, tm),),
        in_specs=[
            pl.BlockSpec((tm, c), lambda i: (i, 0)),
            pl.BlockSpec((1, c), lambda i: (0, 0)),          # constant -> one DMA
            pl.BlockSpec((1, c), lambda i: (0, 0)),
            pl.BlockSpec((c, 3 * c), lambda i: (0, 0)),      # weight VMEM-resident
            pl.BlockSpec((1, 3 * c), lambda i: (0, 0)),
        ],
        out_specs=pl.BlockSpec((3, tm, c), lambda i: (0, i, 0)),
        compiler_params=_cparams(),
    )(x2, gamma.reshape(1, c), beta.reshape(1, c), w, bias.reshape(1, 3 * c))


def window_attention(qkv3, bias_mask, *, num_heads, scale, rows, n_mask_tiles):
    _, total_rows, c = qkv3.shape
    grid = (total_rows // rows,)
    if n_mask_tiles == 1:
        bm_map = lambda t: (0, 0, 0, 0)                      # fetched once
    else:
        nm = n_mask_tiles
        bm_map = lambda t: (t % nm, 0, 0, 0)                 # batch-invariant
    return pl.pallas_call(
        functools.partial(_window_attn_kernel, num_heads=num_heads, scale=scale),
        out_shape=jax.ShapeDtypeStruct((total_rows, c), jnp.bfloat16),
        grid=grid,
        in_specs=[
            pl.BlockSpec((3, rows, c), lambda t: (0, t, 0)),
            pl.BlockSpec((1, num_heads, rows, rows), bm_map),
        ],
        out_specs=pl.BlockSpec((rows, c), lambda t: (t, 0)),
        compiler_params=_cparams(),
    )(qkv3, bias_mask)


def linear_residual(x2, w, bias, res2):
    m, cin = x2.shape
    cout = w.shape[1]
    tm = _pick_tm(m, row_bytes=28 * max(cin, cout), resident_bytes=4 * w.size)
    return pl.pallas_call(
        _linear_res_kernel,
        out_shape=jax.ShapeDtypeStruct((m, cout), jnp.float32),
        grid=(pl.cdiv(m, tm),),
        in_specs=[
            pl.BlockSpec((tm, cin), lambda i: (i, 0)),
            pl.BlockSpec((cin, cout), lambda i: (0, 0)),     # weight VMEM-resident
            pl.BlockSpec((1, cout), lambda i: (0, 0)),
            pl.BlockSpec((tm, cout), lambda i: (i, 0)),
        ],
        out_specs=pl.BlockSpec((tm, cout), lambda i: (i, 0)),
        compiler_params=_cparams(),
    )(x2, w, bias.reshape(1, cout), res2)


def ln_mlp(x2, gamma, beta, w1, b1, w2, b2):
    m, c = x2.shape
    hidden = w1.shape[1]
    tm = _pick_tm(m, row_bytes=20 * c + 6 * hidden,
                  resident_bytes=4 * (w1.size + w2.size))
    return pl.pallas_call(
        _ln_mlp_kernel,
        out_shape=jax.ShapeDtypeStruct((m, c), jnp.float32),
        grid=(pl.cdiv(m, tm),),
        in_specs=[
            pl.BlockSpec((tm, c), lambda i: (i, 0)),
            pl.BlockSpec((1, c), lambda i: (0, 0)),
            pl.BlockSpec((1, c), lambda i: (0, 0)),
            pl.BlockSpec((c, hidden), lambda i: (0, 0)),     # fc1 VMEM-resident
            pl.BlockSpec((1, hidden), lambda i: (0, 0)),
            pl.BlockSpec((hidden, c), lambda i: (0, 0)),     # fc2 VMEM-resident
            pl.BlockSpec((1, c), lambda i: (0, 0)),
        ],
        out_specs=pl.BlockSpec((tm, c), lambda i: (i, 0)),
        compiler_params=_cparams(),
    )(x2, gamma.reshape(1, c), beta.reshape(1, c), w1, b1.reshape(1, hidden),
      w2, b2.reshape(1, c))


# ----------------------------------------------------------------------------
# host-side glue: shift-window mask, rel-pos index, block-diagonal bias build
# ----------------------------------------------------------------------------
def compute_mask_1d_np(L, window_size, shift_size):
    """Standard Swin SW-MSA mask (nW, W, W) computed on the padded length."""
    Lp = _round_up(L, window_size)
    img_mask = np.zeros((Lp,), dtype=np.float32)
    cnt = 0
    for sl in (slice(0, Lp - window_size),
               slice(Lp - window_size, Lp - shift_size),
               slice(Lp - shift_size, Lp)):
        img_mask[sl] = cnt
        cnt += 1
    mw = img_mask.reshape(Lp // window_size, window_size)          # (nW, W)
    attn_mask = mw[:, None, :] - mw[:, :, None]                    # (nW, W, W)
    return np.where(attn_mask != 0, -100.0, 0.0).astype(np.float32)


def _build_bias_mask(rel_table, mask_matrix, W, H, nW, tw, n_mask_tiles,
                     shift_size):
    """(n_mask_tiles, H, TW*W, TW*W) additive attention bias: rel-pos bias +
    Swin shift mask on the block diagonal, NEG_INF for cross-window (and
    cross-batch) pairs.  Lane-dense (last dim = TW*W) and batch-independent."""
    rel_idx = (np.arange(W)[:, None] - np.arange(W)[None, :]) + (W - 1)
    rel = rel_table[rel_idx.reshape(-1)].reshape(W, W, H)
    rel = jnp.transpose(rel, (2, 0, 1)).astype(jnp.float32)        # (H, W, W)
    if shift_size > 0:
        shift_mask = mask_matrix.astype(jnp.float32)               # (nW, W, W)
    else:
        shift_mask = jnp.zeros((nW, W, W), jnp.float32)
    rows = tw * W
    bm = jnp.full((n_mask_tiles, H, rows, rows), NEG_INF, jnp.float32)
    for j in range(tw):
        widx = (np.arange(n_mask_tiles) * tw + j) % nW             # (nm,)
        blk = rel[None] + shift_mask[widx][:, None]                # (nm, H, W, W)
        bm = bm.at[:, :, j * W:(j + 1) * W, j * W:(j + 1) * W].set(blk)
    return bm


# ----------------------------------------------------------------------------
# SwinTransformerBlock1D forward
# ----------------------------------------------------------------------------
@functools.partial(jax.jit,
                   static_argnames=("window_size", "shift_size", "num_heads"))
def swin_block_1d_forward(x, p, mask_matrix, *, window_size, shift_size,
                          num_heads):
    B, L, C = x.shape
    W = window_size
    H = num_heads
    hd = C // H
    scale = float(hd) ** -0.5
    Lp = _round_up(L, W)
    pad_r = Lp - L
    nW = Lp // W

    x_flat = x.reshape(B * L, C).astype(jnp.float32)

    # ---- part 1: fused norm1 + qkv -> bf16 q/k/v planes (3, B*L, C) ----
    qkv = ln_qkv(x_flat, p["n1_g"], p["n1_b"], p["qkv_w"], p["qkv_b"])
    qkv = qkv.reshape(3, B, L, C)
    if pad_r > 0:
        # rows zero-padded AFTER norm1 in the reference become pure-bias rows
        pad = jnp.broadcast_to(
            p["qkv_b"].reshape(3, 1, 1, C).astype(jnp.bfloat16), (3, B, pad_r, C))
        qkv = jnp.concatenate([qkv, pad], axis=2)
    if shift_size > 0:
        qkv = jnp.roll(qkv, -shift_size, axis=2)
    qkv = qkv.reshape(3, B * Lp, C)            # window partition == row order

    # ---- windowed attention: block-diagonal GEMMs over a tile of windows ----
    tw = _pick_window_tile(nW, B, W, H)
    rows = tw * W
    n_mask_tiles = 1 if (shift_size == 0 or tw % nW == 0) else nW // tw
    bias_mask = _build_bias_mask(p["rel_table"], mask_matrix, W, H, nW, tw,
                                 n_mask_tiles, shift_size)
    ctx = window_attention(qkv, bias_mask, num_heads=H, scale=scale,
                           rows=rows, n_mask_tiles=n_mask_tiles)   # (B*Lp, C) bf16

    ctx = ctx.reshape(B, Lp, C)                # window reverse
    if shift_size > 0:
        ctx = jnp.roll(ctx, shift_size, axis=1)
    if pad_r > 0:
        ctx = ctx[:, :L, :]
    ctx = ctx.reshape(B * L, C)

    # proj fused with residual-1 (f32 residual stream); DropPath = identity
    x1 = linear_residual(ctx, p["proj_w"], p["proj_b"], x_flat)

    # ---- part 2: norm2 + fc1 + GELU + fc2 + residual-2, one fused kernel ----
    out = ln_mlp(x1, p["n2_g"], p["n2_b"], p["fc1_w"], p["fc1_b"],
                 p["fc2_w"], p["fc2_b"])
    return out.reshape(B, L, C)


# ----------------------------------------------------------------------------
# pure-JAX reference (mirrors the PyTorch module in f32)
# ----------------------------------------------------------------------------
def _reference_forward(x, p, mask_matrix, *, window_size, shift_size, num_heads):
    B, L, C = x.shape
    W, H = window_size, num_heads
    hd = C // H
    scale = hd ** -0.5
    Lp = _round_up(L, W)
    pad_r = Lp - L
    nW = Lp // W
    f32 = lambda a: a.astype(jnp.float32)

    def ln(v, g, b):
        mu = jnp.mean(v, -1, keepdims=True)
        var = jnp.mean((v - mu) ** 2, -1, keepdims=True)
        return (v - mu) / jnp.sqrt(var + LN_EPS) * g + b

    shortcut = x
    h_ = ln(x, p["n1_g"], p["n1_b"])
    h_ = jnp.pad(h_, ((0, 0), (0, pad_r), (0, 0)))
    if shift_size > 0:
        h_ = jnp.roll(h_, -shift_size, axis=1)
    xw = h_.reshape(B * nW, W, C)
    qkv = xw @ f32(p["qkv_w"]) + p["qkv_b"]
    qkv = qkv.reshape(B * nW, W, 3, H, hd).transpose(2, 0, 3, 1, 4)
    q, k, v = qkv[0] * scale, qkv[1], qkv[2]
    attn = q @ jnp.swapaxes(k, -2, -1)                       # (B*nW, H, W, W)
    rel_idx = (np.arange(W)[:, None] - np.arange(W)[None, :]) + W - 1
    rel = f32(p["rel_table"])[rel_idx.reshape(-1)].reshape(W, W, H)
    attn = attn + jnp.transpose(rel, (2, 0, 1))[None]
    if shift_size > 0:
        attn = attn.reshape(B, nW, H, W, W) + mask_matrix[None, :, None]
        attn = attn.reshape(B * nW, H, W, W)
    attn = jax.nn.softmax(attn, axis=-1)
    ctx = (attn @ v).transpose(0, 2, 1, 3).reshape(B * nW, W, C)
    ctx = ctx @ f32(p["proj_w"]) + p["proj_b"]
    ctx = ctx.reshape(B, Lp, C)
    if shift_size > 0:
        ctx = jnp.roll(ctx, shift_size, axis=1)
    x1 = shortcut + ctx[:, :L]
    y = ln(x1, p["n2_g"], p["n2_b"])
    y = y @ f32(p["fc1_w"]) + p["fc1_b"]
    y = jax.nn.gelu(y, approximate=False)
    y = y @ f32(p["fc2_w"]) + p["fc2_b"]
    return x1 + y


# ----------------------------------------------------------------------------
# deterministic parameter init (weights pre-transposed to (Cin, Cout), bf16)
# ----------------------------------------------------------------------------
def init_block_params(key, dim, num_heads, window_size, mlp_ratio=4.0):
    hidden = int(dim * mlp_ratio)
    ks = iter(jax.random.split(key, 16))

    def nrm(shape, std=0.02):
        return jax.random.normal(next(ks), shape, jnp.float32) * std

    return {
        "n1_g": jnp.ones((dim,), jnp.float32),
        "n1_b": jnp.zeros((dim,), jnp.float32),
        "qkv_w": nrm((dim, 3 * dim)).astype(jnp.bfloat16),
        "qkv_b": nrm((3 * dim,)),
        "rel_table": nrm((2 * window_size - 1, num_heads)),
        "proj_w": nrm((dim, dim)).astype(jnp.bfloat16),
        "proj_b": nrm((dim,)),
        "n2_g": jnp.ones((dim,), jnp.float32),
        "n2_b": jnp.zeros((dim,), jnp.float32),
        "fc1_w": nrm((dim, hidden)).astype(jnp.bfloat16),
        "fc1_b": nrm((hidden,)),
        "fc2_w": nrm((hidden, dim)).astype(jnp.bfloat16),
        "fc2_b": nrm((dim,)),
    }


if __name__ == "__main__":
    key = jax.random.PRNGKey(0)
    kx, kp1, kp2 = jax.random.split(key, 3)

    B, L, C = 2, 50, 64               # Lp = 56, nW = 8, pad_r = 6
    num_heads, window_size, shift_size = 4, 7, 3
    x = jax.random.normal(kx, (B, L, C), jnp.float32)

    mask = jnp.asarray(compute_mask_1d_np(L, window_size, shift_size))
    p1 = init_block_params(kp1, C, num_heads, window_size)
    p2 = init_block_params(kp2, C, num_heads, window_size)

    # standard Swin pairing: a W-MSA block (shift 0) followed by an SW-MSA
    # block (shift > 0) -- exercises both the unmasked and masked paths.
    y1 = swin_block_1d_forward(x, p1, None, window_size=window_size,
                               shift_size=0, num_heads=num_heads)
    y2 = swin_block_1d_forward(y1, p2, mask, window_size=window_size,
                               shift_size=shift_size, num_heads=num_heads)
    y2 = jax.block_until_ready(y2)

    # per-block check against a plain-JAX f32 reference of the PyTorch module
    r1 = _reference_forward(x, p1, None, window_size=window_size,
                            shift_size=0, num_heads=num_heads)
    r2 = _reference_forward(y1, p2, mask, window_size=window_size,
                            shift_size=shift_size, num_heads=num_heads)
    err1 = float(jnp.max(jnp.abs(y1 - r1)))
    err2 = float(jnp.max(jnp.abs(y2 - r2)))

    assert y2.shape == (B, L, C), y2.shape
    assert bool(jnp.all(jnp.isfinite(y2)))
    assert err1 < 5e-2 and err2 < 5e-2, (err1, err2)
    print("KERNEL_OK")
</pallas_src>

<mosaic_0001>
module attributes {stable_mosaic.version = 11 : i64} {
  func.func @_ln_qkv_kernel(%arg0: i32, %arg1: memref<100x64xf32, #tpu.memory_space<vmem>>, %arg2: memref<1x64xf32, #tpu.memory_space<vmem>>, %arg3: memref<1x64xf32, #tpu.memory_space<vmem>>, %arg4: memref<64x192xbf16, #tpu.memory_space<vmem>>, %arg5: memref<1x192xf32, #tpu.memory_space<vmem>>, %arg6: memref<3x100x64xbf16, #tpu.memory_space<vmem>>) attributes {dimension_semantics = [#tpu.dimension_semantics<parallel>], iteration_bounds = array<i64: 1>, scalar_prefetch = 0 : i64, scratch_operands = 0 : i64, tpu.core_type = #tpu.core_type<tc>, window_params = [{transform_indices = @transform_0, window_bounds = array<i64: 100, 64>}, {pipeline_mode = #tpu.pipeline_mode<synchronous>, transform_indices = @transform_1, window_bounds = array<i64: 1, 64>}, {pipeline_mode = #tpu.pipeline_mode<synchronous>, transform_indices = @transform_2, window_bounds = array<i64: 1, 64>}, {pipeline_mode = #tpu.pipeline_mode<synchronous>, transform_indices = @transform_3, window_bounds = array<i64: 64, 192>}, {pipeline_mode = #tpu.pipeline_mode<synchronous>, transform_indices = @transform_4, window_bounds = array<i64: 1, 192>}, {transform_indices = @transform_5, window_bounds = array<i64: 3, 100, 64>}]} {
    %c0 = arith.constant 0 : index
    %c0_0 = arith.constant 0 : index
    %0 = vector.load %arg1[%c0, %c0_0] : memref<100x64xf32, #tpu.memory_space<vmem>>, vector<100x64xf32>
    %cst = arith.constant dense<0.000000e+00> : vector<100xf32>
    %1 = vector.multi_reduction <add>, %0, %cst [1] : vector<100x64xf32> to vector<100xf32>
    %2 = vector.shape_cast %1 : vector<100xf32> to vector<100x1xf32>
    %cst_1 = arith.constant 6.400000e+01 : f32
    %3 = vector.broadcast %cst_1 : f32 to vector<100x1xf32>
    %4 = arith.divf %2, %3 : vector<100x1xf32>
    %5 = vector.broadcast %4 : vector<100x1xf32> to vector<100x64xf32>
    %6 = arith.subf %0, %5 : vector<100x64xf32>
    %7 = arith.mulf %6, %6 : vector<100x64xf32>
    %cst_2 = arith.constant dense<0.000000e+00> : vector<100xf32>
    %8 = vector.multi_reduction <add>, %7, %cst_2 [1] : vector<100x64xf32> to vector<100xf32>
    %9 = vector.shape_cast %8 : vector<100xf32> to vector<100x1xf32>
    %cst_3 = arith.constant 6.400000e+01 : f32
    %10 = vector.broadcast %cst_3 : f32 to vector<100x1xf32>
    %11 = arith.divf %9, %10 : vector<100x1xf32>
    %cst_4 = arith.constant 9.99999974E-6 : f32
    %12 = vector.broadcast %cst_4 : f32 to vector<100x1xf32>
    %13 = arith.addf %11, %12 : vector<100x1xf32>
    %14 = math.rsqrt %13 : vector<100x1xf32>
    %15 = vector.broadcast %14 : vector<100x1xf32> to vector<100x64xf32>
    %16 = arith.mulf %6, %15 : vector<100x64xf32>
    %c0_5 = arith.constant 0 : index
    %c0_6 = arith.constant 0 : index
    %17 = vector.load %arg2[%c0_5, %c0_6] : memref<1x64xf32, #tpu.memory_space<vmem>>, vector<1x64xf32>
    %18 = vector.broadcast %17 : vector<1x64xf32> to vector<100x64xf32>
    %19 = arith.mulf %16, %18 : vector<100x64xf32>
    %c0_7 = arith.constant 0 : index
    %c0_8 = arith.constant 0 : index
    %20 = vector.load %arg3[%c0_7, %c0_8] : memref<1x64xf32, #tpu.memory_space<vmem>>, vector<1x64xf32>
    %21 = vector.broadcast %20 : vector<1x64xf32> to vector<100x64xf32>
    %22 = arith.addf %19, %21 : vector<100x64xf32>
    %23 = arith.truncf %22 : vector<100x64xf32> to vector<100x64xbf16>
    %c0_9 = arith.constant 0 : index
    %c0_10 = arith.constant 0 : index
    %24 = vector.load %arg4[%c0_9, %c0_10] : memref<64x192xbf16, #tpu.memory_space<vmem>>, vector<64x192xbf16>
    %cst_11 = arith.constant dense<0.000000e+00> : vector<100x192xf32>
    %25 = tpu.matmul %23, %24, %cst_11 {dimension_numbers = #tpu.dot_dimension_numbers<[1], [0], [0], [1], [0, 0, 1, 1], [], []>} : vector<100x64xbf16>, vector<64x192xbf16>, vector<100x192xf32> -> vector<100x192xf32>
    %c0_12 = arith.constant 0 : index
    %c0_13 = arith.constant 0 : index
    %26 = vector.load %arg5[%c0_12, %c0_13] : memref<1x192xf32, #tpu.memory_space<vmem>>, vector<1x192xf32>
    %27 = vector.broadcast %26 : vector<1x192xf32> to vector<100x192xf32>
    %28 = arith.addf %25, %27 : vector<100x192xf32>
    %29 = arith.truncf %28 : vector<100x192xf32> to vector<100x192xbf16>
    %30 = vector.extract_strided_slice %29 {offsets = [0, 0], sizes = [100, 64], strides = [1, 1]} : vector<100x192xbf16> to vector<100x64xbf16>
    %c0_14 = arith.constant 0 : index
    %c0_15 = arith.constant 0 : index
    %c0_16 = arith.constant 0 : index
    %31 = vector.load %arg6[%c0_14, %c0_15, %c0_16] : memref<3x100x64xbf16, #tpu.memory_space<vmem>>, vector<1x100x64xbf16>
    %32 = vector.shape_cast %31 : vector<1x100x64xbf16> to vector<100x64xbf16>
    %33 = vector.shape_cast %30 : vector<100x64xbf16> to vector<1x100x64xbf16>
    tpu.vector_store %arg6[%c0_14, %c0_15, %c0_16], %33 {strides = array<i32>} : memref<3x100x64xbf16, #tpu.memory_space<vmem>>, vector<1x100x64xbf16>,
    %34 = vector.extract_strided_slice %29 {offsets = [0, 64], sizes = [100, 64], strides = [1, 1]} : vector<100x192xbf16> to vector<100x64xbf16>
    %c1 = arith.constant 1 : index
    %c0_17 = arith.constant 0 : index
    %c0_18 = arith.constant 0 : index
    %35 = vector.load %arg6[%c1, %c0_17, %c0_18] : memref<3x100x64xbf16, #tpu.memory_space<vmem>>, vector<1x100x64xbf16>
    %36 = vector.shape_cast %35 : vector<1x100x64xbf16> to vector<100x64xbf16>
    %37 = vector.shape_cast %34 : vector<100x64xbf16> to vector<1x100x64xbf16>
    tpu.vector_store %arg6[%c1, %c0_17, %c0_18], %37 {strides = array<i32>} : memref<3x100x64xbf16, #tpu.memory_space<vmem>>, vector<1x100x64xbf16>,
    %38 = vector.extract_strided_slice %29 {offsets = [0, 128], sizes = [100, 64], strides = [1, 1]} : vector<100x192xbf16> to vector<100x64xbf16>
    %c2 = arith.constant 2 : index
    %c0_19 = arith.constant 0 : index
    %c0_20 = arith.constant 0 : index
    %39 = vector.load %arg6[%c2, %c0_19, %c0_20] : memref<3x100x64xbf16, #tpu.memory_space<vmem>>, vector<1x100x64xbf16>
    %40 = vector.shape_cast %39 : vector<1x100x64xbf16> to vector<100x64xbf16>
    %41 = vector.shape_cast %38 : vector<100x64xbf16> to vector<1x100x64xbf16>
    tpu.vector_store %arg6[%c2, %c0_19, %c0_20], %41 {strides = array<i32>} : memref<3x100x64xbf16, #tpu.memory_space<vmem>>, vector<1x100x64xbf16>,
    return
  }
  func.func @transform_0(%arg0: i32) -> (i32, i32) {
    %c0_i32 = arith.constant 0 : i32
    %c0_i32_0 = arith.constant 0 : i32
    return %arg0, %c0_i32 : i32, i32
  }
  func.func @transform_1(%arg0: i32) -> (i32, i32) {
    %c0_i32 = arith.constant 0 : i32
    %c0_i32_0 = arith.constant 0 : i32
    %c0_i32_1 = arith.constant 0 : i32
    return %c0_i32, %c0_i32_0 : i32, i32
  }
  func.func @transform_2(%arg0: i32) -> (i32, i32) {
    %c0_i32 = arith.constant 0 : i32
    %c0_i32_0 = arith.constant 0 : i32
    %c0_i32_1 = arith.constant 0 : i32
    return %c0_i32, %c0_i32_0 : i32, i32
  }
  func.func @transform_3(%arg0: i32) -> (i32, i32) {
    %c0_i32 = arith.constant 0 : i32
    %c0_i32_0 = arith.constant 0 : i32
    %c0_i32_1 = arith.constant 0 : i32
    return %c0_i32, %c0_i32_0 : i32, i32
  }
  func.func @transform_4(%arg0: i32) -> (i32, i32) {
    %c0_i32 = arith.constant 0 : i32
    %c0_i32_0 = arith.constant 0 : i32
    %c0_i32_1 = arith.constant 0 : i32
    return %c0_i32, %c0_i32_0 : i32, i32
  }
  func.func @transform_5(%arg0: i32) -> (i32, i32, i32) {
    %c0_i32 = arith.constant 0 : i32
    %c0_i32_0 = arith.constant 0 : i32
    %c0_i32_1 = arith.constant 0 : i32
    return %c0_i32, %arg0, %c0_i32_0 : i32, i32, i32
  }
}

module attributes {stable_mosaic.version = 11 : i64} {
  func.func @_window_attn_kernel(%arg0: i32, %arg1: memref<3x112x64xbf16, #tpu.memory_space<vmem>>, %arg2: memref<1x4x112x112xf32, #tpu.memory_space<vmem>>, %arg3: memref<112x64xbf16, #tpu.memory_space<vmem>>) attributes {dimension_semantics = [#tpu.dimension_semantics<parallel>], iteration_bounds = array<i64: 1>, scalar_prefetch = 0 : i64, scratch_operands = 0 : i64, tpu.core_type = #tpu.core_type<tc>, window_params = [{transform_indices = @transform_0, window_bounds = array<i64: 3, 112, 64>}, {pipeline_mode = #tpu.pipeline_mode<synchronous>, transform_indices = @transform_1, window_bounds = array<i64: 1, 4, 112, 112>}, {transform_indices = @transform_2, window_bounds = array<i64: 112, 64>}]} {
    %c0 = arith.constant 0 : index
    %c0_0 = arith.constant 0 : index
    %c0_1 = arith.constant 0 : index
    %0 = vector.load %arg1[%c0, %c0_0, %c0_1] : memref<3x112x64xbf16, #tpu.memory_space<vmem>>, vector<1x112x64xbf16>
    %1 = vector.shape_cast %0 : vector<1x112x64xbf16> to vector<112x64xbf16>
    %c1 = arith.constant 1 : index
    %c0_2 = arith.constant 0 : index
    %c0_3 = arith.constant 0 : index
    %2 = vector.load %arg1[%c1, %c0_2, %c0_3] : memref<3x112x64xbf16, #tpu.memory_space<vmem>>, vector<1x112x64xbf16>
    %3 = vector.shape_cast %2 : vector<1x112x64xbf16> to vector<112x64xbf16>
    %c2 = arith.constant 2 : index
    %c0_4 = arith.constant 0 : index
    %c0_5 = arith.constant 0 : index
    %4 = vector.load %arg1[%c2, %c0_4, %c0_5] : memref<3x112x64xbf16, #tpu.memory_space<vmem>>, vector<1x112x64xbf16>
    %5 = vector.shape_cast %4 : vector<1x112x64xbf16> to vector<112x64xbf16>
    %6 = vector.extract_strided_slice %1 {offsets = [0, 0], sizes = [112, 16], strides = [1, 1]} : vector<112x64xbf16> to vector<112x16xbf16>
    %7 = vector.extract_strided_slice %3 {offsets = [0, 0], sizes = [112, 16], strides = [1, 1]} : vector<112x64xbf16> to vector<112x16xbf16>
    %cst = arith.constant dense<0.000000e+00> : vector<112x112xf32>
    %8 = tpu.matmul %6, %7, %cst {dimension_numbers = #tpu.dot_dimension_numbers<[1], [1], [0], [0], [0, 0, 1, 0], [], []>} : vector<112x16xbf16>, vector<112x16xbf16>, vector<112x112xf32> -> vector<112x112xf32>
    %cst_6 = arith.constant 2.500000e-01 : f32
    %9 = vector.broadcast %cst_6 : f32 to vector<112x112xf32>
    %10 = arith.mulf %8, %9 : vector<112x112xf32>
    %c0_7 = arith.constant 0 : index
    %c0_8 = arith.constant 0 : index
    %c0_9 = arith.constant 0 : index
    %c0_10 = arith.constant 0 : index
    %11 = vector.load %arg2[%c0_7, %c0_8, %c0_9, %c0_10] : memref<1x4x112x112xf32, #tpu.memory_space<vmem>>, vector<1x1x112x112xf32>
    %12 = vector.shape_cast %11 : vector<1x1x112x112xf32> to vector<112x112xf32>
    %13 = arith.addf %10, %12 : vector<112x112xf32>
    %cst_11 = arith.constant dense<0xFF800000> : vector<112xf32>
    %14 = vector.multi_reduction <maximumf>, %13, %cst_11 [1] : vector<112x112xf32> to vector<112xf32>
    %15 = vector.shape_cast %14 : vector<112xf32> to vector<112x1xf32>
    %16 = vector.broadcast %15 : vector<112x1xf32> to vector<112x112xf32>
    %17 = arith.subf %13, %16 : vector<112x112xf32>
    %18 = math.exp %17 : vector<112x112xf32>
    %cst_12 = arith.constant dense<0.000000e+00> : vector<112xf32>
    %19 = vector.multi_reduction <add>, %18, %cst_12 [1] : vector<112x112xf32> to vector<112xf32>
    %20 = vector.shape_cast %19 : vector<112xf32> to vector<112x1xf32>
    %21 = vector.broadcast %20 : vector<112x1xf32> to vector<112x112xf32>
    %22 = arith.divf %18, %21 : vector<112x112xf32>
    %23 = arith.truncf %22 : vector<112x112xf32> to vector<112x112xbf16>
    %24 = vector.extract_strided_slice %5 {offsets = [0, 0], sizes = [112, 16], strides = [1, 1]} : vector<112x64xbf16> to vector<112x16xbf16>
    %cst_13 = arith.constant dense<0.000000e+00> : vector<112x16xf32>
    %25 = tpu.matmul %23, %24, %cst_13 {dimension_numbers = #tpu.dot_dimension_numbers<[1], [0], [0], [1], [0, 0, 1, 1], [], []>} : vector<112x112xbf16>, vector<112x16xbf16>, vector<112x16xf32> -> vector<112x16xf32>
    %26 = arith.truncf %25 : vector<112x16xf32> to vector<112x16xbf16>
    %c0_14 = arith.constant 0 : index
    %c0_15 = arith.constant 0 : index
    %27 = vector.load %arg3[%c0_14, %c0_15] : memref<112x64xbf16, #tpu.memory_space<vmem>>, vector<112x16xbf16>
    tpu.vector_store %arg3[%c0_14, %c0_15], %26 {strides = array<i32>} : memref<112x64xbf16, #tpu.memory_space<vmem>>, vector<112x16xbf16>,
    %28 = vector.extract_strided_slice %1 {offsets = [0, 16], sizes = [112, 16], strides = [1, 1]} : vector<112x64xbf16> to vector<112x16xbf16>
    %29 = vector.extract_strided_slice %3 {offsets = [0, 16], sizes = [112, 16], strides = [1, 1]} : vector<112x64xbf16> to vector<112x16xbf16>
    %cst_16 = arith.constant dense<0.000000e+00> : vector<112x112xf32>
    %30 = tpu.matmul %28, %29, %cst_16 {dimension_numbers = #tpu.dot_dimension_numbers<[1], [1], [0], [0], [0, 0, 1, 0], [], []>} : vector<112x16xbf16>, vector<112x16xbf16>, vector<112x112xf32> -> vector<112x112xf32>
    %cst_17 = arith.constant 2.500000e-01 : f32
    %31 = vector.broadcast %cst_17 : f32 to vector<112x112xf32>
    %32 = arith.mulf %30, %31 : vector<112x112xf32>
    %c0_18 = arith.constant 0 : index
    %c1_19 = arith.constant 1 : index
    %c0_20 = arith.constant 0 : index
    %c0_21 = arith.constant 0 : index
    %33 = vector.load %arg2[%c0_18, %c1_19, %c0_20, %c0_21] : memref<1x4x112x112xf32, #tpu.memory_space<vmem>>, vector<1x1x112x112xf32>
    %34 = vector.shape_cast %33 : vector<1x1x112x112xf32> to vector<112x112xf32>
    %35 = arith.addf %32, %34 : vector<112x112xf32>
    %cst_22 = arith.constant dense<0xFF800000> : vector<112xf32>
    %36 = vector.multi_reduction <maximumf>, %35, %cst_22 [1] : vector<112x112xf32> to vector<112xf32>
    %37 = vector.shape_cast %36 : vector<112xf32> to vector<112x1xf32>
    %38 = vector.broadcast %37 : vector<112x1xf32> to vector<112x112xf32>
    %39 = arith.subf %35, %38 : vector<112x112xf32>
    %40 = math.exp %39 : vector<112x112xf32>
    %cst_23 = arith.constant dense<0.000000e+00> : vector<112xf32>
    %41 = vector.multi_reduction <add>, %40, %cst_23 [1] : vector<112x112xf32> to vector<112xf32>
    %42 = vector.shape_cast %41 : vector<112xf32> to vector<112x1xf32>
    %43 = vector.broadcast %42 : vector<112x1xf32> to vector<112x112xf32>
    %44 = arith.divf %40, %43 : vector<112x112xf32>
    %45 = arith.truncf %44 : vector<112x112xf32> to vector<112x112xbf16>
    %46 = vector.extract_strided_slice %5 {offsets = [0, 16], sizes = [112, 16], strides = [1, 1]} : vector<112x64xbf16> to vector<112x16xbf16>
    %cst_24 = arith.constant dense<0.000000e+00> : vector<112x16xf32>
    %47 = tpu.matmul %45, %46, %cst_24 {dimension_numbers = #tpu.dot_dimension_numbers<[1], [0], [0], [1], [0, 0, 1, 1], [], []>} : vector<112x112xbf16>, vector<112x16xbf16>, vector<112x16xf32> -> vector<112x16xf32>
    %48 = arith.truncf %47 : vector<112x16xf32> to vector<112x16xbf16>
    %c0_25 = arith.constant 0 : index
    %c16 = arith.constant 16 : index
    %49 = vector.load %arg3[%c0_25, %c16] : memref<112x64xbf16, #tpu.memory_space<vmem>>, vector<112x16xbf16>
    tpu.vector_store %arg3[%c0_25, %c16], %48 {strides = array<i32>} : memref<112x64xbf16, #tpu.memory_space<vmem>>, vector<112x16xbf16>,
    %50 = vector.extract_strided_slice %1 {offsets = [0, 32], sizes = [112, 16], strides = [1, 1]} : vector<112x64xbf16> to vector<112x16xbf16>
    %51 = vector.extract_strided_slice %3 {offsets = [0, 32], sizes = [112, 16], strides = [1, 1]} : vector<112x64xbf16> to vector<112x16xbf16>
    %cst_26 = arith.constant dense<0.000000e+00> : vector<112x112xf32>
    %52 = tpu.matmul %50, %51, %cst_26 {dimension_numbers = #tpu.dot_dimension_numbers<[1], [1], [0], [0], [0, 0, 1, 0], [], []>} : vector<112x16xbf16>, vector<112x16xbf16>, vector<112x112xf32> -> vector<112x112xf32>
    %cst_27 = arith.constant 2.500000e-01 : f32
    %53 = vector.broadcast %cst_27 : f32 to vector<112x112xf32>
    %54 = arith.mulf %52, %53 : vector<112x112xf32>
    %c0_28 = arith.constant 0 : index
    %c2_29 = arith.constant 2 : index
    %c0_30 = arith.constant 0 : index
    %c0_31 = arith.constant 0 : index
    %55 = vector.load %arg2[%c0_28, %c2_29, %c0_30, %c0_31] : memref<1x4x112x112xf32, #tpu.memory_space<vmem>>, vector<1x1x112x112xf32>
    %56 = vector.shape_cast %55 : vector<1x1x112x112xf32> to vector<112x112xf32>
    %57 = arith.addf %54, %56 : vector<112x112xf32>
    %cst_32 = arith.constant dense<0xFF800000> : vector<112xf32>
    %58 = vector.multi_reduction <maximumf>, %57, %cst_32 [1] : vector<112x112xf32> to vector<112xf32>
    %59 = vector.shape_cast %58 : vector<112xf32> to vector<112x1xf32>
    %60 = vector.broadcast %59 : vector<112x1xf32> to vector<112x112xf32>
    %61 = arith.subf %57, %60 : vector<112x112xf32>
    %62 = math.exp %61 : vector<112x112xf32>
    %cst_33 = arith.constant dense<0.000000e+00> : vector<112xf32>
    %63 = vector.multi_reduction <add>, %62, %cst_33 [1] : vector<112x112xf32> to vector<112xf32>
    %64 = vector.shape_cast %63 : vector<112xf32> to vector<112x1xf32>
    %65 = vector.broadcast %64 : vector<112x1xf32> to vector<112x112xf32>
    %66 = arith.divf %62, %65 : vector<112x112xf32>
    %67 = arith.truncf %66 : vector<112x112xf32> to vector<112x112xbf16>
    %68 = vector.extract_strided_slice %5 {offsets = [0, 32], sizes = [112, 16], strides = [1, 1]} : vector<112x64xbf16> to vector<112x16xbf16>
    %cst_34 = arith.constant dense<0.000000e+00> : vector<112x16xf32>
    %69 = tpu.matmul %67, %68, %cst_34 {dimension_numbers = #tpu.dot_dimension_numbers<[1], [0], [0], [1], [0, 0, 1, 1], [], []>} : vector<112x112xbf16>, vector<112x16xbf16>, vector<112x16xf32> -> vector<112x16xf32>
    %70 = arith.truncf %69 : vector<112x16xf32> to vector<112x16xbf16>
    %c0_35 = arith.constant 0 : index
    %c32 = arith.constant 32 : index
    %71 = vector.load %arg3[%c0_35, %c32] : memref<112x64xbf16, #tpu.memory_space<vmem>>, vector<112x16xbf16>
    tpu.vector_store %arg3[%c0_35, %c32], %70 {strides = array<i32>} : memref<112x64xbf16, #tpu.memory_space<vmem>>, vector<112x16xbf16>,
    %72 = vector.extract_strided_slice %1 {offsets = [0, 48], sizes = [112, 16], strides = [1, 1]} : vector<112x64xbf16> to vector<112x16xbf16>
    %73 = vector.extract_strided_slice %3 {offsets = [0, 48], sizes = [112, 16], strides = [1, 1]} : vector<112x64xbf16> to vector<112x16xbf16>
    %cst_36 = arith.constant dense<0.000000e+00> : vector<112x112xf32>
    %74 = tpu.matmul %72, %73, %cst_36 {dimension_numbers = #tpu.dot_dimension_numbers<[1], [1], [0], [0], [0, 0, 1, 0], [], []>} : vector<112x16xbf16>, vector<112x16xbf16>, vector<112x112xf32> -> vector<112x112xf32>
    %cst_37 = arith.constant 2.500000e-01 : f32
    %75 = vector.broadcast %cst_37 : f32 to vector<112x112xf32>
    %76 = arith.mulf %74, %75 : vector<112x112xf32>
    %c0_38 = arith.constant 0 : index
    %c3 = arith.constant 3 : index
    %c0_39 = arith.constant 0 : index
    %c0_40 = arith.constant 0 : index
    %77 = vector.load %arg2[%c0_38, %c3, %c0_39, %c0_40] : memref<1x4x112x112xf32, #tpu.memory_space<vmem>>, vector<1x1x112x112xf32>
    %78 = vector.shape_cast %77 : vector<1x1x112x112xf32> to vector<112x112xf32>
    %79 = arith.addf %76, %78 : vector<112x112xf32>
    %cst_41 = arith.constant dense<0xFF800000> : vector<112xf32>
    %80 = vector.multi_reduction <maximumf>, %79, %cst_41 [1] : vector<112x112xf32> to vector<112xf32>
    %81 = vector.shape_cast %80 : vector<112xf32> to vector<112x1xf32>
    %82 = vector.broadcast %81 : vector<112x1xf32> to vector<112x112xf32>
    %83 = arith.subf %79, %82 : vector<112x112xf32>
    %84 = math.exp %83 : vector<112x112xf32>
    %cst_42 = arith.constant dense<0.000000e+00> : vector<112xf32>
    %85 = vector.multi_reduction <add>, %84, %cst_42 [1] : vector<112x112xf32> to vector<112xf32>
    %86 = vector.shape_cast %85 : vector<112xf32> to vector<112x1xf32>
    %87 = vector.broadcast %86 : vector<112x1xf32> to vector<112x112xf32>
    %88 = arith.divf %84, %87 : vector<112x112xf32>
    %89 = arith.truncf %88 : vector<112x112xf32> to vector<112x112xbf16>
    %90 = vector.extract_strided_slice %5 {offsets = [0, 48], sizes = [112, 16], strides = [1, 1]} : vector<112x64xbf16> to vector<112x16xbf16>
    %cst_43 = arith.constant dense<0.000000e+00> : vector<112x16xf32>
    %91 = tpu.matmul %89, %90, %cst_43 {dimension_numbers = #tpu.dot_dimension_numbers<[1], [0], [0], [1], [0, 0, 1, 1], [], []>} : vector<112x112xbf16>, vector<112x16xbf16>, vector<112x16xf32> -> vector<112x16xf32>
    %92 = arith.truncf %91 : vector<112x16xf32> to vector<112x16xbf16>
    %c0_44 = arith.constant 0 : index
    %c48 = arith.constant 48 : index
    %93 = vector.load %arg3[%c0_44, %c48] : memref<112x64xbf16, #tpu.memory_space<vmem>>, vector<112x16xbf16>
    tpu.vector_store %arg3[%c0_44, %c48], %92 {strides = array<i32>} : memref<112x64xbf16, #tpu.memory_space<vmem>>, vector<112x16xbf16>,
    return
  }
  func.func @transform_0(%arg0: i32) -> (i32, i32, i32) {
    %c0_i32 = arith.constant 0 : i32
    %c0_i32_0 = arith.constant 0 : i32
    %c0_i32_1 = arith.constant 0 : i32
    return %c0_i32, %arg0, %c0_i32_0 : i32, i32, i32
  }
  func.func @transform_1(%arg0: i32) -> (i32, i32, i32, i32) {
    %c0_i32 = arith.constant 0 : i32
    %c0_i32_0 = arith.constant 0 : i32
    %c0_i32_1 = arith.constant 0 : i32
    %c0_i32_2 = arith.constant 0 : i32
    %c0_i32_3 = arith.constant 0 : i32
    return %c0_i32, %c0_i32_0, %c0_i32_1, %c0_i32_2 : i32, i32, i32, i32
  }
  func.func @transform_2(%arg0: i32) -> (i32, i32) {
    %c0_i32 = arith.constant 0 : i32
    %c0_i32_0 = arith.constant 0 : i32
    return %arg0, %c0_i32 : i32, i32
  }
}

module attributes {stable_mosaic.version = 11 : i64} {
  func.func @_linear_res_kernel(%arg0: i32, %arg1: memref<100x64xbf16, #tpu.memory_space<vmem>>, %arg2: memref<64x64xbf16, #tpu.memory_space<vmem>>, %arg3: memref<1x64xf32, #tpu.memory_space<vmem>>, %arg4: memref<100x64xf32, #tpu.memory_space<vmem>>, %arg5: memref<100x64xf32, #tpu.memory_space<vmem>>) attributes {dimension_semantics = [#tpu.dimension_semantics<parallel>], iteration_bounds = array<i64: 1>, scalar_prefetch = 0 : i64, scratch_operands = 0 : i64, tpu.core_type = #tpu.core_type<tc>, window_params = [{transform_indices = @transform_0, window_bounds = array<i64: 100, 64>}, {pipeline_mode = #tpu.pipeline_mode<synchronous>, transform_indices = @transform_1, window_bounds = array<i64: 64, 64>}, {pipeline_mode = #tpu.pipeline_mode<synchronous>, transform_indices = @transform_2, window_bounds = array<i64: 1, 64>}, {transform_indices = @transform_3, window_bounds = array<i64: 100, 64>}, {transform_indices = @transform_4, window_bounds = array<i64: 100, 64>}]} {
    %c0 = arith.constant 0 : index
    %c0_0 = arith.constant 0 : index
    %0 = vector.load %arg1[%c0, %c0_0] : memref<100x64xbf16, #tpu.memory_space<vmem>>, vector<100x64xbf16>
    %c0_1 = arith.constant 0 : index
    %c0_2 = arith.constant 0 : index
    %1 = vector.load %arg2[%c0_1, %c0_2] : memref<64x64xbf16, #tpu.memory_space<vmem>>, vector<64x64xbf16>
    %cst = arith.constant dense<0.000000e+00> : vector<100x64xf32>
    %2 = tpu.matmul %0, %1, %cst {dimension_numbers = #tpu.dot_dimension_numbers<[1], [0], [0], [1], [0, 0, 1, 1], [], []>} : vector<100x64xbf16>, vector<64x64xbf16>, vector<100x64xf32> -> vector<100x64xf32>
    %c0_3 = arith.constant 0 : index
    %c0_4 = arith.constant 0 : index
    %3 = vector.load %arg3[%c0_3, %c0_4] : memref<1x64xf32, #tpu.memory_space<vmem>>, vector<1x64xf32>
    %4 = vector.broadcast %3 : vector<1x64xf32> to vector<100x64xf32>
    %5 = arith.addf %2, %4 : vector<100x64xf32>
    %c0_5 = arith.constant 0 : index
    %c0_6 = arith.constant 0 : index
    %6 = vector.load %arg4[%c0_5, %c0_6] : memref<100x64xf32, #tpu.memory_space<vmem>>, vector<100x64xf32>
    %7 = arith.addf %5, %6 : vector<100x64xf32>
    %c0_7 = arith.constant 0 : index
    %c0_8 = arith.constant 0 : index
    %8 = vector.load %arg5[%c0_7, %c0_8] : memref<100x64xf32, #tpu.memory_space<vmem>>, vector<100x64xf32>
    tpu.vector_store %arg5[%c0_7, %c0_8], %7 {strides = array<i32>} : memref<100x64xf32, #tpu.memory_space<vmem>>, vector<100x64xf32>,
    return
  }
  func.func @transform_0(%arg0: i32) -> (i32, i32) {
    %c0_i32 = arith.constant 0 : i32
    %c0_i32_0 = arith.constant 0 : i32
    return %arg0, %c0_i32 : i32, i32
  }
  func.func @transform_1(%arg0: i32) -> (i32, i32) {
    %c0_i32 = arith.constant 0 : i32
    %c0_i32_0 = arith.constant 0 : i32
    %c0_i32_1 = arith.constant 0 : i32
    return %c0_i32, %c0_i32_0 : i32, i32
  }
  func.func @transform_2(%arg0: i32) -> (i32, i32) {
    %c0_i32 = arith.constant 0 : i32
    %c0_i32_0 = arith.constant 0 : i32
    %c0_i32_1 = arith.constant 0 : i32
    return %c0_i32, %c0_i32_0 : i32, i32
  }
  func.func @transform_3(%arg0: i32) -> (i32, i32) {
    %c0_i32 = arith.constant 0 : i32
    %c0_i32_0 = arith.constant 0 : i32
    return %arg0, %c0_i32 : i32, i32
  }
  func.func @transform_4(%arg0: i32) -> (i32, i32) {
    %c0_i32 = arith.constant 0 : i32
    %c0_i32_0 = arith.constant 0 : i32
    return %arg0, %c0_i32 : i32, i32
  }
}

module attributes {stable_mosaic.version = 11 : i64} {
  func.func @_ln_mlp_kernel(%arg0: i32, %arg1: memref<100x64xf32, #tpu.memory_space<vmem>>, %arg2: memref<1x64xf32, #tpu.memory_space<vmem>>, %arg3: memref<1x64xf32, #tpu.memory_space<vmem>>, %arg4: memref<64x256xbf16, #tpu.memory_space<vmem>>, %arg5: memref<1x256xf32, #tpu.memory_space<vmem>>, %arg6: memref<256x64xbf16, #tpu.memory_space<vmem>>, %arg7: memref<1x64xf32, #tpu.memory_space<vmem>>, %arg8: memref<100x64xf32, #tpu.memory_space<vmem>>) attributes {dimension_semantics = [#tpu.dimension_semantics<parallel>], iteration_bounds = array<i64: 1>, scalar_prefetch = 0 : i64, scratch_operands = 0 : i64, tpu.core_type = #tpu.core_type<tc>, window_params = [{transform_indices = @transform_0, window_bounds = array<i64: 100, 64>}, {pipeline_mode = #tpu.pipeline_mode<synchronous>, transform_indices = @transform_1, window_bounds = array<i64: 1, 64>}, {pipeline_mode = #tpu.pipeline_mode<synchronous>, transform_indices = @transform_2, window_bounds = array<i64: 1, 64>}, {pipeline_mode = #tpu.pipeline_mode<synchronous>, transform_indices = @transform_3, window_bounds = array<i64: 64, 256>}, {pipeline_mode = #tpu.pipeline_mode<synchronous>, transform_indices = @transform_4, window_bounds = array<i64: 1, 256>}, {pipeline_mode = #tpu.pipeline_mode<synchronous>, transform_indices = @transform_5, window_bounds = array<i64: 256, 64>}, {pipeline_mode = #tpu.pipeline_mode<synchronous>, transform_indices = @transform_6, window_bounds = array<i64: 1, 64>}, {transform_indices = @transform_7, window_bounds = array<i64: 100, 64>}]} {
    %c0 = arith.constant 0 : index
    %c0_0 = arith.constant 0 : index
    %0 = vector.load %arg1[%c0, %c0_0] : memref<100x64xf32, #tpu.memory_space<vmem>>, vector<100x64xf32>
    %cst = arith.constant dense<0.000000e+00> : vector<100xf32>
    %1 = vector.multi_reduction <add>, %0, %cst [1] : vector<100x64xf32> to vector<100xf32>
    %2 = vector.shape_cast %1 : vector<100xf32> to vector<100x1xf32>
    %cst_1 = arith.constant 6.400000e+01 : f32
    %3 = vector.broadcast %cst_1 : f32 to vector<100x1xf32>
    %4 = arith.divf %2, %3 : vector<100x1xf32>
    %5 = vector.broadcast %4 : vector<100x1xf32> to vector<100x64xf32>
    %6 = arith.subf %0, %5 : vector<100x64xf32>
    %7 = arith.mulf %6, %6 : vector<100x64xf32>
    %cst_2 = arith.constant dense<0.000000e+00> : vector<100xf32>
    %8 = vector.multi_reduction <add>, %7, %cst_2 [1] : vector<100x64xf32> to vector<100xf32>
    %9 = vector.shape_cast %8 : vector<100xf32> to vector<100x1xf32>
    %cst_3 = arith.constant 6.400000e+01 : f32
    %10 = vector.broadcast %cst_3 : f32 to vector<100x1xf32>
    %11 = arith.divf %9, %10 : vector<100x1xf32>
    %cst_4 = arith.constant 9.99999974E-6 : f32
    %12 = vector.broadcast %cst_4 : f32 to vector<100x1xf32>
    %13 = arith.addf %11, %12 : vector<100x1xf32>
    %14 = math.rsqrt %13 : vector<100x1xf32>
    %15 = vector.broadcast %14 : vector<100x1xf32> to vector<100x64xf32>
    %16 = arith.mulf %6, %15 : vector<100x64xf32>
    %c0_5 = arith.constant 0 : index
    %c0_6 = arith.constant 0 : index
    %17 = vector.load %arg2[%c0_5, %c0_6] : memref<1x64xf32, #tpu.memory_space<vmem>>, vector<1x64xf32>
    %18 = vector.broadcast %17 : vector<1x64xf32> to vector<100x64xf32>
    %19 = arith.mulf %16, %18 : vector<100x64xf32>
    %c0_7 = arith.constant 0 : index
    %c0_8 = arith.constant 0 : index
    %20 = vector.load %arg3[%c0_7, %c0_8] : memref<1x64xf32, #tpu.memory_space<vmem>>, vector<1x64xf32>
    %21 = vector.broadcast %20 : vector<1x64xf32> to vector<100x64xf32>
    %22 = arith.addf %19, %21 : vector<100x64xf32>
    %23 = arith.truncf %22 : vector<100x64xf32> to vector<100x64xbf16>
    %c0_9 = arith.constant 0 : index
    %c0_10 = arith.constant 0 : index
    %24 = vector.load %arg4[%c0_9, %c0_10] : memref<64x256xbf16, #tpu.memory_space<vmem>>, vector<64x256xbf16>
    %cst_11 = arith.constant dense<0.000000e+00> : vector<100x256xf32>
    %25 = tpu.matmul %23, %24, %cst_11 {dimension_numbers = #tpu.dot_dimension_numbers<[1], [0], [0], [1], [0, 0, 1, 1], [], []>} : vector<100x64xbf16>, vector<64x256xbf16>, vector<100x256xf32> -> vector<100x256xf32>
    %c0_12 = arith.constant 0 : index
    %c0_13 = arith.constant 0 : index
    %26 = vector.load %arg5[%c0_12, %c0_13] : memref<1x256xf32, #tpu.memory_space<vmem>>, vector<1x256xf32>
    %27 = vector.broadcast %26 : vector<1x256xf32> to vector<100x256xf32>
    %28 = arith.addf %25, %27 : vector<100x256xf32>
    %cst_14 = arith.constant 5.000000e-01 : f32
    %29 = vector.broadcast %cst_14 : f32 to vector<100x256xf32>
    %30 = arith.mulf %29, %28 : vector<100x256xf32>
    %cst_15 = arith.constant 0.707106769 : f32
    %31 = vector.broadcast %cst_15 : f32 to vector<100x256xf32>
    %32 = arith.mulf %28, %31 : vector<100x256xf32>
    %33 = math.absf %32 : vector<100x256xf32>
    %cst_16 = arith.constant 0.327591091 : f32
    %34 = vector.broadcast %cst_16 : f32 to vector<100x256xf32>
    %35 = arith.mulf %34, %33 : vector<100x256xf32>
    %cst_17 = arith.constant 1.000000e+00 : f32
    %36 = vector.broadcast %cst_17 : f32 to vector<100x256xf32>
    %37 = arith.addf %36, %35 : vector<100x256xf32>
    %cst_18 = arith.constant 1.000000e+00 : f32
    %38 = vector.broadcast %cst_18 : f32 to vector<100x256xf32>
    %39 = arith.divf %38, %37 : vector<100x256xf32>
    %cst_19 = arith.constant 1.06140542 : f32
    %40 = vector.broadcast %cst_19 : f32 to vector<100x256xf32>
    %41 = arith.mulf %40, %39 : vector<100x256xf32>
    %cst_20 = arith.constant -1.45315206 : f32
    %42 = vector.broadcast %cst_20 : f32 to vector<100x256xf32>
    %43 = arith.addf %41, %42 : vector<100x256xf32>
    %44 = arith.mulf %43, %39 : vector<100x256xf32>
    %cst_21 = arith.constant 1.42141378 : f32
    %45 = vector.broadcast %cst_21 : f32 to vector<100x256xf32>
    %46 = arith.addf %44, %45 : vector<100x256xf32>
    %47 = arith.mulf %46, %39 : vector<100x256xf32>
    %cst_22 = arith.constant -0.284496725 : f32
    %48 = vector.broadcast %cst_22 : f32 to vector<100x256xf32>
    %49 = arith.addf %47, %48 : vector<100x256xf32>
    %50 = arith.mulf %49, %39 : vector<100x256xf32>
    %cst_23 = arith.constant 0.254829586 : f32
    %51 = vector.broadcast %cst_23 : f32 to vector<100x256xf32>
    %52 = arith.addf %50, %51 : vector<100x256xf32>
    %53 = arith.mulf %52, %39 : vector<100x256xf32>
    %cst_24 = arith.constant 0.000000e+00 : f32
    %54 = vector.broadcast %cst_24 : f32 to vector<100x256xf32>
    %55 = arith.subf %54, %33 : vector<100x256xf32>
    %56 = arith.mulf %55, %33 : vector<100x256xf32>
    %57 = math.exp %56 : vector<100x256xf32>
    %58 = arith.mulf %53, %57 : vector<100x256xf32>
    %cst_25 = arith.constant 1.000000e+00 : f32
    %59 = vector.broadcast %cst_25 : f32 to vector<100x256xf32>
    %60 = arith.subf %59, %58 : vector<100x256xf32>
    %cst_26 = arith.constant 0.000000e+00 : f32
    %61 = vector.broadcast %cst_26 : f32 to vector<100x256xf32>
    %62 = arith.cmpf olt, %32, %61 : vector<100x256xf32>
    %cst_27 = arith.constant 0.000000e+00 : f32
    %63 = vector.broadcast %cst_27 : f32 to vector<100x256xf32>
    %64 = arith.subf %63, %60 : vector<100x256xf32>
    %65 = arith.select %62, %64, %60 : vector<100x256xi1>, vector<100x256xf32>
    %cst_28 = arith.constant 1.000000e+00 : f32
    %66 = vector.broadcast %cst_28 : f32 to vector<100x256xf32>
    %67 = arith.addf %66, %65 : vector<100x256xf32>
    %68 = arith.mulf %30, %67 : vector<100x256xf32>
    %69 = arith.truncf %68 : vector<100x256xf32> to vector<100x256xbf16>
    %c0_29 = arith.constant 0 : index
    %c0_30 = arith.constant 0 : index
    %70 = vector.load %arg6[%c0_29, %c0_30] : memref<256x64xbf16, #tpu.memory_space<vmem>>, vector<256x64xbf16>
    %cst_31 = arith.constant dense<0.000000e+00> : vector<100x64xf32>
    %71 = tpu.matmul %69, %70, %cst_31 {dimension_numbers = #tpu.dot_dimension_numbers<[1], [0], [0], [1], [0, 0, 1, 1], [], []>} : vector<100x256xbf16>, vector<256x64xbf16>, vector<100x64xf32> -> vector<100x64xf32>
    %c0_32 = arith.constant 0 : index
    %c0_33 = arith.constant 0 : index
    %72 = vector.load %arg7[%c0_32, %c0_33] : memref<1x64xf32, #tpu.memory_space<vmem>>, vector<1x64xf32>
    %73 = vector.broadcast %72 : vector<1x64xf32> to vector<100x64xf32>
    %74 = arith.addf %71, %73 : vector<100x64xf32>
    %75 = arith.addf %0, %74 : vector<100x64xf32>
    %c0_34 = arith.constant 0 : index
    %c0_35 = arith.constant 0 : index
    %76 = vector.load %arg8[%c0_34, %c0_35] : memref<100x64xf32, #tpu.memory_space<vmem>>, vector<100x64xf32>
    tpu.vector_store %arg8[%c0_34, %c0_35], %75 {strides = array<i32>} : memref<100x64xf32, #tpu.memory_space<vmem>>, vector<100x64xf32>,
    return
  }
  func.func @transform_0(%arg0: i32) -> (i32, i32) {
    %c0_i32 = arith.constant 0 : i32
    %c0_i32_0 = arith.constant 0 : i32
    return %arg0, %c0_i32 : i32, i32
  }
  func.func @transform_1(%arg0: i32) -> (i32, i32) {
    %c0_i32 = arith.constant 0 : i32
    %c0_i32_0 = arith.constant 0 : i32
    %c0_i32_1 = arith.constant 0 : i32
    return %c0_i32, %c0_i32_0 : i32, i32
  }
  func.func @transform_2(%arg0: i32) -> (i32, i32) {
    %c0_i32 = arith.constant 0 : i32
    %c0_i32_0 = arith.constant 0 : i32
    %c0_i32_1 = arith.constant 0 : i32
    return %c0_i32, %c0_i32_0 : i32, i32
  }
  func.func @transform_3(%arg0: i32) -> (i32, i32) {
    %c0_i32 = arith.constant 0 : i32
    %c0_i32_0 = arith.constant 0 : i32
    %c0_i32_1 = arith.constant 0 : i32
    return %c0_i32, %c0_i32_0 : i32, i32
  }
  func.func @transform_4(%arg0: i32) -> (i32, i32) {
    %c0_i32 = arith.constant 0 : i32
    %c0_i32_0 = arith.constant 0 : i32
    %c0_i32_1 = arith.constant 0 : i32
    return %c0_i32, %c0_i32_0 : i32, i32
  }
  func.func @transform_5(%arg0: i32) -> (i32, i32) {
    %c0_i32 = arith.constant 0 : i32
    %c0_i32_0 = arith.constant 0 : i32
    %c0_i32_1 = arith.constant 0 : i32
    return %c0_i32, %c0_i32_0 : i32, i32
  }
  func.func @transform_6(%arg0: i32) -> (i32, i32) {
    %c0_i32 = arith.constant 0 : i32
    %c0_i32_0 = arith.constant 0 : i32
    %c0_i32_1 = arith.constant 0 : i32
    return %c0_i32, %c0_i32_0 : i32, i32
  }
  func.func @transform_7(%arg0: i32) -> (i32, i32) {
    %c0_i32 = arith.constant 0 : i32
    %c0_i32_0 = arith.constant 0 : i32
    return %arg0, %c0_i32 : i32, i32
  }
}

</mosaic_0001>

<llo_original>
// kernel: swin_block_1d_forward.6
$region0: #{swin_block_1d_forward.6}
  #allocation0 [shape = 'u32[]', space=smem, size = 0x4, offset = 0x4, fixed_abs, tag = 'smem constant byte address 0x4 - core index']
  #allocation1 [shape = 'u32[144,128]{1,0:T(1,128)}', space=vmem, size = 0x12000, scoped, tag = 'internal scratch']
  %s0 = inlined_call_operand.vmem [shape: bf16[100,64], index: 0, kind: input, shape index: {}]
  %s1 = inlined_call_operand.vmem [shape: bf16[64,64], index: 1, kind: input, shape index: {}]
  %s2 = inlined_call_operand.vmem [shape: f32[1,64], index: 2, kind: input, shape index: {}]
  %s3 = inlined_call_operand.vmem [shape: f32[100,64], index: 3, kind: input, shape index: {}]
  %s4 = inlined_call_operand.vmem [shape: f32[100,64], index: 4, kind: output, shape index: {}]
  %s5 = sld [smem:[#allocation0]]
  $region26: #{swin_block_1d_forward.6} parent=0
    _
  %s7 = ssub.s32 1, %s5
  %s8 = scalar_select 0, %s7, %s5
  // Predicated region
  $region2: #{swin_block_1d_forward.6} parent=0 // pred_check
    _
  $region3: #{swin_block_1d_forward.6} parent=0 // pred_check_branch
    %10 = sbr.rel (0) target = $region5
  $region4: #{swin_block_1d_forward.6} parent=0 // pred_region
    _
  $region5: #{swin_block_1d_forward.6} parent=0 // pred_fallthru
    _
  // Predicated region
  $region6: #{swin_block_1d_forward.6} parent=0 // pred_check
    _
  $region7: #{swin_block_1d_forward.6} parent=0 // pred_check_branch
    %12 = sbr.rel (0) target = $region9
  $region8: #{swin_block_1d_forward.6} parent=0 // pred_region
    _
  $region9: #{swin_block_1d_forward.6} parent=0 // pred_fallthru
    _
  // Predicated region
  $region10: #{swin_block_1d_forward.6} parent=0 // pred_check
    _
  $region11: #{swin_block_1d_forward.6} parent=0 // pred_check_branch
    %14 = sbr.rel (0) target = $region13
  $region12: #{swin_block_1d_forward.6} parent=0 // pred_region
    _
  $region13: #{swin_block_1d_forward.6} parent=0 // pred_fallthru
    _
  // Predicated region
  $region14: #{swin_block_1d_forward.6} parent=0 // pred_check
    _
  $region15: #{swin_block_1d_forward.6} parent=0 // pred_check_branch
    %16 = sbr.rel (0) target = $region17
  $region16: #{swin_block_1d_forward.6} parent=0 // pred_region
    _
  $region17: #{swin_block_1d_forward.6} parent=0 // pred_fallthru
    _
  %v18 = vld [vmem:[%s0] sm:$0xf]
  %v19 = vld [vmem:[%s0 + $0x4] sm:$0xf]
  %v20 = vld [vmem:[%s0 + $0x8] sm:$0xf]
  %v21 = vld [vmem:[%s0 + $0xc] sm:$0xf]
  %v22 = vld [vmem:[%s0 + $0x10] sm:$0xf]
  %v23 = vld [vmem:[%s0 + $0x14] sm:$0xf]
  %v24 = vld [vmem:[%s0 + $0x18] sm:$0xf]
  %v25 = vld [vmem:[%s0 + $0x1c] sm:$0xf]
  %v26 = vld [vmem:[%s0 + $0x20] sm:$0xf]
  %v27 = vld [vmem:[%s0 + $0x24] sm:$0xf]
  %v28 = vld [vmem:[%s0 + $0x28] sm:$0xf]
  %v29 = vld [vmem:[%s0 + $0x2c] sm:$0xf]
  %v30 = vld [vmem:[%s0 + $0x30] sm:$0x3]
  %v31 = vld [vmem:[%s1] sm:$0xf]
  %v32 = vld [vmem:[%s1 + $0x4] sm:$0xf]
  %v33 = vld [vmem:[%s1 + $0x8] sm:$0xf]
  %v34 = vld [vmem:[%s1 + $0xc] sm:$0xf]
  %v35 = vld [vmem:[%s1 + $0x10] sm:$0xf]
  %v36 = vld [vmem:[%s1 + $0x14] sm:$0xf]
  %v37 = vld [vmem:[%s1 + $0x18] sm:$0xf]
  %v38 = vld [vmem:[%s1 + $0x1c] sm:$0xf]
  %v39 = vld [vmem:[%s2] sm:$0x1]
  %v41 = vlaneseq
  %v42 = vshrl.u32 %v41, 7
  %v43 = vsub.s32 0, %v42
  %v44 = vrot.slane %v39, %v43
  %v59 = vunpack.c.l.b16 %v18
  %v60 = vunpack.c.l.b16 %v19
  %v61 = vunpack.c.l.b16 %v20
  %v62 = vunpack.c.l.b16 %v21
  %v63 = vunpack.c.l.b16 %v22
  %v64 = vunpack.c.l.b16 %v23
  %v65 = vunpack.c.l.b16 %v24
  %v66 = vunpack.c.l.b16 %v25
  %v67 = vunpack.c.l.b16 %v26
  %v68 = vunpack.c.l.b16 %v27
  %v69 = vunpack.c.l.b16 %v28
  %v70 = vunpack.c.l.b16 %v29
  %v71 = vunpack.c.l.b16 %v30
  %v72 = vpack.c.b16 %v60, %v59
  %v73 = vpack.c.b16 %v62, %v61
  %v74 = vpack.c.b16 %v64, %v63
  %v75 = vpack.c.b16 %v66, %v65
  %v76 = vpack.c.b16 %v68, %v67
  %v77 = vpack.c.b16 %v70, %v69
  %v78 = vpack.c.b16 %v71, %v71
  %v87 = vunpack.c.l.b16 %v31
  %v88 = vunpack.c.l.b16 %v32
  %v89 = vunpack.c.l.b16 %v33
  %v90 = vunpack.c.l.b16 %v34
  %v91 = vunpack.c.l.b16 %v35
  %v92 = vunpack.c.l.b16 %v36
  %v93 = vunpack.c.l.b16 %v37
  %v94 = vunpack.c.l.b16 %v38
  %v95 = vpack.c.b16 %v88, %v87
  %v96 = vpack.c.b16 %v90, %v89
  %v97 = vpack.c.b16 %v92, %v91
  %v98 = vpack.c.b16 %v94, %v93
  %vm103 = vcmask 523264
  %v105 = vsel %vm103, %v72, 0
  %v108 = vsel %vm103, %v73, 0
  %v111 = vsel %vm103, %v74, 0
  %v114 = vsel %vm103, %v75, 0
  %v117 = vsel %vm103, %v76, 0
  %v120 = vsel %vm103, %v77, 0
  %v123 = vsel %vm103, %v78, 0
  %125 = vmatprep.subr.bf16.mxu0 0
  %126 = vmatpush1.bf16.msra.mxu0 %v95
  %127 = vmatprep.subr.bf16.mxu0 0
  %128 = vmatpush1.bf16.msra.mxu0 %v96
  %129 = vmatprep.subr.bf16.mxu0 0
  %130 = vmatpush1.bf16.msra.mxu0 %v97
  %131 = vmatprep.subr.bf16.mxu0 0
  %132 = vmatpush1.bf16.msra.mxu0 %v98
  %133 = vmatprep.subr.bf16.mxu0 0
  %134 = vmatpush1.bf16.msra.mxu0 0
  %135 = vmatprep.subr.bf16.mxu0 0
  %136 = vmatpush1.bf16.msra.mxu0 0
  %137 = vmatprep.subr.bf16.mxu0 0
  %138 = vmatpush1.bf16.msra.mxu0 0
  %139 = vmatprep.subr.bf16.mxu0 0
  %140 = vmatpush1.bf16.msra.mxu0 0
  %141 = vmatprep.subr.bf16.mxu0 0
  %142 = vmatpush1.bf16.msra.mxu0 0
  %143 = vmatprep.subr.bf16.mxu0 0
  %144 = vmatpush1.bf16.msra.mxu0 0
  %145 = vmatprep.subr.bf16.mxu0 0
  %146 = vmatpush1.bf16.msra.mxu0 0
  %147 = vmatprep.subr.bf16.mxu0 0
  %148 = vmatpush1.bf16.msra.mxu0 0
  %149 = vmatprep.subr.bf16.mxu0 0
  %150 = vmatpush1.bf16.msra.mxu0 0
  %151 = vmatprep.subr.bf16.mxu0 0
  %152 = vmatpush1.bf16.msra.mxu0 0
  %153 = vmatprep.subr.bf16.mxu0 0
  %154 = vmatpush1.bf16.msra.mxu0 0
  %155 = vmatprep.subr.bf16.mxu0 0
  %156 = vmatpush1.bf16.msra.mxu0 0
  %157 = vmatprep.mubr.bf16.mxu0 0
  %158 = vmatmul.mubr.bf16.gmra.mrb[0].mxu0 %v105
  %v159 = vpop.f32.mrb[0].mxu0
  %v160 = vadd.f32 %v44, %v159
  %v161 = vpop.f32.mrb[0].mxu0
  %v162 = vpop.f32.mrb[0].mxu0
  %v163 = vadd.f32 %v44, %v162
  %v164 = vpop.f32.mrb[0].mxu0
  %165 = vmatprep.mubr.bf16.mxu0 0
  %166 = vmatmul.mubr.bf16.gmra.mrb[0].mxu0 %v108
  %v167 = vpop.f32.mrb[0].mxu0
  %v168 = vadd.f32 %v44, %v167
  %v169 = vpop.f32.mrb[0].mxu0
  %v170 = vpop.f32.mrb[0].mxu0
  %v171 = vadd.f32 %v44, %v170
  %v172 = vpop.f32.mrb[0].mxu0
  %173 = vmatprep.mubr.bf16.mxu0 0
  %174 = vmatmul.mubr.bf16.gmra.mrb[0].mxu0 %v111
  %v175 = vpop.f32.mrb[0].mxu0
  %v176 = vadd.f32 %v44, %v175
  %v177 = vpop.f32.mrb[0].mxu0
  %v178 = vpop.f32.mrb[0].mxu0
  %v179 = vadd.f32 %v44, %v178
  %v180 = vpop.f32.mrb[0].mxu0
  %181 = vmatprep.mubr.bf16.mxu0 0
  %182 = vmatmul.mubr.bf16.gmra.mrb[0].mxu0 %v114
  %v183 = vpop.f32.mrb[0].mxu0
  %v184 = vadd.f32 %v44, %v183
  %v185 = vpop.f32.mrb[0].mxu0
  %v186 = vpop.f32.mrb[0].mxu0
  %v187 = vadd.f32 %v44, %v186
  %v188 = vpop.f32.mrb[0].mxu0
  %189 = vmatprep.mubr.bf16.mxu0 0
  %190 = vmatmul.mubr.bf16.gmra.mrb[0].mxu0 %v117
  %v191 = vpop.f32.mrb[0].mxu0
  %v192 = vadd.f32 %v44, %v191
  %v193 = vpop.f32.mrb[0].mxu0
  %v194 = vpop.f32.mrb[0].mxu0
  %v195 = vadd.f32 %v44, %v194
  %v196 = vpop.f32.mrb[0].mxu0
  %197 = vmatprep.mubr.bf16.mxu0 0
  %198 = vmatmul.mubr.bf16.gmra.mrb[0].mxu0 %v120
  %v199 = vpop.f32.mrb[0].mxu0
  %v200 = vadd.f32 %v44, %v199
  %v201 = vpop.f32.mrb[0].mxu0
  %v202 = vpop.f32.mrb[0].mxu0
  %v203 = vadd.f32 %v44, %v202
  %v204 = vpop.f32.mrb[0].mxu0
  %205 = vmatprep.mubr.bf16.mxu0 0
  %206 = vmatmul.mubr.bf16.gmra.mrb[0].mxu0 %v123
  %v207 = vpop.f32.mrb[0].mxu0
  %v208 = vadd.f32 %v44, %v207
  %v209 = vpop.f32.mrb[0].mxu0
  %v210 = vpop.f32.mrb[0].mxu0
  %v211 = vpop.f32.mrb[0].mxu0
  %212 = vdwg.mxu0
  %v213 = vld [vmem:[%s3] sm:$0xff]
  %v214 = vld [vmem:[%s3 + $0x8] sm:$0xff]
  %v215 = vld [vmem:[%s3 + $0x10] sm:$0xff]
  %v216 = vld [vmem:[%s3 + $0x18] sm:$0xff]
  %v217 = vld [vmem:[%s3 + $0x20] sm:$0xff]
  %v218 = vld [vmem:[%s3 + $0x28] sm:$0xff]
  %v219 = vld [vmem:[%s3 + $0x30] sm:$0xff]
  %v220 = vld [vmem:[%s3 + $0x38] sm:$0xff]
  %v221 = vld [vmem:[%s3 + $0x40] sm:$0xff]
  %v222 = vld [vmem:[%s3 + $0x48] sm:$0xff]
  %v223 = vld [vmem:[%s3 + $0x50] sm:$0xff]
  %v224 = vld [vmem:[%s3 + $0x58] sm:$0xff]
  %v225 = vld [vmem:[%s3 + $0x60] sm:$0xf]
  %v226 = vadd.f32 %v160, %v213
  %v227 = vadd.f32 %v163, %v214
  %v228 = vadd.f32 %v168, %v215
  %v229 = vadd.f32 %v171, %v216
  %v230 = vadd.f32 %v176, %v217
  %v231 = vadd.f32 %v179, %v218
  %v232 = vadd.f32 %v184, %v219
  %v233 = vadd.f32 %v187, %v220
  %v234 = vadd.f32 %v192, %v221
  %v235 = vadd.f32 %v195, %v222
  %v236 = vadd.f32 %v200, %v223
  %v237 = vadd.f32 %v203, %v224
  %v238 = vadd.f32 %v208, %v225
  %239 = vst.msk [vmem:[%s4] sm:$0xff] %vm103, %v226
  %240 = vst.msk [vmem:[%s4 + $0x8] sm:$0xff] %vm103, %v227
  %241 = vst.msk [vmem:[%s4 + $0x10] sm:$0xff] %vm103, %v228
  %242 = vst.msk [vmem:[%s4 + $0x18] sm:$0xff] %vm103, %v229
  %243 = vst.msk [vmem:[%s4 + $0x20] sm:$0xff] %vm103, %v230
  %244 = vst.msk [vmem:[%s4 + $0x28] sm:$0xff] %vm103, %v231
  %245 = vst.msk [vmem:[%s4 + $0x30] sm:$0xff] %vm103, %v232
  %246 = vst.msk [vmem:[%s4 + $0x38] sm:$0xff] %vm103, %v233
  %247 = vst.msk [vmem:[%s4 + $0x40] sm:$0xff] %vm103, %v234
  %248 = vst.msk [vmem:[%s4 + $0x48] sm:$0xff] %vm103, %v235
  %249 = vst.msk [vmem:[%s4 + $0x50] sm:$0xff] %vm103, %v236
  %250 = vst.msk [vmem:[%s4 + $0x58] sm:$0xff] %vm103, %v237
  %vm251 = vcmask 519168
  %252 = vst.msk [vmem:[%s4 + $0x60] sm:$0xf] %vm251, %v238
  // Predicated region
  $region18: #{swin_block_1d_forward.6} parent=0 // pred_check
    _
  $region19: #{swin_block_1d_forward.6} parent=0 // pred_check_branch
    %254 = sbr.rel (0) target = $region21
  $region20: #{swin_block_1d_forward.6} parent=0 // pred_region
    _
  $region21: #{swin_block_1d_forward.6} parent=0 // pred_fallthru
    _
  // Predicated region
  $region22: #{swin_block_1d_forward.6} parent=0 // pred_check
    _
  $region23: #{swin_block_1d_forward.6} parent=0 // pred_check_branch
    %256 = sbr.rel (0) target = $region25
  $region24: #{swin_block_1d_forward.6} parent=0 // pred_region
    _
  $region25: #{swin_block_1d_forward.6} parent=0 // pred_fallthru
    _

// kernel: swin_block_1d_forward.4
$region0: #{swin_block_1d_forward.4}
  #allocation0 [shape = 'u32[]', space=smem, size = 0x4, offset = 0x4, fixed_abs, tag = 'smem constant byte address 0x4 - core index']
  #allocation1 [shape = 'u32[144,128]{1,0:T(1,128)}', space=vmem, size = 0x12000, scoped, tag = 'internal scratch']
  %s0 = inlined_call_operand.vmem [shape: f32[100,64], index: 0, kind: input, shape index: {}]
  %s1 = inlined_call_operand.vmem [shape: f32[1,64], index: 1, kind: input, shape index: {}]
  %s2 = inlined_call_operand.vmem [shape: f32[1,64], index: 2, kind: input, shape index: {}]
  %s3 = inlined_call_operand.vmem [shape: bf16[64,192], index: 3, kind: input, shape index: {}]
  %s4 = inlined_call_operand.vmem [shape: f32[1,192], index: 4, kind: input, shape index: {}]
  %s5 = inlined_call_operand.vmem [shape: bf16[3,100,64], index: 5, kind: output, shape index: {}]
  %s6 = sld [smem:[#allocation0]]
  $region30: #{swin_block_1d_forward.4} parent=0
    _
  %s8 = ssub.s32 1, %s6
  %s9 = scalar_select 0, %s8, %s6
  // Predicated region
  $region2: #{swin_block_1d_forward.4} parent=0 // pred_check
    _
  $region3: #{swin_block_1d_forward.4} parent=0 // pred_check_branch
    %11 = sbr.rel (0) target = $region5
  $region4: #{swin_block_1d_forward.4} parent=0 // pred_region
    _
  $region5: #{swin_block_1d_forward.4} parent=0 // pred_fallthru
    _
  // Predicated region
  $region6: #{swin_block_1d_forward.4} parent=0 // pred_check
    _
  $region7: #{swin_block_1d_forward.4} parent=0 // pred_check_branch
    %13 = sbr.rel (0) target = $region9
  $region8: #{swin_block_1d_forward.4} parent=0 // pred_region
    _
  $region9: #{swin_block_1d_forward.4} parent=0 // pred_fallthru
    _
  // Predicated region
  $region10: #{swin_block_1d_forward.4} parent=0 // pred_check
    _
  $region11: #{swin_block_1d_forward.4} parent=0 // pred_check_branch
    %15 = sbr.rel (0) target = $region13
  $region12: #{swin_block_1d_forward.4} parent=0 // pred_region
    _
  $region13: #{swin_block_1d_forward.4} parent=0 // pred_fallthru
    _
  // Predicated region
  $region14: #{swin_block_1d_forward.4} parent=0 // pred_check
    _
  $region15: #{swin_block_1d_forward.4} parent=0 // pred_check_branch
    %17 = sbr.rel (0) target = $region17
  $region16: #{swin_block_1d_forward.4} parent=0 // pred_region
    _
  $region17: #{swin_block_1d_forward.4} parent=0 // pred_fallthru
    _
  // Predicated region
  $region18: #{swin_block_1d_forward.4} parent=0 // pred_check
    _
  $region19: #{swin_block_1d_forward.4} parent=0 // pred_check_branch
    %19 = sbr.rel (0) target = $region21
  $region20: #{swin_block_1d_forward.4} parent=0 // pred_region
    _
  $region21: #{swin_block_1d_forward.4} parent=0 // pred_fallthru
    _
  %v21 = vld [vmem:[%s0] sm:$0xff]
  %v22 = vld [vmem:[%s0 + $0x8] sm:$0xff]
  %v23 = vld [vmem:[%s0 + $0x10] sm:$0xff]
  %v24 = vld [vmem:[%s0 + $0x18] sm:$0xff]
  %v25 = vld [vmem:[%s0 + $0x20] sm:$0xff]
  %v26 = vld [vmem:[%s0 + $0x28] sm:$0xff]
  %v27 = vld [vmem:[%s0 + $0x30] sm:$0xff]
  %v28 = vld [vmem:[%s0 + $0x38] sm:$0xff]
  %v29 = vld [vmem:[%s0 + $0x40] sm:$0xff]
  %v30 = vld [vmem:[%s0 + $0x48] sm:$0xff]
  %v31 = vld [vmem:[%s0 + $0x50] sm:$0xff]
  %v32 = vld [vmem:[%s0 + $0x58] sm:$0xff]
  %v33 = vld [vmem:[%s0 + $0x60] sm:$0xf]
  %vm34 = vcmask 523264
  %v35 = vsel %vm34, %v21, 0.0
  %36 = vadd.xlane.f32.xlu0 %v35
  %v37 = vpop.xlane.xlu0 %36
  %v38 = vsel %vm34, %v22, 0.0
  %39 = vadd.xlane.f32.xlu0 %v38
  %v40 = vpop.xlane.xlu0 %39
  %v41 = vsel %vm34, %v23, 0.0
  %42 = vadd.xlane.f32.xlu0 %v41
  %v43 = vpop.xlane.xlu0 %42
  %v44 = vsel %vm34, %v24, 0.0
  %45 = vadd.xlane.f32.xlu0 %v44
  %v46 = vpop.xlane.xlu0 %45
  %v47 = vsel %vm34, %v25, 0.0
  %48 = vadd.xlane.f32.xlu0 %v47
  %v49 = vpop.xlane.xlu0 %48
  %v50 = vsel %vm34, %v26, 0.0
  %51 = vadd.xlane.f32.xlu0 %v50
  %v52 = vpop.xlane.xlu0 %51
  %v53 = vsel %vm34, %v27, 0.0
  %54 = vadd.xlane.f32.xlu0 %v53
  %v55 = vpop.xlane.xlu0 %54
  %v56 = vsel %vm34, %v28, 0.0
  %57 = vadd.xlane.f32.xlu0 %v56
  %v58 = vpop.xlane.xlu0 %57
  %v59 = vsel %vm34, %v29, 0.0
  %60 = vadd.xlane.f32.xlu0 %v59
  %v61 = vpop.xlane.xlu0 %60
  %v62 = vsel %vm34, %v30, 0.0
  %63 = vadd.xlane.f32.xlu0 %v62
  %v64 = vpop.xlane.xlu0 %63
  %v65 = vsel %vm34, %v31, 0.0
  %66 = vadd.xlane.f32.xlu0 %v65
  %v67 = vpop.xlane.xlu0 %66
  %v68 = vsel %vm34, %v32, 0.0
  %69 = vadd.xlane.f32.xlu0 %v68
  %v70 = vpop.xlane.xlu0 %69
  %vm71 = vcmask 519168
  %v72 = vsel %vm71, %v33, 0.0
  %73 = vadd.xlane.f32.xlu0 %v72
  %v74 = vpop.xlane.xlu0 %73
  %v75 = vrcp.pop 64.0
  %v76 = vmul.f32 %v37, %v75
  %v77 = vmul.f32 %v40, %v75
  %v78 = vmul.f32 %v43, %v75
  %v79 = vmul.f32 %v46, %v75
  %v80 = vmul.f32 %v49, %v75
  %v81 = vmul.f32 %v52, %v75
  %v82 = vmul.f32 %v55, %v75
  %v83 = vmul.f32 %v58, %v75
  %v84 = vmul.f32 %v61, %v75
  %v85 = vmul.f32 %v64, %v75
  %v86 = vmul.f32 %v67, %v75
  %v87 = vmul.f32 %v70, %v75
  %v88 = vmul.f32 %v74, %v75
  %v89 = vsub.f32 %v21, %v76
  %v90 = vsub.f32 %v22, %v77
  %v91 = vsub.f32 %v23, %v78
  %v92 = vsub.f32 %v24, %v79
  %v93 = vsub.f32 %v25, %v80
  %v94 = vsub.f32 %v26, %v81
  %v95 = vsub.f32 %v27, %v82
  %v96 = vsub.f32 %v28, %v83
  %v97 = vsub.f32 %v29, %v84
  %v98 = vsub.f32 %v30, %v85
  %v99 = vsub.f32 %v31, %v86
  %v100 = vsub.f32 %v32, %v87
  %v101 = vsub.f32 %v33, %v88
  %v102 = vmul.f32 %v89, %v89
  %v103 = vmul.f32 %v90, %v90
  %v104 = vmul.f32 %v91, %v91
  %v105 = vmul.f32 %v92, %v92
  %v106 = vmul.f32 %v93, %v93
  %v107 = vmul.f32 %v94, %v94
  %v108 = vmul.f32 %v95, %v95
  %v109 = vmul.f32 %v96, %v96
  %v110 = vmul.f32 %v97, %v97
  %v111 = vmul.f32 %v98, %v98
  %v112 = vmul.f32 %v99, %v99
  %v113 = vmul.f32 %v100, %v100
  %v114 = vmul.f32 %v101, %v101
  %v115 = vsel %vm34, %v102, 0.0
  %116 = vadd.xlane.f32.xlu0 %v115
  %v117 = vpop.xlane.xlu0 %116
  %v118 = vsel %vm34, %v103, 0.0
  %119 = vadd.xlane.f32.xlu0 %v118
  %v120 = vpop.xlane.xlu0 %119
  %v121 = vsel %vm34, %v104, 0.0
  %122 = vadd.xlane.f32.xlu0 %v121
  %v123 = vpop.xlane.xlu0 %122
  %v124 = vsel %vm34, %v105, 0.0
  %125 = vadd.xlane.f32.xlu0 %v124
  %v126 = vpop.xlane.xlu0 %125
  %v127 = vsel %vm34, %v106, 0.0
  %128 = vadd.xlane.f32.xlu0 %v127
  %v129 = vpop.xlane.xlu0 %128
  %v130 = vsel %vm34, %v107, 0.0
  %131 = vadd.xlane.f32.xlu0 %v130
  %v132 = vpop.xlane.xlu0 %131
  %v133 = vsel %vm34, %v108, 0.0
  %134 = vadd.xlane.f32.xlu0 %v133
  %v135 = vpop.xlane.xlu0 %134
  %v136 = vsel %vm34, %v109, 0.0
  %137 = vadd.xlane.f32.xlu0 %v136
  %v138 = vpop.xlane.xlu0 %137
  %v139 = vsel %vm34, %v110, 0.0
  %140 = vadd.xlane.f32.xlu0 %v139
  %v141 = vpop.xlane.xlu0 %140
  %v142 = vsel %vm34, %v111, 0.0
  %143 = vadd.xlane.f32.xlu0 %v142
  %v144 = vpop.xlane.xlu0 %143
  %v145 = vsel %vm34, %v112, 0.0
  %146 = vadd.xlane.f32.xlu0 %v145
  %v147 = vpop.xlane.xlu0 %146
  %v148 = vsel %vm34, %v113, 0.0
  %149 = vadd.xlane.f32.xlu0 %v148
  %v150 = vpop.xlane.xlu0 %149
  %v151 = vsel %vm71, %v114, 0.0
  %152 = vadd.xlane.f32.xlu0 %v151
  %v153 = vpop.xlane.xlu0 %152
  %v154 = vmul.f32 %v117, %v75
  %v155 = vmul.f32 %v120, %v75
  %v156 = vmul.f32 %v123, %v75
  %v157 = vmul.f32 %v126, %v75
  %v158 = vmul.f32 %v129, %v75
  %v159 = vmul.f32 %v132, %v75
  %v160 = vmul.f32 %v135, %v75
  %v161 = vmul.f32 %v138, %v75
  %v162 = vmul.f32 %v141, %v75
  %v163 = vmul.f32 %v144, %v75
  %v164 = vmul.f32 %v147, %v75
  %v165 = vmul.f32 %v150, %v75
  %v166 = vmul.f32 %v153, %v75
  %v167 = vadd.f32 %v154, 1e-05
  %v168 = vadd.f32 %v155, 1e-05
  %v169 = vadd.f32 %v156, 1e-05
  %v170 = vadd.f32 %v157, 1e-05
  %v171 = vadd.f32 %v158, 1e-05
  %v172 = vadd.f32 %v159, 1e-05
  %v173 = vadd.f32 %v160, 1e-05
  %v174 = vadd.f32 %v161, 1e-05
  %v175 = vadd.f32 %v162, 1e-05
  %v176 = vadd.f32 %v163, 1e-05
  %v177 = vadd.f32 %v164, 1e-05
  %v178 = vadd.f32 %v165, 1e-05
  %v179 = vadd.f32 %v166, 1e-05
  %v180 = vrsqrt.pop %v167
  %v181 = vrsqrt.pop %v168
  %v182 = vrsqrt.pop %v169
  %v183 = vrsqrt.pop %v170
  %v184 = vrsqrt.pop %v171
  %v185 = vrsqrt.pop %v172
  %v186 = vrsqrt.pop %v173
  %v187 = vrsqrt.pop %v174
  %v188 = vrsqrt.pop %v175
  %v189 = vrsqrt.pop %v176
  %v190 = vrsqrt.pop %v177
  %v191 = vrsqrt.pop %v178
  %v192 = vrsqrt.pop %v179
  %v193 = vmul.f32 %v89, %v180
  %v194 = vmul.f32 %v90, %v181
  %v195 = vmul.f32 %v91, %v182
  %v196 = vmul.f32 %v92, %v183
  %v197 = vmul.f32 %v93, %v184
  %v198 = vmul.f32 %v94, %v185
  %v199 = vmul.f32 %v95, %v186
  %v200 = vmul.f32 %v96, %v187
  %v201 = vmul.f32 %v97, %v188
  %v202 = vmul.f32 %v98, %v189
  %v203 = vmul.f32 %v99, %v190
  %v204 = vmul.f32 %v100, %v191
  %v205 = vmul.f32 %v101, %v192
  %v206 = vld [vmem:[%s1] sm:$0x1]
  %v208 = vlaneseq
  %v209 = vshrl.u32 %v208, 7
  %v210 = vsub.s32 0, %v209
  %v211 = vrot.slane %v206, %v210
  %v213 = vmul.f32 %v193, %v211
  %v214 = vmul.f32 %v194, %v211
  %v215 = vmul.f32 %v195, %v211
  %v216 = vmul.f32 %v196, %v211
  %v217 = vmul.f32 %v197, %v211
  %v218 = vmul.f32 %v198, %v211
  %v219 = vmul.f32 %v199, %v211
  %v220 = vmul.f32 %v200, %v211
  %v221 = vmul.f32 %v201, %v211
  %v222 = vmul.f32 %v202, %v211
  %v223 = vmul.f32 %v203, %v211
  %v224 = vmul.f32 %v204, %v211
  %v225 = vmul.f32 %v205, %v211
  %v226 = vld [vmem:[%s2] sm:$0x1]
  %v228 = vlaneseq
  %v229 = vshrl.u32 %v228, 7
  %v230 = vsub.s32 0, %v229
  %v231 = vrot.slane %v226, %v230
  %v233 = vadd.f32 %v213, %v231
  %v234 = vadd.f32 %v214, %v231
  %v235 = vadd.f32 %v215, %v231
  %v236 = vadd.f32 %v216, %v231
  %v237 = vadd.f32 %v217, %v231
  %v238 = vadd.f32 %v218, %v231
  %v239 = vadd.f32 %v219, %v231
  %v240 = vadd.f32 %v220, %v231
  %v241 = vadd.f32 %v221, %v231
  %v242 = vadd.f32 %v222, %v231
  %v243 = vadd.f32 %v223, %v231
  %v244 = vadd.f32 %v224, %v231
  %v245 = vadd.f32 %v225, %v231
  %v246 = vpack.c.bf16 %v234, %v233
  %v247 = vpack.c.bf16 %v236, %v235
  %v248 = vpack.c.bf16 %v238, %v237
  %v249 = vpack.c.bf16 %v240, %v239
  %v250 = vpack.c.bf16 %v242, %v241
  %v251 = vpack.c.bf16 %v244, %v243
  %v252 = vpack.c.bf16 %v245, %v245
  %v253 = vld [vmem:[%s3] sm:$0xff]
  %v254 = vld [vmem:[%s3 + $0x8] sm:$0xff]
  %v255 = vld [vmem:[%s3 + $0x10] sm:$0xff]
  %v256 = vld [vmem:[%s3 + $0x18] sm:$0xff]
  %v257 = vld [vmem:[%s3 + $0x20] sm:$0xff]
  %v258 = vld [vmem:[%s3 + $0x28] sm:$0xff]
  %v259 = vld [vmem:[%s3 + $0x30] sm:$0xff]
  %v260 = vld [vmem:[%s3 + $0x38] sm:$0xff]
  %v261 = vld [vmem:[%s4] sm:$0x3]
  %v263 = vlaneseq
  %v264 = vshrl.u32 %v263, 7
  %v265 = vsub.s32 0, %v264
  %v266 = vrot.slane %v261, %v265
  %v267 = vlaneseq
  %v268 = vshrl.u32 %v267, 7
  %v269 = vsub.s32 1, %v268
  %v270 = vrot.slane %v261, %v269
  %v281 = vunpack.c.l.b16 %v253
  %v282 = vunpack.c.h.b16 %v253
  %v283 = vunpack.c.l.b16 %v254
  %v284 = vunpack.c.h.b16 %v254
  %v285 = vunpack.c.l.b16 %v255
  %v286 = vunpack.c.h.b16 %v255
  %v287 = vunpack.c.l.b16 %v256
  %v288 = vunpack.c.h.b16 %v256
  %v289 = vunpack.c.l.b16 %v257
  %v290 = vunpack.c.h.b16 %v257
  %v291 = vunpack.c.l.b16 %v258
  %v292 = vunpack.c.h.b16 %v258
  %v293 = vunpack.c.l.b16 %v259
  %v294 = vunpack.c.h.b16 %v259
  %v295 = vunpack.c.l.b16 %v260
  %v296 = vunpack.c.h.b16 %v260
  %v297 = vpack.c.b16 %v283, %v281
  %v298 = vpack.c.b16 %v284, %v282
  %v299 = vpack.c.b16 %v287, %v285
  %v300 = vpack.c.b16 %v288, %v286
  %v301 = vpack.c.b16 %v291, %v289
  %v302 = vpack.c.b16 %v292, %v290
  %v303 = vpack.c.b16 %v295, %v293
  %v304 = vpack.c.b16 %v296, %v294
  %v314 = vsel %vm34, %v246, 0
  %v317 = vsel %vm34, %v247, 0
  %v320 = vsel %vm34, %v248, 0
  %v323 = vsel %vm34, %v249, 0
  %v326 = vsel %vm34, %v250, 0
  %v329 = vsel %vm34, %v251, 0
  %v332 = vsel %vm34, %v252, 0
  %334 = vmatprep.subr.bf16.mxu0 %v298
  %335 = vmatpush1.bf16.msra.mxu0 %v297
  %336 = vmatprep.subr.bf16.mxu0 %v300
  %337 = vmatpush1.bf16.msra.mxu0 %v299
  %338 = vmatprep.subr.bf16.mxu0 %v302
  %339 = vmatpush1.bf16.msra.mxu0 %v301
  %340 = vmatprep.subr.bf16.mxu0 %v304
  %341 = vmatpush1.bf16.msra.mxu0 %v303
  %342 = vmatprep.subr.bf16.mxu0 0
  %343 = vmatpush1.bf16.msra.mxu0 0
  %344 = vmatprep.subr.bf16.mxu0 0
  %345 = vmatpush1.bf16.msra.mxu0 0
  %346 = vmatprep.subr.bf16.mxu0 0
  %347 = vmatpush1.bf16.msra.mxu0 0
  %348 = vmatprep.subr.bf16.mxu0 0
  %349 = vmatpush1.bf16.msra.mxu0 0
  %350 = vmatprep.subr.bf16.mxu0 0
  %351 = vmatpush1.bf16.msra.mxu0 0
  %352 = vmatprep.subr.bf16.mxu0 0
  %353 = vmatpush1.bf16.msra.mxu0 0
  %354 = vmatprep.subr.bf16.mxu0 0
  %355 = vmatpush1.bf16.msra.mxu0 0
  %356 = vmatprep.subr.bf16.mxu0 0
  %357 = vmatpush1.bf16.msra.mxu0 0
  %358 = vmatprep.subr.bf16.mxu0 0
  %359 = vmatpush1.bf16.msra.mxu0 0
  %360 = vmatprep.subr.bf16.mxu0 0
  %361 = vmatpush1.bf16.msra.mxu0 0
  %362 = vmatprep.subr.bf16.mxu0 0
  %363 = vmatpush1.bf16.msra.mxu0 0
  %364 = vmatprep.subr.bf16.mxu0 0
  %365 = vmatpush1.bf16.msra.mxu0 0
  %366 = vmatprep.mubr.bf16.mxu0 0
  %367 = vmatmul.mubr.bf16.gmra.mrb[0].mxu0 %v314
  %v368 = vpop.f32.mrb[0].mxu0
  %v369 = vadd.f32 %v266, %v368
  %v370 = vpop.f32.mrb[0].mxu0
  %v371 = vadd.f32 %v270, %v370
  %v372 = vpop.f32.mrb[0].mxu0
  %v373 = vadd.f32 %v266, %v372
  %v374 = vpop.f32.mrb[0].mxu0
  %v375 = vadd.f32 %v270, %v374
  %376 = vmatprep.mubr.bf16.mxu0 0
  %377 = vmatmul.mubr.bf16.gmra.mrb[0].mxu0 %v317
  %v378 = vpop.f32.mrb[0].mxu0
  %v379 = vadd.f32 %v266, %v378
  %v380 = vpop.f32.mrb[0].mxu0
  %v381 = vadd.f32 %v270, %v380
  %v382 = vpop.f32.mrb[0].mxu0
  %v383 = vadd.f32 %v266, %v382
  %v384 = vpop.f32.mrb[0].mxu0
  %v385 = vadd.f32 %v270, %v384
  %386 = vmatprep.mubr.bf16.mxu0 0
  %387 = vmatmul.mubr.bf16.gmra.mrb[0].mxu0 %v320
  %v388 = vpop.f32.mrb[0].mxu0
  %v389 = vadd.f32 %v266, %v388
  %v390 = vpop.f32.mrb[0].mxu0
  %v391 = vadd.f32 %v270, %v390
  %v392 = vpop.f32.mrb[0].mxu0
  %v393 = vadd.f32 %v266, %v392
  %v394 = vpop.f32.mrb[0].mxu0
  %v395 = vadd.f32 %v270, %v394
  %396 = vmatprep.mubr.bf16.mxu0 0
  %397 = vmatmul.mubr.bf16.gmra.mrb[0].mxu0 %v323
  %v398 = vpop.f32.mrb[0].mxu0
  %v399 = vadd.f32 %v266, %v398
  %v400 = vpop.f32.mrb[0].mxu0
  %v401 = vadd.f32 %v270, %v400
  %v402 = vpop.f32.mrb[0].mxu0
  %v403 = vadd.f32 %v266, %v402
  %v404 = vpop.f32.mrb[0].mxu0
  %v405 = vadd.f32 %v270, %v404
  %406 = vmatprep.mubr.bf16.mxu0 0
  %407 = vmatmul.mubr.bf16.gmra.mrb[0].mxu0 %v326
  %v408 = vpop.f32.mrb[0].mxu0
  %v409 = vadd.f32 %v266, %v408
  %v410 = vpop.f32.mrb[0].mxu0
  %v411 = vadd.f32 %v270, %v410
  %v412 = vpop.f32.mrb[0].mxu0
  %v413 = vadd.f32 %v266, %v412
  %v414 = vpop.f32.mrb[0].mxu0
  %v415 = vadd.f32 %v270, %v414
  %416 = vmatprep.mubr.bf16.mxu0 0
  %417 = vmatmul.mubr.bf16.gmra.mrb[0].mxu0 %v329
  %v418 = vpop.f32.mrb[0].mxu0
  %v419 = vadd.f32 %v266, %v418
  %v420 = vpop.f32.mrb[0].mxu0
  %v421 = vadd.f32 %v270, %v420
  %v422 = vpop.f32.mrb[0].mxu0
  %v423 = vadd.f32 %v266, %v422
  %v424 = vpop.f32.mrb[0].mxu0
  %v425 = vadd.f32 %v270, %v424
  %426 = vmatprep.mubr.bf16.mxu0 0
  %427 = vmatmul.mubr.bf16.gmra.mrb[0].mxu0 %v332
  %v428 = vpop.f32.mrb[0].mxu0
  %v429 = vadd.f32 %v266, %v428
  %v430 = vpop.f32.mrb[0].mxu0
  %v431 = vadd.f32 %v270, %v430
  %v432 = vpop.f32.mrb[0].mxu0
  %v433 = vpop.f32.mrb[0].mxu0
  %434 = vdwg.mxu0
  %v435 = vpack.c.bf16 %v373, %v369
  %v436 = vpack.c.bf16 %v375, %v371
  %v437 = vpack.c.bf16 %v383, %v379
  %v438 = vpack.c.bf16 %v385, %v381
  %v439 = vpack.c.bf16 %v393, %v389
  %v440 = vpack.c.bf16 %v395, %v391
  %v441 = vpack.c.bf16 %v403, %v399
  %v442 = vpack.c.bf16 %v405, %v401
  %v443 = vpack.c.bf16 %v413, %v409
  %v444 = vpack.c.bf16 %v415, %v411
  %v445 = vpack.c.bf16 %v423, %v419
  %v446 = vpack.c.bf16 %v425, %v421
  %v447 = vpack.c.bf16 %v429, %v429
  %v448 = vpack.c.bf16 %v431, %v431
  %v456 = vunpack.c.l.b16 %v435
  %v457 = vunpack.c.h.b16 %v435
  %v458 = vunpack.c.l.b16 %v437
  %v459 = vunpack.c.h.b16 %v437
  %v460 = vunpack.c.l.b16 %v439
  %v461 = vunpack.c.h.b16 %v439
  %v462 = vunpack.c.l.b16 %v441
  %v463 = vunpack.c.h.b16 %v441
  %v464 = vunpack.c.l.b16 %v443
  %v465 = vunpack.c.h.b16 %v443
  %v466 = vunpack.c.l.b16 %v445
  %v467 = vunpack.c.h.b16 %v445
  %v468 = vunpack.c.l.b16 %v447
  %v469 = vpack.c.b16 %v456, %v456
  %v470 = vpack.c.b16 %v457, %v457
  %v471 = vpack.c.b16 %v458, %v458
  %v472 = vpack.c.b16 %v459, %v459
  %v473 = vpack.c.b16 %v460, %v460
  %v474 = vpack.c.b16 %v461, %v461
  %v475 = vpack.c.b16 %v462, %v462
  %v476 = vpack.c.b16 %v463, %v463
  %v477 = vpack.c.b16 %v464, %v464
  %v478 = vpack.c.b16 %v465, %v465
  %v479 = vpack.c.b16 %v466, %v466
  %v480 = vpack.c.b16 %v467, %v467
  %v481 = vpack.c.b16 %v468, %v468
  %495 = vst.msk [vmem:[%s5] sm:$0xf] %vm71, %v469
  %496 = vst.msk [vmem:[%s5 + $0x4] sm:$0xf] %vm71, %v470
  %497 = vst.msk [vmem:[%s5 + $0x8] sm:$0xf] %vm71, %v471
  %498 = vst.msk [vmem:[%s5 + $0xc] sm:$0xf] %vm71, %v472
  %499 = vst.msk [vmem:[%s5 + $0x10] sm:$0xf] %vm71, %v473
  %500 = vst.msk [vmem:[%s5 + $0x14] sm:$0xf] %vm71, %v474
  %501 = vst.msk [vmem:[%s5 + $0x18] sm:$0xf] %vm71, %v475
  %502 = vst.msk [vmem:[%s5 + $0x1c] sm:$0xf] %vm71, %v476
  %503 = vst.msk [vmem:[%s5 + $0x20] sm:$0xf] %vm71, %v477
  %504 = vst.msk [vmem:[%s5 + $0x24] sm:$0xf] %vm71, %v478
  %505 = vst.msk [vmem:[%s5 + $0x28] sm:$0xf] %vm71, %v479
  %506 = vst.msk [vmem:[%s5 + $0x2c] sm:$0xf] %vm71, %v480
  %vm507 = vcmask 517120
  %508 = vst.msk [vmem:[%s5 + $0x30] sm:$0x3] %vm507, %v481
  %509 = vrot.lane.b32.xlu0 %v469, 64
  %v510 = vpop.permute.xlu0 %509
  %511 = vrot.lane.b32.xlu0 %v470, 64
  %v512 = vpop.permute.xlu0 %511
  %513 = vrot.lane.b32.xlu0 %v471, 64
  %v514 = vpop.permute.xlu0 %513
  %515 = vrot.lane.b32.xlu0 %v472, 64
  %v516 = vpop.permute.xlu0 %515
  %517 = vrot.lane.b32.xlu0 %v473, 64
  %v518 = vpop.permute.xlu0 %517
  %519 = vrot.lane.b32.xlu0 %v474, 64
  %v520 = vpop.permute.xlu0 %519
  %521 = vrot.lane.b32.xlu0 %v475, 64
  %v522 = vpop.permute.xlu0 %521
  %523 = vrot.lane.b32.xlu0 %v476, 64
  %v524 = vpop.permute.xlu0 %523
  %525 = vrot.lane.b32.xlu0 %v477, 64
  %v526 = vpop.permute.xlu0 %525
  %527 = vrot.lane.b32.xlu0 %v478, 64
  %v528 = vpop.permute.xlu0 %527
  %529 = vrot.lane.b32.xlu0 %v479, 64
  %v530 = vpop.permute.xlu0 %529
  %531 = vrot.lane.b32.xlu0 %v480, 64
  %v532 = vpop.permute.xlu0 %531
  %533 = vrot.lane.b32.xlu0 %v481, 64
  %v534 = vpop.permute.xlu0 %533
  %s548 = scalar_lea.vmem %s5, 52
  %549 = vst.msk [vmem:[%s548] sm:$0xf] %vm71, %v510
  %550 = vst.msk [vmem:[%s548 + $0x4] sm:$0xf] %vm71, %v512
  %551 = vst.msk [vmem:[%s548 + $0x8] sm:$0xf] %vm71, %v514
  %552 = vst.msk [vmem:[%s548 + $0xc] sm:$0xf] %vm71, %v516
  %553 = vst.msk [vmem:[%s548 + $0x10] sm:$0xf] %vm71, %v518
  %554 = vst.msk [vmem:[%s548 + $0x14] sm:$0xf] %vm71, %v520
  %555 = vst.msk [vmem:[%s548 + $0x18] sm:$0xf] %vm71, %v522
  %556 = vst.msk [vmem:[%s548 + $0x1c] sm:$0xf] %vm71, %v524
  %557 = vst.msk [vmem:[%s548 + $0x20] sm:$0xf] %vm71, %v526
  %558 = vst.msk [vmem:[%s548 + $0x24] sm:$0xf] %vm71, %v528
  %559 = vst.msk [vmem:[%s548 + $0x28] sm:$0xf] %vm71, %v530
  %560 = vst.msk [vmem:[%s548 + $0x2c] sm:$0xf] %vm71, %v532
  %561 = vst.msk [vmem:[%s548 + $0x30] sm:$0x3] %vm507, %v534
  %v569 = vunpack.c.l.b16 %v436
  %v570 = vunpack.c.h.b16 %v436
  %v571 = vunpack.c.l.b16 %v438
  %v572 = vunpack.c.h.b16 %v438
  %v573 = vunpack.c.l.b16 %v440
  %v574 = vunpack.c.h.b16 %v440
  %v575 = vunpack.c.l.b16 %v442
  %v576 = vunpack.c.h.b16 %v442
  %v577 = vunpack.c.l.b16 %v444
  %v578 = vunpack.c.h.b16 %v444
  %v579 = vunpack.c.l.b16 %v446
  %v580 = vunpack.c.h.b16 %v446
  %v581 = vunpack.c.l.b16 %v448
  %v582 = vpack.c.b16 %v569, %v569
  %v583 = vpack.c.b16 %v570, %v570
  %v584 = vpack.c.b16 %v571, %v571
  %v585 = vpack.c.b16 %v572, %v572
  %v586 = vpack.c.b16 %v573, %v573
  %v587 = vpack.c.b16 %v574, %v574
  %v588 = vpack.c.b16 %v575, %v575
  %v589 = vpack.c.b16 %v576, %v576
  %v590 = vpack.c.b16 %v577, %v577
  %v591 = vpack.c.b16 %v578, %v578
  %v592 = vpack.c.b16 %v579, %v579
  %v593 = vpack.c.b16 %v580, %v580
  %v594 = vpack.c.b16 %v581, %v581
  %s608 = scalar_lea.vmem %s5, 104
  %609 = vst.msk [vmem:[%s608] sm:$0xf] %vm71, %v582
  %610 = vst.msk [vmem:[%s608 + $0x4] sm:$0xf] %vm71, %v583
  %611 = vst.msk [vmem:[%s608 + $0x8] sm:$0xf] %vm71, %v584
  %612 = vst.msk [vmem:[%s608 + $0xc] sm:$0xf] %vm71, %v585
  %613 = vst.msk [vmem:[%s608 + $0x10] sm:$0xf] %vm71, %v586
  %614 = vst.msk [vmem:[%s608 + $0x14] sm:$0xf] %vm71, %v587
  %615 = vst.msk [vmem:[%s608 + $0x18] sm:$0xf] %vm71, %v588
  %616 = vst.msk [vmem:[%s608 + $0x1c] sm:$0xf] %vm71, %v589
  %617 = vst.msk [vmem:[%s608 + $0x20] sm:$0xf] %vm71, %v590
  %618 = vst.msk [vmem:[%s608 + $0x24] sm:$0xf] %vm71, %v591
  %619 = vst.msk [vmem:[%s608 + $0x28] sm:$0xf] %vm71, %v592
  %620 = vst.msk [vmem:[%s608 + $0x2c] sm:$0xf] %vm71, %v593
  %621 = vst.msk [vmem:[%s608 + $0x30] sm:$0x3] %vm507, %v594
  // Predicated region
  $region22: #{swin_block_1d_forward.4} parent=0 // pred_check
    _
  $region23: #{swin_block_1d_forward.4} parent=0 // pred_check_branch
    %623 = sbr.rel (0) target = $region25
  $region24: #{swin_block_1d_forward.4} parent=0 // pred_region
    _
  $region25: #{swin_block_1d_forward.4} parent=0 // pred_fallthru
    _
  // Predicated region
  $region26: #{swin_block_1d_forward.4} parent=0 // pred_check
    _
  $region27: #{swin_block_1d_forward.4} parent=0 // pred_check_branch
    %625 = sbr.rel (0) target = $region29
  $region28: #{swin_block_1d_forward.4} parent=0 // pred_region
    _
  $region29: #{swin_block_1d_forward.4} parent=0 // pred_fallthru
    _

// kernel: swin_block_1d_forward.5
$region0: #{swin_block_1d_forward.5}
  #allocation0 [shape = 'u32[]', space=smem, size = 0x4, offset = 0x4, fixed_abs, tag = 'smem constant byte address 0x4 - core index']
  #allocation1 [shape = 'u32[144,128]{1,0:T(1,128)}', space=vmem, size = 0x12000, scoped, tag = 'internal scratch']
  %s0 = inlined_call_operand.vmem [shape: bf16[3,112,64], index: 0, kind: input, shape index: {}]
  %s1 = inlined_call_operand.vmem [shape: f32[1,4,112,112], index: 1, kind: input, shape index: {}]
  %s2 = inlined_call_operand.vmem [shape: bf16[112,64], index: 2, kind: output, shape index: {}]
  %s3 = sld [smem:[#allocation0]]
  $region18: #{swin_block_1d_forward.5} parent=0
    _
  %s5 = ssub.s32 1, %s3
  %s6 = scalar_select 0, %s5, %s3
  // Predicated region
  $region2: #{swin_block_1d_forward.5} parent=0 // pred_check
    _
  $region3: #{swin_block_1d_forward.5} parent=0 // pred_check_branch
    %8 = sbr.rel (0) target = $region5
  $region4: #{swin_block_1d_forward.5} parent=0 // pred_region
    _
  $region5: #{swin_block_1d_forward.5} parent=0 // pred_fallthru
    _
  // Predicated region
  $region6: #{swin_block_1d_forward.5} parent=0 // pred_check
    _
  $region7: #{swin_block_1d_forward.5} parent=0 // pred_check_branch
    %10 = sbr.rel (0) target = $region9
  $region8: #{swin_block_1d_forward.5} parent=0 // pred_region
    _
  $region9: #{swin_block_1d_forward.5} parent=0 // pred_fallthru
    _
  %v12 = vld [vmem:[%s0] sm:$0xf]
  %v13 = vld [vmem:[%s0 + $0x4] sm:$0xf]
  %v14 = vld [vmem:[%s0 + $0x8] sm:$0xf]
  %v15 = vld [vmem:[%s0 + $0xc] sm:$0xf]
  %v16 = vld [vmem:[%s0 + $0x10] sm:$0xf]
  %v17 = vld [vmem:[%s0 + $0x14] sm:$0xf]
  %v18 = vld [vmem:[%s0 + $0x18] sm:$0xf]
  %v19 = vld [vmem:[%s0 + $0x1c] sm:$0xf]
  %v20 = vld [vmem:[%s0 + $0x20] sm:$0xf]
  %v21 = vld [vmem:[%s0 + $0x24] sm:$0xf]
  %v22 = vld [vmem:[%s0 + $0x28] sm:$0xf]
  %v23 = vld [vmem:[%s0 + $0x2c] sm:$0xf]
  %v24 = vld [vmem:[%s0 + $0x30] sm:$0xf]
  %v25 = vld [vmem:[%s0 + $0x34] sm:$0xf]
  %s26 = scalar_lea.vmem %s0, 56
  %v27 = vld [vmem:[%s26] sm:$0xf]
  %v28 = vld [vmem:[%s26 + $0x4] sm:$0xf]
  %v29 = vld [vmem:[%s26 + $0x8] sm:$0xf]
  %v30 = vld [vmem:[%s26 + $0xc] sm:$0xf]
  %v31 = vld [vmem:[%s26 + $0x10] sm:$0xf]
  %v32 = vld [vmem:[%s26 + $0x14] sm:$0xf]
  %v33 = vld [vmem:[%s26 + $0x18] sm:$0xf]
  %v34 = vld [vmem:[%s26 + $0x1c] sm:$0xf]
  %v35 = vld [vmem:[%s26 + $0x20] sm:$0xf]
  %v36 = vld [vmem:[%s26 + $0x24] sm:$0xf]
  %v37 = vld [vmem:[%s26 + $0x28] sm:$0xf]
  %v38 = vld [vmem:[%s26 + $0x2c] sm:$0xf]
  %v39 = vld [vmem:[%s26 + $0x30] sm:$0xf]
  %v40 = vld [vmem:[%s26 + $0x34] sm:$0xf]
  %s41 = scalar_lea.vmem %s0, 112
  %v42 = vld [vmem:[%s41] sm:$0xf]
  %v43 = vld [vmem:[%s41 + $0x4] sm:$0xf]
  %v44 = vld [vmem:[%s41 + $0x8] sm:$0xf]
  %v45 = vld [vmem:[%s41 + $0xc] sm:$0xf]
  %v46 = vld [vmem:[%s41 + $0x10] sm:$0xf]
  %v47 = vld [vmem:[%s41 + $0x14] sm:$0xf]
  %v48 = vld [vmem:[%s41 + $0x18] sm:$0xf]
  %v49 = vld [vmem:[%s41 + $0x1c] sm:$0xf]
  %v50 = vld [vmem:[%s41 + $0x20] sm:$0xf]
  %v51 = vld [vmem:[%s41 + $0x24] sm:$0xf]
  %v52 = vld [vmem:[%s41 + $0x28] sm:$0xf]
  %v53 = vld [vmem:[%s41 + $0x2c] sm:$0xf]
  %v54 = vld [vmem:[%s41 + $0x30] sm:$0xf]
  %v55 = vld [vmem:[%s41 + $0x34] sm:$0xf]
  %v70 = vunpack.c.l.b16 %v12
  %v71 = vunpack.c.l.b16 %v13
  %v72 = vunpack.c.l.b16 %v14
  %v73 = vunpack.c.l.b16 %v15
  %v74 = vunpack.c.l.b16 %v16
  %v75 = vunpack.c.l.b16 %v17
  %v76 = vunpack.c.l.b16 %v18
  %v77 = vunpack.c.l.b16 %v19
  %v78 = vunpack.c.l.b16 %v20
  %v79 = vunpack.c.l.b16 %v21
  %v80 = vunpack.c.l.b16 %v22
  %v81 = vunpack.c.l.b16 %v23
  %v82 = vunpack.c.l.b16 %v24
  %v83 = vunpack.c.l.b16 %v25
  %v84 = vpack.c.b16 %v71, %v70
  %v85 = vpack.c.b16 %v73, %v72
  %v86 = vpack.c.b16 %v75, %v74
  %v87 = vpack.c.b16 %v77, %v76
  %v88 = vpack.c.b16 %v79, %v78
  %v89 = vpack.c.b16 %v81, %v80
  %v90 = vpack.c.b16 %v83, %v82
  %v105 = vunpack.c.l.b16 %v27
  %v106 = vunpack.c.l.b16 %v28
  %v107 = vunpack.c.l.b16 %v29
  %v108 = vunpack.c.l.b16 %v30
  %v109 = vunpack.c.l.b16 %v31
  %v110 = vunpack.c.l.b16 %v32
  %v111 = vunpack.c.l.b16 %v33
  %v112 = vunpack.c.l.b16 %v34
  %v113 = vunpack.c.l.b16 %v35
  %v114 = vunpack.c.l.b16 %v36
  %v115 = vunpack.c.l.b16 %v37
  %v116 = vunpack.c.l.b16 %v38
  %v117 = vunpack.c.l.b16 %v39
  %v118 = vunpack.c.l.b16 %v40
  %v119 = vpack.c.b16 %v106, %v105
  %v120 = vpack.c.b16 %v108, %v107
  %v121 = vpack.c.b16 %v110, %v109
  %v122 = vpack.c.b16 %v112, %v111
  %v123 = vpack.c.b16 %v114, %v113
  %v124 = vpack.c.b16 %v116, %v115
  %v125 = vpack.c.b16 %v118, %v117
  %vm126 = vcmask 130048
  %v128 = vsel %vm126, %v84, 0
  %v131 = vsel %vm126, %v85, 0
  %v134 = vsel %vm126, %v86, 0
  %v137 = vsel %vm126, %v87, 0
  %v140 = vsel %vm126, %v88, 0
  %v143 = vsel %vm126, %v89, 0
  %v146 = vsel %vm126, %v90, 0
  %v149 = vsel %vm126, %v119, 0
  %v152 = vsel %vm126, %v120, 0
  %v155 = vsel %vm126, %v121, 0
  %v158 = vsel %vm126, %v122, 0
  %v161 = vsel %vm126, %v123, 0
  %v164 = vsel %vm126, %v124, 0
  %v167 = vsel %vm126, %v125, 0
  %169 = vmatprep.subr.bf16.mxu0 0
  %170 = vmatpush1.bf16.xpose.msra.mxu0 %v149
  %171 = vmatprep.subr.bf16.mxu0 0
  %172 = vmatpush1.bf16.xpose.msra.mxu0 %v152
  %173 = vmatprep.subr.bf16.mxu0 0
  %174 = vmatpush1.bf16.xpose.msra.mxu0 %v155
  %175 = vmatprep.subr.bf16.mxu0 0
  %176 = vmatpush1.bf16.xpose.msra.mxu0 %v158
  %177 = vmatprep.subr.bf16.mxu0 0
  %178 = vmatpush1.bf16.xpose.msra.mxu0 %v161
  %179 = vmatprep.subr.bf16.mxu0 0
  %180 = vmatpush1.bf16.xpose.msra.mxu0 %v164
  %181 = vmatprep.subr.bf16.mxu0 0
  %182 = vmatpush1.bf16.xpose.msra.mxu0 %v167
  %183 = vmatprep.subr.bf16.mxu0 0
  %184 = vmatpush1.bf16.xpose.msra.mxu0 0
  %185 = vmatprep.subr.bf16.mxu0 0
  %186 = vmatpush1.bf16.xpose.msra.mxu0 0
  %187 = vmatprep.subr.bf16.mxu0 0
  %188 = vmatpush1.bf16.xpose.msra.mxu0 0
  %189 = vmatprep.subr.bf16.mxu0 0
  %190 = vmatpush1.bf16.xpose.msra.mxu0 0
  %191 = vmatprep.subr.bf16.mxu0 0
  %192 = vmatpush1.bf16.xpose.msra.mxu0 0
  %193 = vmatprep.subr.bf16.mxu0 0
  %194 = vmatpush1.bf16.xpose.msra.mxu0 0
  %195 = vmatprep.subr.bf16.mxu0 0
  %196 = vmatpush1.bf16.xpose.msra.mxu0 0
  %197 = vmatprep.subr.bf16.mxu0 0
  %198 = vmatpush1.bf16.xpose.msra.mxu0 0
  %199 = vmatprep.subr.bf16.mxu0 0
  %200 = vmatpush1.bf16.xpose.msra.mxu0 0
  %201 = vmatprep.mubr.bf16.mxu0 0
  %202 = vmatmul.mubr.bf16.gmra.mrb[0].mxu0 %v128
  %v203 = vpop.f32.mrb[0].mxu0
  %v204 = vadd.f32 0.0, %v203
  %v205 = vpop.f32.mrb[0].mxu0
  %v206 = vpop.f32.mrb[0].mxu0
  %v207 = vadd.f32 0.0, %v206
  %v208 = vpop.f32.mrb[0].mxu0
  %209 = vmatprep.mubr.bf16.mxu0 0
  %210 = vmatmul.mubr.bf16.gmra.mrb[0].mxu0 %v131
  %v211 = vpop.f32.mrb[0].mxu0
  %v212 = vadd.f32 0.0, %v211
  %v213 = vpop.f32.mrb[0].mxu0
  %v214 = vpop.f32.mrb[0].mxu0
  %v215 = vadd.f32 0.0, %v214
  %v216 = vpop.f32.mrb[0].mxu0
  %217 = vmatprep.mubr.bf16.mxu0 0
  %218 = vmatmul.mubr.bf16.gmra.mrb[0].mxu0 %v134
  %v219 = vpop.f32.mrb[0].mxu0
  %v220 = vadd.f32 0.0, %v219
  %v221 = vpop.f32.mrb[0].mxu0
  %v222 = vpop.f32.mrb[0].mxu0
  %v223 = vadd.f32 0.0, %v222
  %v224 = vpop.f32.mrb[0].mxu0
  %225 = vmatprep.mubr.bf16.mxu0 0
  %226 = vmatmul.mubr.bf16.gmra.mrb[0].mxu0 %v137
  %v227 = vpop.f32.mrb[0].mxu0
  %v228 = vadd.f32 0.0, %v227
  %v229 = vpop.f32.mrb[0].mxu0
  %v230 = vpop.f32.mrb[0].mxu0
  %v231 = vadd.f32 0.0, %v230
  %v232 = vpop.f32.mrb[0].mxu0
  %233 = vmatprep.mubr.bf16.mxu0 0
  %234 = vmatmul.mubr.bf16.gmra.mrb[0].mxu0 %v140
  %v235 = vpop.f32.mrb[0].mxu0
  %v236 = vadd.f32 0.0, %v235
  %v237 = vpop.f32.mrb[0].mxu0
  %v238 = vpop.f32.mrb[0].mxu0
  %v239 = vadd.f32 0.0, %v238
  %v240 = vpop.f32.mrb[0].mxu0
  %241 = vmatprep.mubr.bf16.mxu0 0
  %242 = vmatmul.mubr.bf16.gmra.mrb[0].mxu0 %v143
  %v243 = vpop.f32.mrb[0].mxu0
  %v244 = vadd.f32 0.0, %v243
  %v245 = vpop.f32.mrb[0].mxu0
  %v246 = vpop.f32.mrb[0].mxu0
  %v247 = vadd.f32 0.0, %v246
  %v248 = vpop.f32.mrb[0].mxu0
  %249 = vmatprep.mubr.bf16.mxu0 0
  %250 = vmatmul.mubr.bf16.gmra.mrb[0].mxu0 %v146
  %v251 = vpop.f32.mrb[0].mxu0
  %v252 = vadd.f32 0.0, %v251
  %v253 = vpop.f32.mrb[0].mxu0
  %v254 = vpop.f32.mrb[0].mxu0
  %v255 = vadd.f32 0.0, %v254
  %v256 = vpop.f32.mrb[0].mxu0
  %257 = vdwg.mxu0
  %v258 = vmul.f32 %v204, 0.25
  %v259 = vmul.f32 %v207, 0.25
  %v260 = vmul.f32 %v212, 0.25
  %v261 = vmul.f32 %v215, 0.25
  %v262 = vmul.f32 %v220, 0.25
  %v263 = vmul.f32 %v223, 0.25
  %v264 = vmul.f32 %v228, 0.25
  %v265 = vmul.f32 %v231, 0.25
  %v266 = vmul.f32 %v236, 0.25
  %v267 = vmul.f32 %v239, 0.25
  %v268 = vmul.f32 %v244, 0.25
  %v269 = vmul.f32 %v247, 0.25
  %v270 = vmul.f32 %v252, 0.25
  %v271 = vmul.f32 %v255, 0.25
  %v272 = vld [vmem:[%s1] sm:$0xff]
  %v273 = vld [vmem:[%s1 + $0x8] sm:$0xff]
  %v274 = vld [vmem:[%s1 + $0x10] sm:$0xff]
  %v275 = vld [vmem:[%s1 + $0x18] sm:$0xff]
  %v276 = vld [vmem:[%s1 + $0x20] sm:$0xff]
  %v277 = vld [vmem:[%s1 + $0x28] sm:$0xff]
  %v278 = vld [vmem:[%s1 + $0x30] sm:$0xff]
  %v279 = vld [vmem:[%s1 + $0x38] sm:$0xff]
  %v280 = vld [vmem:[%s1 + $0x40] sm:$0xff]
  %v281 = vld [vmem:[%s1 + $0x48] sm:$0xff]
  %v282 = vld [vmem:[%s1 + $0x50] sm:$0xff]
  %v283 = vld [vmem:[%s1 + $0x58] sm:$0xff]
  %v284 = vld [vmem:[%s1 + $0x60] sm:$0xff]
  %v285 = vld [vmem:[%s1 + $0x68] sm:$0xff]
  %v286 = vadd.f32 %v258, %v272
  %v287 = vadd.f32 %v259, %v273
  %v288 = vadd.f32 %v260, %v274
  %v289 = vadd.f32 %v261, %v275
  %v290 = vadd.f32 %v262, %v276
  %v291 = vadd.f32 %v263, %v277
  %v292 = vadd.f32 %v264, %v278
  %v293 = vadd.f32 %v265, %v279
  %v294 = vadd.f32 %v266, %v280
  %v295 = vadd.f32 %v267, %v281
  %v296 = vadd.f32 %v268, %v282
  %v297 = vadd.f32 %v269, %v283
  %v298 = vadd.f32 %v270, %v284
  %v299 = vadd.f32 %v271, %v285
  %vm300 = vcmask 916480
  %v301 = vsel %vm300, %v286, -inf
  %302 = vmax.xlane.f32.xlu0 %v301
  %v303 = vpop.xlane.xlu0 %302
  %v304 = vsel %vm300, %v287, -inf
  %305 = vmax.xlane.f32.xlu0 %v304
  %v306 = vpop.xlane.xlu0 %305
  %v307 = vsel %vm300, %v288, -inf
  %308 = vmax.xlane.f32.xlu0 %v307
  %v309 = vpop.xlane.xlu0 %308
  %v310 = vsel %vm300, %v289, -inf
  %311 = vmax.xlane.f32.xlu0 %v310
  %v312 = vpop.xlane.xlu0 %311
  %v313 = vsel %vm300, %v290, -inf
  %314 = vmax.xlane.f32.xlu0 %v313
  %v315 = vpop.xlane.xlu0 %314
  %v316 = vsel %vm300, %v291, -inf
  %317 = vmax.xlane.f32.xlu0 %v316
  %v318 = vpop.xlane.xlu0 %317
  %v319 = vsel %vm300, %v292, -inf
  %320 = vmax.xlane.f32.xlu0 %v319
  %v321 = vpop.xlane.xlu0 %320
  %v322 = vsel %vm300, %v293, -inf
  %323 = vmax.xlane.f32.xlu0 %v322
  %v324 = vpop.xlane.xlu0 %323
  %v325 = vsel %vm300, %v294, -inf
  %326 = vmax.xlane.f32.xlu0 %v325
  %v327 = vpop.xlane.xlu0 %326
  %v328 = vsel %vm300, %v295, -inf
  %329 = vmax.xlane.f32.xlu0 %v328
  %v330 = vpop.xlane.xlu0 %329
  %v331 = vsel %vm300, %v296, -inf
  %332 = vmax.xlane.f32.xlu0 %v331
  %v333 = vpop.xlane.xlu0 %332
  %v334 = vsel %vm300, %v297, -inf
  %335 = vmax.xlane.f32.xlu0 %v334
  %v336 = vpop.xlane.xlu0 %335
  %v337 = vsel %vm300, %v298, -inf
  %338 = vmax.xlane.f32.xlu0 %v337
  %v339 = vpop.xlane.xlu0 %338
  %v340 = vsel %vm300, %v299, -inf
  %341 = vmax.xlane.f32.xlu0 %v340
  %v342 = vpop.xlane.xlu0 %341
  %v343 = vsub.f32 %v286, %v303
  %v344 = vsub.f32 %v287, %v306
  %v345 = vsub.f32 %v288, %v309
  %v346 = vsub.f32 %v289, %v312
  %v347 = vsub.f32 %v290, %v315
  %v348 = vsub.f32 %v291, %v318
  %v349 = vsub.f32 %v292, %v321
  %v350 = vsub.f32 %v293, %v324
  %v351 = vsub.f32 %v294, %v327
  %v352 = vsub.f32 %v295, %v330
  %v353 = vsub.f32 %v296, %v333
  %v354 = vsub.f32 %v297, %v336
  %v355 = vsub.f32 %v298, %v339
  %v356 = vsub.f32 %v299, %v342
  %v357 = vmul.f32 %v343, 1.442695
  %v358 = vpow.pop %v357
  %v359 = vmul.f32 %v344, 1.442695
  %v360 = vpow.pop %v359
  %v361 = vmul.f32 %v345, 1.442695
  %v362 = vpow.pop %v361
  %v363 = vmul.f32 %v346, 1.442695
  %v364 = vpow.pop %v363
  %v365 = vmul.f32 %v347, 1.442695
  %v366 = vpow.pop %v365
  %v367 = vmul.f32 %v348, 1.442695
  %v368 = vpow.pop %v367
  %v369 = vmul.f32 %v349, 1.442695
  %v370 = vpow.pop %v369
  %v371 = vmul.f32 %v350, 1.442695
  %v372 = vpow.pop %v371
  %v373 = vmul.f32 %v351, 1.442695
  %v374 = vpow.pop %v373
  %v375 = vmul.f32 %v352, 1.442695
  %v376 = vpow.pop %v375
  %v377 = vmul.f32 %v353, 1.442695
  %v378 = vpow.pop %v377
  %v379 = vmul.f32 %v354, 1.442695
  %v380 = vpow.pop %v379
  %v381 = vmul.f32 %v355, 1.442695
  %v382 = vpow.pop %v381
  %v383 = vmul.f32 %v356, 1.442695
  %v384 = vpow.pop %v383
  %v385 = vsel %vm300, %v358, 0.0
  %386 = vadd.xlane.f32.xlu0 %v385
  %v387 = vpop.xlane.xlu0 %386
  %v388 = vsel %vm300, %v360, 0.0
  %389 = vadd.xlane.f32.xlu0 %v388
  %v390 = vpop.xlane.xlu0 %389
  %v391 = vsel %vm300, %v362, 0.0
  %392 = vadd.xlane.f32.xlu0 %v391
  %v393 = vpop.xlane.xlu0 %392
  %v394 = vsel %vm300, %v364, 0.0
  %395 = vadd.xlane.f32.xlu0 %v394
  %v396 = vpop.xlane.xlu0 %395
  %v397 = vsel %vm300, %v366, 0.0
  %398 = vadd.xlane.f32.xlu0 %v397
  %v399 = vpop.xlane.xlu0 %398
  %v400 = vsel %vm300, %v368, 0.0
  %401 = vadd.xlane.f32.xlu0 %v400
  %v402 = vpop.xlane.xlu0 %401
  %v403 = vsel %vm300, %v370, 0.0
  %404 = vadd.xlane.f32.xlu0 %v403
  %v405 = vpop.xlane.xlu0 %404
  %v406 = vsel %vm300, %v372, 0.0
  %407 = vadd.xlane.f32.xlu0 %v406
  %v408 = vpop.xlane.xlu0 %407
  %v409 = vsel %vm300, %v374, 0.0
  %410 = vadd.xlane.f32.xlu0 %v409
  %v411 = vpop.xlane.xlu0 %410
  %v412 = vsel %vm300, %v376, 0.0
  %413 = vadd.xlane.f32.xlu0 %v412
  %v414 = vpop.xlane.xlu0 %413
  %v415 = vsel %vm300, %v378, 0.0
  %416 = vadd.xlane.f32.xlu0 %v415
  %v417 = vpop.xlane.xlu0 %416
  %v418 = vsel %vm300, %v380, 0.0
  %419 = vadd.xlane.f32.xlu0 %v418
  %v420 = vpop.xlane.xlu0 %419
  %v421 = vsel %vm300, %v382, 0.0
  %422 = vadd.xlane.f32.xlu0 %v421
  %v423 = vpop.xlane.xlu0 %422
  %v424 = vsel %vm300, %v384, 0.0
  %425 = vadd.xlane.f32.xlu0 %v424
  %v426 = vpop.xlane.xlu0 %425
  %v427 = vrcp.pop %v387
  %v428 = vmul.f32 %v358, %v427
  %v429 = vrcp.pop %v390
  %v430 = vmul.f32 %v360, %v429
  %v431 = vrcp.pop %v393
  %v432 = vmul.f32 %v362, %v431
  %v433 = vrcp.pop %v396
  %v434 = vmul.f32 %v364, %v433
  %v435 = vrcp.pop %v399
  %v436 = vmul.f32 %v366, %v435
  %v437 = vrcp.pop %v402
  %v438 = vmul.f32 %v368, %v437
  %v439 = vrcp.pop %v405
  %v440 = vmul.f32 %v370, %v439
  %v441 = vrcp.pop %v408
  %v442 = vmul.f32 %v372, %v441
  %v443 = vrcp.pop %v411
  %v444 = vmul.f32 %v374, %v443
  %v445 = vrcp.pop %v414
  %v446 = vmul.f32 %v376, %v445
  %v447 = vrcp.pop %v417
  %v448 = vmul.f32 %v378, %v447
  %v449 = vrcp.pop %v420
  %v450 = vmul.f32 %v380, %v449
  %v451 = vrcp.pop %v423
  %v452 = vmul.f32 %v382, %v451
  %v453 = vrcp.pop %v426
  %v454 = vmul.f32 %v384, %v453
  %v455 = vpack.c.bf16 %v430, %v428
  %v456 = vpack.c.bf16 %v434, %v432
  %v457 = vpack.c.bf16 %v438, %v436
  %v458 = vpack.c.bf16 %v442, %v440
  %v459 = vpack.c.bf16 %v446, %v444
  %v460 = vpack.c.bf16 %v450, %v448
  %v461 = vpack.c.bf16 %v454, %v452
  %v476 = vunpack.c.l.b16 %v42
  %v477 = vunpack.c.l.b16 %v43
  %v478 = vunpack.c.l.b16 %v44
  %v479 = vunpack.c.l.b16 %v45
  %v480 = vunpack.c.l.b16 %v46
  %v481 = vunpack.c.l.b16 %v47
  %v482 = vunpack.c.l.b16 %v48
  %v483 = vunpack.c.l.b16 %v49
  %v484 = vunpack.c.l.b16 %v50
  %v485 = vunpack.c.l.b16 %v51
  %v486 = vunpack.c.l.b16 %v52
  %v487 = vunpack.c.l.b16 %v53
  %v488 = vunpack.c.l.b16 %v54
  %v489 = vunpack.c.l.b16 %v55
  %v490 = vpack.c.b16 %v477, %v476
  %v491 = vpack.c.b16 %v479, %v478
  %v492 = vpack.c.b16 %v481, %v480
  %v493 = vpack.c.b16 %v483, %v482
  %v494 = vpack.c.b16 %v485, %v484
  %v495 = vpack.c.b16 %v487, %v486
  %v496 = vpack.c.b16 %v489, %v488
  %v505 = vsel %vm300, %v455, 0
  %v508 = vsel %vm300, %v456, 0
  %v511 = vsel %vm300, %v457, 0
  %v514 = vsel %vm300, %v458, 0
  %v517 = vsel %vm300, %v459, 0
  %v520 = vsel %vm300, %v460, 0
  %v523 = vsel %vm300, %v461, 0
  %525 = vmatprep.subr.bf16.mxu0 0
  %526 = vmatpush1.bf16.msra.mxu0 %v490
  %527 = vmatprep.subr.bf16.mxu0 0
  %528 = vmatpush1.bf16.msra.mxu0 %v491
  %529 = vmatprep.subr.bf16.mxu0 0
  %530 = vmatpush1.bf16.msra.mxu0 %v492
  %531 = vmatprep.subr.bf16.mxu0 0
  %532 = vmatpush1.bf16.msra.mxu0 %v493
  %533 = vmatprep.subr.bf16.mxu0 0
  %534 = vmatpush1.bf16.msra.mxu0 %v494
  %535 = vmatprep.subr.bf16.mxu0 0
  %536 = vmatpush1.bf16.msra.mxu0 %v495
  %537 = vmatprep.subr.bf16.mxu0 0
  %538 = vmatpush1.bf16.msra.mxu0 %v496
  %539 = vmatprep.subr.bf16.mxu0 0
  %540 = vmatpush1.bf16.msra.mxu0 0
  %541 = vmatprep.subr.bf16.mxu0 0
  %542 = vmatpush1.bf16.msra.mxu0 0
  %543 = vmatprep.subr.bf16.mxu0 0
  %544 = vmatpush1.bf16.msra.mxu0 0
  %545 = vmatprep.subr.bf16.mxu0 0
  %546 = vmatpush1.bf16.msra.mxu0 0
  %547 = vmatprep.subr.bf16.mxu0 0
  %548 = vmatpush1.bf16.msra.mxu0 0
  %549 = vmatprep.subr.bf16.mxu0 0
  %550 = vmatpush1.bf16.msra.mxu0 0
  %551 = vmatprep.subr.bf16.mxu0 0
  %552 = vmatpush1.bf16.msra.mxu0 0
  %553 = vmatprep.subr.bf16.mxu0 0
  %554 = vmatpush1.bf16.msra.mxu0 0
  %555 = vmatprep.subr.bf16.mxu0 0
  %556 = vmatpush1.bf16.msra.mxu0 0
  %557 = vmatprep.mubr.bf16.mxu0 0
  %558 = vmatmul.mubr.bf16.gmra.mrb[0].mxu0 %v505
  %v559 = vpop.f32.mrb[0].mxu0
  %v560 = vadd.f32 0.0, %v559
  %v561 = vpop.f32.mrb[0].mxu0
  %v562 = vpop.f32.mrb[0].mxu0
  %v563 = vadd.f32 0.0, %v562
  %v564 = vpop.f32.mrb[0].mxu0
  %565 = vmatprep.mubr.bf16.mxu0 0
  %566 = vmatmul.mubr.bf16.gmra.mrb[0].mxu0 %v508
  %v567 = vpop.f32.mrb[0].mxu0
  %v568 = vadd.f32 0.0, %v567
  %v569 = vpop.f32.mrb[0].mxu0
  %v570 = vpop.f32.mrb[0].mxu0
  %v571 = vadd.f32 0.0, %v570
  %v572 = vpop.f32.mrb[0].mxu0
  %573 = vmatprep.mubr.bf16.mxu0 0
  %574 = vmatmul.mubr.bf16.gmra.mrb[0].mxu0 %v511
  %v575 = vpop.f32.mrb[0].mxu0
  %v576 = vadd.f32 0.0, %v575
  %v577 = vpop.f32.mrb[0].mxu0
  %v578 = vpop.f32.mrb[0].mxu0
  %v579 = vadd.f32 0.0, %v578
  %v580 = vpop.f32.mrb[0].mxu0
  %581 = vmatprep.mubr.bf16.mxu0 0
  %582 = vmatmul.mubr.bf16.gmra.mrb[0].mxu0 %v514
  %v583 = vpop.f32.mrb[0].mxu0
  %v584 = vadd.f32 0.0, %v583
  %v585 = vpop.f32.mrb[0].mxu0
  %v586 = vpop.f32.mrb[0].mxu0
  %v587 = vadd.f32 0.0, %v586
  %v588 = vpop.f32.mrb[0].mxu0
  %589 = vmatprep.mubr.bf16.mxu0 0
  %590 = vmatmul.mubr.bf16.gmra.mrb[0].mxu0 %v517
  %v591 = vpop.f32.mrb[0].mxu0
  %v592 = vadd.f32 0.0, %v591
  %v593 = vpop.f32.mrb[0].mxu0
  %v594 = vpop.f32.mrb[0].mxu0
  %v595 = vadd.f32 0.0, %v594
  %v596 = vpop.f32.mrb[0].mxu0
  %597 = vmatprep.mubr.bf16.mxu0 0
  %598 = vmatmul.mubr.bf16.gmra.mrb[0].mxu0 %v520
  %v599 = vpop.f32.mrb[0].mxu0
  %v600 = vadd.f32 0.0, %v599
  %v601 = vpop.f32.mrb[0].mxu0
  %v602 = vpop.f32.mrb[0].mxu0
  %v603 = vadd.f32 0.0, %v602
  %v604 = vpop.f32.mrb[0].mxu0
  %605 = vmatprep.mubr.bf16.mxu0 0
  %606 = vmatmul.mubr.bf16.gmra.mrb[0].mxu0 %v523
  %v607 = vpop.f32.mrb[0].mxu0
  %v608 = vadd.f32 0.0, %v607
  %v609 = vpop.f32.mrb[0].mxu0
  %v610 = vpop.f32.mrb[0].mxu0
  %v611 = vadd.f32 0.0, %v610
  %v612 = vpop.f32.mrb[0].mxu0
  %613 = vdwg.mxu0
  %v614 = vpack.c.bf16 %v563, %v560
  %v615 = vpack.c.bf16 %v571, %v568
  %v616 = vpack.c.bf16 %v579, %v576
  %v617 = vpack.c.bf16 %v587, %v584
  %v618 = vpack.c.bf16 %v595, %v592
  %v619 = vpack.c.bf16 %v603, %v600
  %v620 = vpack.c.bf16 %v611, %v608
  %v628 = vunpack.c.l.b16 %v614
  %v629 = vunpack.c.h.b16 %v614
  %v630 = vunpack.c.l.b16 %v615
  %v631 = vunpack.c.h.b16 %v615
  %v632 = vunpack.c.l.b16 %v616
  %v633 = vunpack.c.h.b16 %v616
  %v634 = vunpack.c.l.b16 %v617
  %v635 = vunpack.c.h.b16 %v617
  %v636 = vunpack.c.l.b16 %v618
  %v637 = vunpack.c.h.b16 %v618
  %v638 = vunpack.c.l.b16 %v619
  %v639 = vunpack.c.h.b16 %v619
  %v640 = vunpack.c.l.b16 %v620
  %v641 = vunpack.c.h.b16 %v620
  %v642 = vpack.c.b16 %v628, %v628
  %v643 = vpack.c.b16 %v629, %v629
  %v644 = vpack.c.b16 %v630, %v630
  %v645 = vpack.c.b16 %v631, %v631
  %v646 = vpack.c.b16 %v632, %v632
  %v647 = vpack.c.b16 %v633, %v633
  %v648 = vpack.c.b16 %v634, %v634
  %v649 = vpack.c.b16 %v635, %v635
  %v650 = vpack.c.b16 %v636, %v636
  %v651 = vpack.c.b16 %v637, %v637
  %v652 = vpack.c.b16 %v638, %v638
  %v653 = vpack.c.b16 %v639, %v639
  %v654 = vpack.c.b16 %v640, %v640
  %v655 = vpack.c.b16 %v641, %v641
  %vm670 = vcmask 125952
  %671 = vst.msk [vmem:[%s2] sm:$0xf] %vm670, %v642
  %672 = vst.msk [vmem:[%s2 + $0x4] sm:$0xf] %vm670, %v643
  %673 = vst.msk [vmem:[%s2 + $0x8] sm:$0xf] %vm670, %v644
  %674 = vst.msk [vmem:[%s2 + $0xc] sm:$0xf] %vm670, %v645
  %675 = vst.msk [vmem:[%s2 + $0x10] sm:$0xf] %vm670, %v646
  %676 = vst.msk [vmem:[%s2 + $0x14] sm:$0xf] %vm670, %v647
  %677 = vst.msk [vmem:[%s2 + $0x18] sm:$0xf] %vm670, %v648
  %678 = vst.msk [vmem:[%s2 + $0x1c] sm:$0xf] %vm670, %v649
  %679 = vst.msk [vmem:[%s2 + $0x20] sm:$0xf] %vm670, %v650
  %680 = vst.msk [vmem:[%s2 + $0x24] sm:$0xf] %vm670, %v651
  %681 = vst.msk [vmem:[%s2 + $0x28] sm:$0xf] %vm670, %v652
  %682 = vst.msk [vmem:[%s2 + $0x2c] sm:$0xf] %vm670, %v653
  %683 = vst.msk [vmem:[%s2 + $0x30] sm:$0xf] %vm670, %v654
  %684 = vst.msk [vmem:[%s2 + $0x34] sm:$0xf] %vm670, %v655
  %685 = vrot.lane.b32.xlu0 %v84, 112
  %v686 = vpop.permute.xlu0 %685
  %687 = vrot.lane.b32.xlu0 %v85, 112
  %v688 = vpop.permute.xlu0 %687
  %689 = vrot.lane.b32.xlu0 %v86, 112
  %v690 = vpop.permute.xlu0 %689
  %691 = vrot.lane.b32.xlu0 %v87, 112
  %v692 = vpop.permute.xlu0 %691
  %693 = vrot.lane.b32.xlu0 %v88, 112
  %v694 = vpop.permute.xlu0 %693
  %695 = vrot.lane.b32.xlu0 %v89, 112
  %v696 = vpop.permute.xlu0 %695
  %697 = vrot.lane.b32.xlu0 %v90, 112
  %v698 = vpop.permute.xlu0 %697
  %699 = vrot.lane.b32.xlu0 %v119, 112
  %v700 = vpop.permute.xlu0 %699
  %701 = vrot.lane.b32.xlu0 %v120, 112
  %v702 = vpop.permute.xlu0 %701
  %703 = vrot.lane.b32.xlu0 %v121, 112
  %v704 = vpop.permute.xlu0 %703
  %705 = vrot.lane.b32.xlu0 %v122, 112
  %v706 = vpop.permute.xlu0 %705
  %707 = vrot.lane.b32.xlu0 %v123, 112
  %v708 = vpop.permute.xlu0 %707
  %709 = vrot.lane.b32.xlu0 %v124, 112
  %v710 = vpop.permute.xlu0 %709
  %711 = vrot.lane.b32.xlu0 %v125, 112
  %v712 = vpop.permute.xlu0 %711
  %v714 = vsel %vm126, %v686, 0
  %v717 = vsel %vm126, %v688, 0
  %v720 = vsel %vm126, %v690, 0
  %v723 = vsel %vm126, %v692, 0
  %v726 = vsel %vm126, %v694, 0
  %v729 = vsel %vm126, %v696, 0
  %v732 = vsel %vm126, %v698, 0
  %v735 = vsel %vm126, %v700, 0
  %v738 = vsel %vm126, %v702, 0
  %v741 = vsel %vm126, %v704, 0
  %v744 = vsel %vm126, %v706, 0
  %v747 = vsel %vm126, %v708, 0
  %v750 = vsel %vm126, %v710, 0
  %v753 = vsel %vm126, %v712, 0
  %755 = vmatprep.subr.bf16.mxu0 0
  %756 = vmatpush1.bf16.xpose.msra.mxu0 %v735
  %757 = vmatprep.subr.bf16.mxu0 0
  %758 = vmatpush1.bf16.xpose.msra.mxu0 %v738
  %759 = vmatprep.subr.bf16.mxu0 0
  %760 = vmatpush1.bf16.xpose.msra.mxu0 %v741
  %761 = vmatprep.subr.bf16.mxu0 0
  %762 = vmatpush1.bf16.xpose.msra.mxu0 %v744
  %763 = vmatprep.subr.bf16.mxu0 0
  %764 = vmatpush1.bf16.xpose.msra.mxu0 %v747
  %765 = vmatprep.subr.bf16.mxu0 0
  %766 = vmatpush1.bf16.xpose.msra.mxu0 %v750
  %767 = vmatprep.subr.bf16.mxu0 0
  %768 = vmatpush1.bf16.xpose.msra.mxu0 %v753
  %769 = vmatprep.subr.bf16.mxu0 0
  %770 = vmatpush1.bf16.xpose.msra.mxu0 0
  %771 = vmatprep.subr.bf16.mxu0 0
  %772 = vmatpush1.bf16.xpose.msra.mxu0 0
  %773 = vmatprep.subr.bf16.mxu0 0
  %774 = vmatpush1.bf16.xpose.msra.mxu0 0
  %775 = vmatprep.subr.bf16.mxu0 0
  %776 = vmatpush1.bf16.xpose.msra.mxu0 0
  %777 = vmatprep.subr.bf16.mxu0 0
  %778 = vmatpush1.bf16.xpose.msra.mxu0 0
  %779 = vmatprep.subr.bf16.mxu0 0
  %780 = vmatpush1.bf16.xpose.msra.mxu0 0
  %781 = vmatprep.subr.bf16.mxu0 0
  %782 = vmatpush1.bf16.xpose.msra.mxu0 0
  %783 = vmatprep.subr.bf16.mxu0 0
  %784 = vmatpush1.bf16.xpose.msra.mxu0 0
  %785 = vmatprep.subr.bf16.mxu0 0
  %786 = vmatpush1.bf16.xpose.msra.mxu0 0
  %787 = vmatprep.mubr.bf16.mxu0 0
  %788 = vmatmul.mubr.bf16.gmra.mrb[0].mxu0 %v714
  %v789 = vpop.f32.mrb[0].mxu0
  %v790 = vadd.f32 0.0, %v789
  %v791 = vpop.f32.mrb[0].mxu0
  %v792 = vpop.f32.mrb[0].mxu0
  %v793 = vadd.f32 0.0, %v792
  %v794 = vpop.f32.mrb[0].mxu0
  %795 = vmatprep.mubr.bf16.mxu0 0
  %796 = vmatmul.mubr.bf16.gmra.mrb[0].mxu0 %v717
  %v797 = vpop.f32.mrb[0].mxu0
  %v798 = vadd.f32 0.0, %v797
  %v799 = vpop.f32.mrb[0].mxu0
  %v800 = vpop.f32.mrb[0].mxu0
  %v801 = vadd.f32 0.0, %v800
  %v802 = vpop.f32.mrb[0].mxu0
  %803 = vmatprep.mubr.bf16.mxu0 0
  %804 = vmatmul.mubr.bf16.gmra.mrb[0].mxu0 %v720
  %v805 = vpop.f32.mrb[0].mxu0
  %v806 = vadd.f32 0.0, %v805
  %v807 = vpop.f32.mrb[0].mxu0
  %v808 = vpop.f32.mrb[0].mxu0
  %v809 = vadd.f32 0.0, %v808
  %v810 = vpop.f32.mrb[0].mxu0
  %811 = vmatprep.mubr.bf16.mxu0 0
  %812 = vmatmul.mubr.bf16.gmra.mrb[0].mxu0 %v723
  %v813 = vpop.f32.mrb[0].mxu0
  %v814 = vadd.f32 0.0, %v813
  %v815 = vpop.f32.mrb[0].mxu0
  %v816 = vpop.f32.mrb[0].mxu0
  %v817 = vadd.f32 0.0, %v816
  %v818 = vpop.f32.mrb[0].mxu0
  %819 = vmatprep.mubr.bf16.mxu0 0
  %820 = vmatmul.mubr.bf16.gmra.mrb[0].mxu0 %v726
  %v821 = vpop.f32.mrb[0].mxu0
  %v822 = vadd.f32 0.0, %v821
  %v823 = vpop.f32.mrb[0].mxu0
  %v824 = vpop.f32.mrb[0].mxu0
  %v825 = vadd.f32 0.0, %v824
  %v826 = vpop.f32.mrb[0].mxu0
  %827 = vmatprep.mubr.bf16.mxu0 0
  %828 = vmatmul.mubr.bf16.gmra.mrb[0].mxu0 %v729
  %v829 = vpop.f32.mrb[0].mxu0
  %v830 = vadd.f32 0.0, %v829
  %v831 = vpop.f32.mrb[0].mxu0
  %v832 = vpop.f32.mrb[0].mxu0
  %v833 = vadd.f32 0.0, %v832
  %v834 = vpop.f32.mrb[0].mxu0
  %835 = vmatprep.mubr.bf16.mxu0 0
  %836 = vmatmul.mubr.bf16.gmra.mrb[0].mxu0 %v732
  %v837 = vpop.f32.mrb[0].mxu0
  %v838 = vadd.f32 0.0, %v837
  %v839 = vpop.f32.mrb[0].mxu0
  %v840 = vpop.f32.mrb[0].mxu0
  %v841 = vadd.f32 0.0, %v840
  %v842 = vpop.f32.mrb[0].mxu0
  %843 = vdwg.mxu0
  %v844 = vmul.f32 %v790, 0.25
  %v845 = vmul.f32 %v793, 0.25
  %v846 = vmul.f32 %v798, 0.25
  %v847 = vmul.f32 %v801, 0.25
  %v848 = vmul.f32 %v806, 0.25
  %v849 = vmul.f32 %v809, 0.25
  %v850 = vmul.f32 %v814, 0.25
  %v851 = vmul.f32 %v817, 0.25
  %v852 = vmul.f32 %v822, 0.25
  %v853 = vmul.f32 %v825, 0.25
  %v854 = vmul.f32 %v830, 0.25
  %v855 = vmul.f32 %v833, 0.25
  %v856 = vmul.f32 %v838, 0.25
  %v857 = vmul.f32 %v841, 0.25
  %s858 = scalar_lea.vmem %s1, 112
  %v859 = vld [vmem:[%s858] sm:$0xff]
  %v860 = vld [vmem:[%s858 + $0x8] sm:$0xff]
  %v861 = vld [vmem:[%s858 + $0x10] sm:$0xff]
  %v862 = vld [vmem:[%s858 + $0x18] sm:$0xff]
  %v863 = vld [vmem:[%s858 + $0x20] sm:$0xff]
  %v864 = vld [vmem:[%s858 + $0x28] sm:$0xff]
  %v865 = vld [vmem:[%s858 + $0x30] sm:$0xff]
  %v866 = vld [vmem:[%s858 + $0x38] sm:$0xff]
  %v867 = vld [vmem:[%s858 + $0x40] sm:$0xff]
  %v868 = vld [vmem:[%s858 + $0x48] sm:$0xff]
  %v869 = vld [vmem:[%s858 + $0x50] sm:$0xff]
  %v870 = vld [vmem:[%s858 + $0x58] sm:$0xff]
  %v871 = vld [vmem:[%s858 + $0x60] sm:$0xff]
  %v872 = vld [vmem:[%s858 + $0x68] sm:$0xff]
  %v873 = vadd.f32 %v844, %v859
  %v874 = vadd.f32 %v845, %v860
  %v875 = vadd.f32 %v846, %v861
  %v876 = vadd.f32 %v847, %v862
  %v877 = vadd.f32 %v848, %v863
  %v878 = vadd.f32 %v849, %v864
  %v879 = vadd.f32 %v850, %v865
  %v880 = vadd.f32 %v851, %v866
  %v881 = vadd.f32 %v852, %v867
  %v882 = vadd.f32 %v853, %v868
  %v883 = vadd.f32 %v854, %v869
  %v884 = vadd.f32 %v855, %v870
  %v885 = vadd.f32 %v856, %v871
  %v886 = vadd.f32 %v857, %v872
  %v887 = vsel %vm300, %v873, -inf
  %888 = vmax.xlane.f32.xlu0 %v887
  %v889 = vpop.xlane.xlu0 %888
  %v890 = vsel %vm300, %v874, -inf
  %891 = vmax.xlane.f32.xlu0 %v890
  %v892 = vpop.xlane.xlu0 %891
  %v893 = vsel %vm300, %v875, -inf
  %894 = vmax.xlane.f32.xlu0 %v893
  %v895 = vpop.xlane.xlu0 %894
  %v896 = vsel %vm300, %v876, -inf
  %897 = vmax.xlane.f32.xlu0 %v896
  %v898 = vpop.xlane.xlu0 %897
  %v899 = vsel %vm300, %v877, -inf
  %900 = vmax.xlane.f32.xlu0 %v899
  %v901 = vpop.xlane.xlu0 %900
  %v902 = vsel %vm300, %v878, -inf
  %903 = vmax.xlane.f32.xlu0 %v902
  %v904 = vpop.xlane.xlu0 %903
  %v905 = vsel %vm300, %v879, -inf
  %906 = vmax.xlane.f32.xlu0 %v905
  %v907 = vpop.xlane.xlu0 %906
  %v908 = vsel %vm300, %v880, -inf
  %909 = vmax.xlane.f32.xlu0 %v908
  %v910 = vpop.xlane.xlu0 %909
  %v911 = vsel %vm300, %v881, -inf
  %912 = vmax.xlane.f32.xlu0 %v911
  %v913 = vpop.xlane.xlu0 %912
  %v914 = vsel %vm300, %v882, -inf
  %915 = vmax.xlane.f32.xlu0 %v914
  %v916 = vpop.xlane.xlu0 %915
  %v917 = vsel %vm300, %v883, -inf
  %918 = vmax.xlane.f32.xlu0 %v917
  %v919 = vpop.xlane.xlu0 %918
  %v920 = vsel %vm300, %v884, -inf
  %921 = vmax.xlane.f32.xlu0 %v920
  %v922 = vpop.xlane.xlu0 %921
  %v923 = vsel %vm300, %v885, -inf
  %924 = vmax.xlane.f32.xlu0 %v923
  %v925 = vpop.xlane.xlu0 %924
  %v926 = vsel %vm300, %v886, -inf
  %927 = vmax.xlane.f32.xlu0 %v926
  %v928 = vpop.xlane.xlu0 %927
  %v929 = vsub.f32 %v873, %v889
  %v930 = vsub.f32 %v874, %v892
  %v931 = vsub.f32 %v875, %v895
  %v932 = vsub.f32 %v876, %v898
  %v933 = vsub.f32 %v877, %v901
  %v934 = vsub.f32 %v878, %v904
  %v935 = vsub.f32 %v879, %v907
  %v936 = vsub.f32 %v880, %v910
  %v937 = vsub.f32 %v881, %v913
  %v938 = vsub.f32 %v882, %v916
  %v939 = vsub.f32 %v883, %v919
  %v940 = vsub.f32 %v884, %v922
  %v941 = vsub.f32 %v885, %v925
  %v942 = vsub.f32 %v886, %v928
  %v943 = vmul.f32 %v929, 1.442695
  %v944 = vpow.pop %v943
  %v945 = vmul.f32 %v930, 1.442695
  %v946 = vpow.pop %v945
  %v947 = vmul.f32 %v931, 1.442695
  %v948 = vpow.pop %v947
  %v949 = vmul.f32 %v932, 1.442695
  %v950 = vpow.pop %v949
  %v951 = vmul.f32 %v933, 1.442695
  %v952 = vpow.pop %v951
  %v953 = vmul.f32 %v934, 1.442695
  %v954 = vpow.pop %v953
  %v955 = vmul.f32 %v935, 1.442695
  %v956 = vpow.pop %v955
  %v957 = vmul.f32 %v936, 1.442695
  %v958 = vpow.pop %v957
  %v959 = vmul.f32 %v937, 1.442695
  %v960 = vpow.pop %v959
  %v961 = vmul.f32 %v938, 1.442695
  %v962 = vpow.pop %v961
  %v963 = vmul.f32 %v939, 1.442695
  %v964 = vpow.pop %v963
  %v965 = vmul.f32 %v940, 1.442695
  %v966 = vpow.pop %v965
  %v967 = vmul.f32 %v941, 1.442695
  %v968 = vpow.pop %v967
  %v969 = vmul.f32 %v942, 1.442695
  %v970 = vpow.pop %v969
  %v971 = vsel %vm300, %v944, 0.0
  %972 = vadd.xlane.f32.xlu0 %v971
  %v973 = vpop.xlane.xlu0 %972
  %v974 = vsel %vm300, %v946, 0.0
  %975 = vadd.xlane.f32.xlu0 %v974
  %v976 = vpop.xlane.xlu0 %975
  %v977 = vsel %vm300, %v948, 0.0
  %978 = vadd.xlane.f32.xlu0 %v977
  %v979 = vpop.xlane.xlu0 %978
  %v980 = vsel %vm300, %v950, 0.0
  %981 = vadd.xlane.f32.xlu0 %v980
  %v982 = vpop.xlane.xlu0 %981
  %v983 = vsel %vm300, %v952, 0.0
  %984 = vadd.xlane.f32.xlu0 %v983
  %v985 = vpop.xlane.xlu0 %984
  %v986 = vsel %vm300, %v954, 0.0
  %987 = vadd.xlane.f32.xlu0 %v986
  %v988 = vpop.xlane.xlu0 %987
  %v989 = vsel %vm300, %v956, 0.0
  %990 = vadd.xlane.f32.xlu0 %v989
  %v991 = vpop.xlane.xlu0 %990
  %v992 = vsel %vm300, %v958, 0.0
  %993 = vadd.xlane.f32.xlu0 %v992
  %v994 = vpop.xlane.xlu0 %993
  %v995 = vsel %vm300, %v960, 0.0
  %996 = vadd.xlane.f32.xlu0 %v995
  %v997 = vpop.xlane.xlu0 %996
  %v998 = vsel %vm300, %v962, 0.0
  %999 = vadd.xlane.f32.xlu0 %v998
  %v1000 = vpop.xlane.xlu0 %999
  %v1001 = vsel %vm300, %v964, 0.0
  %1002 = vadd.xlane.f32.xlu0 %v1001
  %v1003 = vpop.xlane.xlu0 %1002
  %v1004 = vsel %vm300, %v966, 0.0
  %1005 = vadd.xlane.f32.xlu0 %v1004
  %v1006 = vpop.xlane.xlu0 %1005
  %v1007 = vsel %vm300, %v968, 0.0
  %1008 = vadd.xlane.f32.xlu0 %v1007
  %v1009 = vpop.xlane.xlu0 %1008
  %v1010 = vsel %vm300, %v970, 0.0
  %1011 = vadd.xlane.f32.xlu0 %v1010
  %v1012 = vpop.xlane.xlu0 %1011
  %v1013 = vrcp.pop %v973
  %v1014 = vmul.f32 %v944, %v1013
  %v1015 = vrcp.pop %v976
  %v1016 = vmul.f32 %v946, %v1015
  %v1017 = vrcp.pop %v979
  %v1018 = vmul.f32 %v948, %v1017
  %v1019 = vrcp.pop %v982
  %v1020 = vmul.f32 %v950, %v1019
  %v1021 = vrcp.pop %v985
  %v1022 = vmul.f32 %v952, %v1021
  %v1023 = vrcp.pop %v988
  %v1024 = vmul.f32 %v954, %v1023
  %v1025 = vrcp.pop %v991
  %v1026 = vmul.f32 %v956, %v1025
  %v1027 = vrcp.pop %v994
  %v1028 = vmul.f32 %v958, %v1027
  %v1029 = vrcp.pop %v997
  %v1030 = vmul.f32 %v960, %v1029
  %v1031 = vrcp.pop %v1000
  %v1032 = vmul.f32 %v962, %v1031
  %v1033 = vrcp.pop %v1003
  %v1034 = vmul.f32 %v964, %v1033
  %v1035 = vrcp.pop %v1006
  %v1036 = vmul.f32 %v966, %v1035
  %v1037 = vrcp.pop %v1009
  %v1038 = vmul.f32 %v968, %v1037
  %v1039 = vrcp.pop %v1012
  %v1040 = vmul.f32 %v970, %v1039
  %v1041 = vpack.c.bf16 %v1016, %v1014
  %v1042 = vpack.c.bf16 %v1020, %v1018
  %v1043 = vpack.c.bf16 %v1024, %v1022
  %v1044 = vpack.c.bf16 %v1028, %v1026
  %v1045 = vpack.c.bf16 %v1032, %v1030
  %v1046 = vpack.c.bf16 %v1036, %v1034
  %v1047 = vpack.c.bf16 %v1040, %v1038
  %1048 = vrot.lane.b32.xlu0 %v490, 112
  %v1049 = vpop.permute.xlu0 %1048
  %1050 = vrot.lane.b32.xlu0 %v491, 112
  %v1051 = vpop.permute.xlu0 %1050
  %1052 = vrot.lane.b32.xlu0 %v492, 112
  %v1053 = vpop.permute.xlu0 %1052
  %1054 = vrot.lane.b32.xlu0 %v493, 112
  %v1055 = vpop.permute.xlu0 %1054
  %1056 = vrot.lane.b32.xlu0 %v494, 112
  %v1057 = vpop.permute.xlu0 %1056
  %1058 = vrot.lane.b32.xlu0 %v495, 112
  %v1059 = vpop.permute.xlu0 %1058
  %1060 = vrot.lane.b32.xlu0 %v496, 112
  %v1061 = vpop.permute.xlu0 %1060
  %v1070 = vsel %vm300, %v1041, 0
  %v1073 = vsel %vm300, %v1042, 0
  %v1076 = vsel %vm300, %v1043, 0
  %v1079 = vsel %vm300, %v1044, 0
  %v1082 = vsel %vm300, %v1045, 0
  %v1085 = vsel %vm300, %v1046, 0
  %v1088 = vsel %vm300, %v1047, 0
  %1090 = vmatprep.subr.bf16.mxu0 0
  %1091 = vmatpush1.bf16.msra.mxu0 %v1049
  %1092 = vmatprep.subr.bf16.mxu0 0
  %1093 = vmatpush1.bf16.msra.mxu0 %v1051
  %1094 = vmatprep.subr.bf16.mxu0 0
  %1095 = vmatpush1.bf16.msra.mxu0 %v1053
  %1096 = vmatprep.subr.bf16.mxu0 0
  %1097 = vmatpush1.bf16.msra.mxu0 %v1055
  %1098 = vmatprep.subr.bf16.mxu0 0
  %1099 = vmatpush1.bf16.msra.mxu0 %v1057
  %1100 = vmatprep.subr.bf16.mxu0 0
  %1101 = vmatpush1.bf16.msra.mxu0 %v1059
  %1102 = vmatprep.subr.bf16.mxu0 0
  %1103 = vmatpush1.bf16.msra.mxu0 %v1061
  %1104 = vmatprep.subr.bf16.mxu0 0
  %1105 = vmatpush1.bf16.msra.mxu0 0
  %1106 = vmatprep.subr.bf16.mxu0 0
  %1107 = vmatpush1.bf16.msra.mxu0 0
  %1108 = vmatprep.subr.bf16.mxu0 0
  %1109 = vmatpush1.bf16.msra.mxu0 0
  %1110 = vmatprep.subr.bf16.mxu0 0
  %1111 = vmatpush1.bf16.msra.mxu0 0
  %1112 = vmatprep.subr.bf16.mxu0 0
  %1113 = vmatpush1.bf16.msra.mxu0 0
  %1114 = vmatprep.subr.bf16.mxu0 0
  %1115 = vmatpush1.bf16.msra.mxu0 0
  %1116 = vmatprep.subr.bf16.mxu0 0
  %1117 = vmatpush1.bf16.msra.mxu0 0
  %1118 = vmatprep.subr.bf16.mxu0 0
  %1119 = vmatpush1.bf16.msra.mxu0 0
  %1120 = vmatprep.subr.bf16.mxu0 0
  %1121 = vmatpush1.bf16.msra.mxu0 0
  %1122 = vmatprep.mubr.bf16.mxu0 0
  %1123 = vmatmul.mubr.bf16.gmra.mrb[0].mxu0 %v1070
  %v1124 = vpop.f32.mrb[0].mxu0
  %v1125 = vadd.f32 0.0, %v1124
  %v1126 = vpop.f32.mrb[0].mxu0
  %v1127 = vpop.f32.mrb[0].mxu0
  %v1128 = vadd.f32 0.0, %v1127
  %v1129 = vpop.f32.mrb[0].mxu0
  %1130 = vmatprep.mubr.bf16.mxu0 0
  %1131 = vmatmul.mubr.bf16.gmra.mrb[0].mxu0 %v1073
  %v1132 = vpop.f32.mrb[0].mxu0
  %v1133 = vadd.f32 0.0, %v1132
  %v1134 = vpop.f32.mrb[0].mxu0
  %v1135 = vpop.f32.mrb[0].mxu0
  %v1136 = vadd.f32 0.0, %v1135
  %v1137 = vpop.f32.mrb[0].mxu0
  %1138 = vmatprep.mubr.bf16.mxu0 0
  %1139 = vmatmul.mubr.bf16.gmra.mrb[0].mxu0 %v1076
  %v1140 = vpop.f32.mrb[0].mxu0
  %v1141 = vadd.f32 0.0, %v1140
  %v1142 = vpop.f32.mrb[0].mxu0
  %v1143 = vpop.f32.mrb[0].mxu0
  %v1144 = vadd.f32 0.0, %v1143
  %v1145 = vpop.f32.mrb[0].mxu0
  %1146 = vmatprep.mubr.bf16.mxu0 0
  %1147 = vmatmul.mubr.bf16.gmra.mrb[0].mxu0 %v1079
  %v1148 = vpop.f32.mrb[0].mxu0
  %v1149 = vadd.f32 0.0, %v1148
  %v1150 = vpop.f32.mrb[0].mxu0
  %v1151 = vpop.f32.mrb[0].mxu0
  %v1152 = vadd.f32 0.0, %v1151
  %v1153 = vpop.f32.mrb[0].mxu0
  %1154 = vmatprep.mubr.bf16.mxu0 0
  %1155 = vmatmul.mubr.bf16.gmra.mrb[0].mxu0 %v1082
  %v1156 = vpop.f32.mrb[0].mxu0
  %v1157 = vadd.f32 0.0, %v1156
  %v1158 = vpop.f32.mrb[0].mxu0
  %v1159 = vpop.f32.mrb[0].mxu0
  %v1160 = vadd.f32 0.0, %v1159
  %v1161 = vpop.f32.mrb[0].mxu0
  %1162 = vmatprep.mubr.bf16.mxu0 0
  %1163 = vmatmul.mubr.bf16.gmra.mrb[0].mxu0 %v1085
  %v1164 = vpop.f32.mrb[0].mxu0
  %v1165 = vadd.f32 0.0, %v1164
  %v1166 = vpop.f32.mrb[0].mxu0
  %v1167 = vpop.f32.mrb[0].mxu0
  %v1168 = vadd.f32 0.0, %v1167
  %v1169 = vpop.f32.mrb[0].mxu0
  %1170 = vmatprep.mubr.bf16.mxu0 0
  %1171 = vmatmul.mubr.bf16.gmra.mrb[0].mxu0 %v1088
  %v1172 = vpop.f32.mrb[0].mxu0
  %v1173 = vadd.f32 0.0, %v1172
  %v1174 = vpop.f32.mrb[0].mxu0
  %v1175 = vpop.f32.mrb[0].mxu0
  %v1176 = vadd.f32 0.0, %v1175
  %v1177 = vpop.f32.mrb[0].mxu0
  %1178 = vdwg.mxu0
  %v1179 = vpack.c.bf16 %v1128, %v1125
  %v1180 = vpack.c.bf16 %v1136, %v1133
  %v1181 = vpack.c.bf16 %v1144, %v1141
  %v1182 = vpack.c.bf16 %v1152, %v1149
  %v1183 = vpack.c.bf16 %v1160, %v1157
  %v1184 = vpack.c.bf16 %v1168, %v1165
  %v1185 = vpack.c.bf16 %v1176, %v1173
  %v1193 = vunpack.c.l.b16 %v1179
  %v1194 = vunpack.c.h.b16 %v1179
  %v1195 = vunpack.c.l.b16 %v1180
  %v1196 = vunpack.c.h.b16 %v1180
  %v1197 = vunpack.c.l.b16 %v1181
  %v1198 = vunpack.c.h.b16 %v1181
  %v1199 = vunpack.c.l.b16 %v1182
  %v1200 = vunpack.c.h.b16 %v1182
  %v1201 = vunpack.c.l.b16 %v1183
  %v1202 = vunpack.c.h.b16 %v1183
  %v1203 = vunpack.c.l.b16 %v1184
  %v1204 = vunpack.c.h.b16 %v1184
  %v1205 = vunpack.c.l.b16 %v1185
  %v1206 = vunpack.c.h.b16 %v1185
  %v1207 = vpack.c.b16 %v1193, %v1193
  %v1208 = vpack.c.b16 %v1194, %v1194
  %v1209 = vpack.c.b16 %v1195, %v1195
  %v1210 = vpack.c.b16 %v1196, %v1196
  %v1211 = vpack.c.b16 %v1197, %v1197
  %v1212 = vpack.c.b16 %v1198, %v1198
  %v1213 = vpack.c.b16 %v1199, %v1199
  %v1214 = vpack.c.b16 %v1200, %v1200
  %v1215 = vpack.c.b16 %v1201, %v1201
  %v1216 = vpack.c.b16 %v1202, %v1202
  %v1217 = vpack.c.b16 %v1203, %v1203
  %v1218 = vpack.c.b16 %v1204, %v1204
  %v1219 = vpack.c.b16 %v1205, %v1205
  %v1220 = vpack.c.b16 %v1206, %v1206
  %1221 = vrot.lane.b32.xlu0 %v1207, 16
  %v1222 = vpop.permute.xlu0 %1221
  %1223 = vrot.lane.b32.xlu0 %v1208, 16
  %v1224 = vpop.permute.xlu0 %1223
  %1225 = vrot.lane.b32.xlu0 %v1209, 16
  %v1226 = vpop.permute.xlu0 %1225
  %1227 = vrot.lane.b32.xlu0 %v1210, 16
  %v1228 = vpop.permute.xlu0 %1227
  %1229 = vrot.lane.b32.xlu0 %v1211, 16
  %v1230 = vpop.permute.xlu0 %1229
  %1231 = vrot.lane.b32.xlu0 %v1212, 16
  %v1232 = vpop.permute.xlu0 %1231
  %1233 = vrot.lane.b32.xlu0 %v1213, 16
  %v1234 = vpop.permute.xlu0 %1233
  %1235 = vrot.lane.b32.xlu0 %v1214, 16
  %v1236 = vpop.permute.xlu0 %1235
  %1237 = vrot.lane.b32.xlu0 %v1215, 16
  %v1238 = vpop.permute.xlu0 %1237
  %1239 = vrot.lane.b32.xlu0 %v1216, 16
  %v1240 = vpop.permute.xlu0 %1239
  %1241 = vrot.lane.b32.xlu0 %v1217, 16
  %v1242 = vpop.permute.xlu0 %1241
  %1243 = vrot.lane.b32.xlu0 %v1218, 16
  %v1244 = vpop.permute.xlu0 %1243
  %1245 = vrot.lane.b32.xlu0 %v1219, 16
  %v1246 = vpop.permute.xlu0 %1245
  %1247 = vrot.lane.b32.xlu0 %v1220, 16
  %v1248 = vpop.permute.xlu0 %1247
  %vm1263 = vcmask 257152
  %1264 = vst.msk [vmem:[%s2] sm:$0xf] %vm1263, %v1222
  %1265 = vst.msk [vmem:[%s2 + $0x4] sm:$0xf] %vm1263, %v1224
  %1266 = vst.msk [vmem:[%s2 + $0x8] sm:$0xf] %vm1263, %v1226
  %1267 = vst.msk [vmem:[%s2 + $0xc] sm:$0xf] %vm1263, %v1228
  %1268 = vst.msk [vmem:[%s2 + $0x10] sm:$0xf] %vm1263, %v1230
  %1269 = vst.msk [vmem:[%s2 + $0x14] sm:$0xf] %vm1263, %v1232
  %1270 = vst.msk [vmem:[%s2 + $0x18] sm:$0xf] %vm1263, %v1234
  %1271 = vst.msk [vmem:[%s2 + $0x1c] sm:$0xf] %vm1263, %v1236
  %1272 = vst.msk [vmem:[%s2 + $0x20] sm:$0xf] %vm1263, %v1238
  %1273 = vst.msk [vmem:[%s2 + $0x24] sm:$0xf] %vm1263, %v1240
  %1274 = vst.msk [vmem:[%s2 + $0x28] sm:$0xf] %vm1263, %v1242
  %1275 = vst.msk [vmem:[%s2 + $0x2c] sm:$0xf] %vm1263, %v1244
  %1276 = vst.msk [vmem:[%s2 + $0x30] sm:$0xf] %vm1263, %v1246
  %1277 = vst.msk [vmem:[%s2 + $0x34] sm:$0xf] %vm1263, %v1248
  %1278 = vrot.lane.b32.xlu0 %v84, 96
  %v1279 = vpop.permute.xlu0 %1278
  %1280 = vrot.lane.b32.xlu0 %v85, 96
  %v1281 = vpop.permute.xlu0 %1280
  %1282 = vrot.lane.b32.xlu0 %v86, 96
  %v1283 = vpop.permute.xlu0 %1282
  %1284 = vrot.lane.b32.xlu0 %v87, 96
  %v1285 = vpop.permute.xlu0 %1284
  %1286 = vrot.lane.b32.xlu0 %v88, 96
  %v1287 = vpop.permute.xlu0 %1286
  %1288 = vrot.lane.b32.xlu0 %v89, 96
  %v1289 = vpop.permute.xlu0 %1288
  %1290 = vrot.lane.b32.xlu0 %v90, 96
  %v1291 = vpop.permute.xlu0 %1290
  %1292 = vrot.lane.b32.xlu0 %v119, 96
  %v1293 = vpop.permute.xlu0 %1292
  %1294 = vrot.lane.b32.xlu0 %v120, 96
  %v1295 = vpop.permute.xlu0 %1294
  %1296 = vrot.lane.b32.xlu0 %v121, 96
  %v1297 = vpop.permute.xlu0 %1296
  %1298 = vrot.lane.b32.xlu0 %v122, 96
  %v1299 = vpop.permute.xlu0 %1298
  %1300 = vrot.lane.b32.xlu0 %v123, 96
  %v1301 = vpop.permute.xlu0 %1300
  %1302 = vrot.lane.b32.xlu0 %v124, 96
  %v1303 = vpop.permute.xlu0 %1302
  %1304 = vrot.lane.b32.xlu0 %v125, 96
  %v1305 = vpop.permute.xlu0 %1304
  %v1307 = vsel %vm126, %v1279, 0
  %v1310 = vsel %vm126, %v1281, 0
  %v1313 = vsel %vm126, %v1283, 0
  %v1316 = vsel %vm126, %v1285, 0
  %v1319 = vsel %vm126, %v1287, 0
  %v1322 = vsel %vm126, %v1289, 0
  %v1325 = vsel %vm126, %v1291, 0
  %v1328 = vsel %vm126, %v1293, 0
  %v1331 = vsel %vm126, %v1295, 0
  %v1334 = vsel %vm126, %v1297, 0
  %v1337 = vsel %vm126, %v1299, 0
  %v1340 = vsel %vm126, %v1301, 0
  %v1343 = vsel %vm126, %v1303, 0
  %v1346 = vsel %vm126, %v1305, 0
  %1348 = vmatprep.subr.bf16.mxu0 0
  %1349 = vmatpush1.bf16.xpose.msra.mxu0 %v1328
  %1350 = vmatprep.subr.bf16.mxu0 0
  %1351 = vmatpush1.bf16.xpose.msra.mxu0 %v1331
  %1352 = vmatprep.subr.bf16.mxu0 0
  %1353 = vmatpush1.bf16.xpose.msra.mxu0 %v1334
  %1354 = vmatprep.subr.bf16.mxu0 0
  %1355 = vmatpush1.bf16.xpose.msra.mxu0 %v1337
  %1356 = vmatprep.subr.bf16.mxu0 0
  %1357 = vmatpush1.bf16.xpose.msra.mxu0 %v1340
  %1358 = vmatprep.subr.bf16.mxu0 0
  %1359 = vmatpush1.bf16.xpose.msra.mxu0 %v1343
  %1360 = vmatprep.subr.bf16.mxu0 0
  %1361 = vmatpush1.bf16.xpose.msra.mxu0 %v1346
  %1362 = vmatprep.subr.bf16.mxu0 0
  %1363 = vmatpush1.bf16.xpose.msra.mxu0 0
  %1364 = vmatprep.subr.bf16.mxu0 0
  %1365 = vmatpush1.bf16.xpose.msra.mxu0 0
  %1366 = vmatprep.subr.bf16.mxu0 0
  %1367 = vmatpush1.bf16.xpose.msra.mxu0 0
  %1368 = vmatprep.subr.bf16.mxu0 0
  %1369 = vmatpush1.bf16.xpose.msra.mxu0 0
  %1370 = vmatprep.subr.bf16.mxu0 0
  %1371 = vmatpush1.bf16.xpose.msra.mxu0 0
  %1372 = vmatprep.subr.bf16.mxu0 0
  %1373 = vmatpush1.bf16.xpose.msra.mxu0 0
  %1374 = vmatprep.subr.bf16.mxu0 0
  %1375 = vmatpush1.bf16.xpose.msra.mxu0 0
  %1376 = vmatprep.subr.bf16.mxu0 0
  %1377 = vmatpush1.bf16.xpose.msra.mxu0 0
  %1378 = vmatprep.subr.bf16.mxu0 0
  %1379 = vmatpush1.bf16.xpose.msra.mxu0 0
  %1380 = vmatprep.mubr.bf16.mxu0 0
  %1381 = vmatmul.mubr.bf16.gmra.mrb[0].mxu0 %v1307
  %v1382 = vpop.f32.mrb[0].mxu0
  %v1383 = vadd.f32 0.0, %v1382
  %v1384 = vpop.f32.mrb[0].mxu0
  %v1385 = vpop.f32.mrb[0].mxu0
  %v1386 = vadd.f32 0.0, %v1385
  %v1387 = vpop.f32.mrb[0].mxu0
  %1388 = vmatprep.mubr.bf16.mxu0 0
  %1389 = vmatmul.mubr.bf16.gmra.mrb[0].mxu0 %v1310
  %v1390 = vpop.f32.mrb[0].mxu0
  %v1391 = vadd.f32 0.0, %v1390
  %v1392 = vpop.f32.mrb[0].mxu0
  %v1393 = vpop.f32.mrb[0].mxu0
  %v1394 = vadd.f32 0.0, %v1393
  %v1395 = vpop.f32.mrb[0].mxu0
  %1396 = vmatprep.mubr.bf16.mxu0 0
  %1397 = vmatmul.mubr.bf16.gmra.mrb[0].mxu0 %v1313
  %v1398 = vpop.f32.mrb[0].mxu0
  %v1399 = vadd.f32 0.0, %v1398
  %v1400 = vpop.f32.mrb[0].mxu0
  %v1401 = vpop.f32.mrb[0].mxu0
  %v1402 = vadd.f32 0.0, %v1401
  %v1403 = vpop.f32.mrb[0].mxu0
  %1404 = vmatprep.mubr.bf16.mxu0 0
  %1405 = vmatmul.mubr.bf16.gmra.mrb[0].mxu0 %v1316
  %v1406 = vpop.f32.mrb[0].mxu0
  %v1407 = vadd.f32 0.0, %v1406
  %v1408 = vpop.f32.mrb[0].mxu0
  %v1409 = vpop.f32.mrb[0].mxu0
  %v1410 = vadd.f32 0.0, %v1409
  %v1411 = vpop.f32.mrb[0].mxu0
  %1412 = vmatprep.mubr.bf16.mxu0 0
  %1413 = vmatmul.mubr.bf16.gmra.mrb[0].mxu0 %v1319
  %v1414 = vpop.f32.mrb[0].mxu0
  %v1415 = vadd.f32 0.0, %v1414
  %v1416 = vpop.f32.mrb[0].mxu0
  %v1417 = vpop.f32.mrb[0].mxu0
  %v1418 = vadd.f32 0.0, %v1417
  %v1419 = vpop.f32.mrb[0].mxu0
  %1420 = vmatprep.mubr.bf16.mxu0 0
  %1421 = vmatmul.mubr.bf16.gmra.mrb[0].mxu0 %v1322
  %v1422 = vpop.f32.mrb[0].mxu0
  %v1423 = vadd.f32 0.0, %v1422
  %v1424 = vpop.f32.mrb[0].mxu0
  %v1425 = vpop.f32.mrb[0].mxu0
  %v1426 = vadd.f32 0.0, %v1425
  %v1427 = vpop.f32.mrb[0].mxu0
  %1428 = vmatprep.mubr.bf16.mxu0 0
  %1429 = vmatmul.mubr.bf16.gmra.mrb[0].mxu0 %v1325
  %v1430 = vpop.f32.mrb[0].mxu0
  %v1431 = vadd.f32 0.0, %v1430
  %v1432 = vpop.f32.mrb[0].mxu0
  %v1433 = vpop.f32.mrb[0].mxu0
  %v1434 = vadd.f32 0.0, %v1433
  %v1435 = vpop.f32.mrb[0].mxu0
  %1436 = vdwg.mxu0
  %v1437 = vmul.f32 %v1383, 0.25
  %v1438 = vmul.f32 %v1386, 0.25
  %v1439 = vmul.f32 %v1391, 0.25
  %v1440 = vmul.f32 %v1394, 0.25
  %v1441 = vmul.f32 %v1399, 0.25
  %v1442 = vmul.f32 %v1402, 0.25
  %v1443 = vmul.f32 %v1407, 0.25
  %v1444 = vmul.f32 %v1410, 0.25
  %v1445 = vmul.f32 %v1415, 0.25
  %v1446 = vmul.f32 %v1418, 0.25
  %v1447 = vmul.f32 %v1423, 0.25
  %v1448 = vmul.f32 %v1426, 0.25
  %v1449 = vmul.f32 %v1431, 0.25
  %v1450 = vmul.f32 %v1434, 0.25
  %s1451 = scalar_lea.vmem %s1, 224
  %v1452 = vld [vmem:[%s1451] sm:$0xff]
  %v1453 = vld [vmem:[%s1451 + $0x8] sm:$0xff]
  %v1454 = vld [vmem:[%s1451 + $0x10] sm:$0xff]
  %v1455 = vld [vmem:[%s1451 + $0x18] sm:$0xff]
  %v1456 = vld [vmem:[%s1451 + $0x20] sm:$0xff]
  %v1457 = vld [vmem:[%s1451 + $0x28] sm:$0xff]
  %v1458 = vld [vmem:[%s1451 + $0x30] sm:$0xff]
  %v1459 = vld [vmem:[%s1451 + $0x38] sm:$0xff]
  %v1460 = vld [vmem:[%s1451 + $0x40] sm:$0xff]
  %v1461 = vld [vmem:[%s1451 + $0x48] sm:$0xff]
  %v1462 = vld [vmem:[%s1451 + $0x50] sm:$0xff]
  %v1463 = vld [vmem:[%s1451 + $0x58] sm:$0xff]
  %v1464 = vld [vmem:[%s1451 + $0x60] sm:$0xff]
  %v1465 = vld [vmem:[%s1451 + $0x68] sm:$0xff]
  %v1466 = vadd.f32 %v1437, %v1452
  %v1467 = vadd.f32 %v1438, %v1453
  %v1468 = vadd.f32 %v1439, %v1454
  %v1469 = vadd.f32 %v1440, %v1455
  %v1470 = vadd.f32 %v1441, %v1456
  %v1471 = vadd.f32 %v1442, %v1457
  %v1472 = vadd.f32 %v1443, %v1458
  %v1473 = vadd.f32 %v1444, %v1459
  %v1474 = vadd.f32 %v1445, %v1460
  %v1475 = vadd.f32 %v1446, %v1461
  %v1476 = vadd.f32 %v1447, %v1462
  %v1477 = vadd.f32 %v1448, %v1463
  %v1478 = vadd.f32 %v1449, %v1464
  %v1479 = vadd.f32 %v1450, %v1465
  %v1480 = vsel %vm300, %v1466, -inf
  %1481 = vmax.xlane.f32.xlu0 %v1480
  %v1482 = vpop.xlane.xlu0 %1481
  %v1483 = vsel %vm300, %v1467, -inf
  %1484 = vmax.xlane.f32.xlu0 %v1483
  %v1485 = vpop.xlane.xlu0 %1484
  %v1486 = vsel %vm300, %v1468, -inf
  %1487 = vmax.xlane.f32.xlu0 %v1486
  %v1488 = vpop.xlane.xlu0 %1487
  %v1489 = vsel %vm300, %v1469, -inf
  %1490 = vmax.xlane.f32.xlu0 %v1489
  %v1491 = vpop.xlane.xlu0 %1490
  %v1492 = vsel %vm300, %v1470, -inf
  %1493 = vmax.xlane.f32.xlu0 %v1492
  %v1494 = vpop.xlane.xlu0 %1493
  %v1495 = vsel %vm300, %v1471, -inf
  %1496 = vmax.xlane.f32.xlu0 %v1495
  %v1497 = vpop.xlane.xlu0 %1496
  %v1498 = vsel %vm300, %v1472, -inf
  %1499 = vmax.xlane.f32.xlu0 %v1498
  %v1500 = vpop.xlane.xlu0 %1499
  %v1501 = vsel %vm300, %v1473, -inf
  %1502 = vmax.xlane.f32.xlu0 %v1501
  %v1503 = vpop.xlane.xlu0 %1502
  %v1504 = vsel %vm300, %v1474, -inf
  %1505 = vmax.xlane.f32.xlu0 %v1504
  %v1506 = vpop.xlane.xlu0 %1505
  %v1507 = vsel %vm300, %v1475, -inf
  %1508 = vmax.xlane.f32.xlu0 %v1507
  %v1509 = vpop.xlane.xlu0 %1508
  %v1510 = vsel %vm300, %v1476, -inf
  %1511 = vmax.xlane.f32.xlu0 %v1510
  %v1512 = vpop.xlane.xlu0 %1511
  %v1513 = vsel %vm300, %v1477, -inf
  %1514 = vmax.xlane.f32.xlu0 %v1513
  %v1515 = vpop.xlane.xlu0 %1514
  %v1516 = vsel %vm300, %v1478, -inf
  %1517 = vmax.xlane.f32.xlu0 %v1516
  %v1518 = vpop.xlane.xlu0 %1517
  %v1519 = vsel %vm300, %v1479, -inf
  %1520 = vmax.xlane.f32.xlu0 %v1519
  %v1521 = vpop.xlane.xlu0 %1520
  %v1522 = vsub.f32 %v1466, %v1482
  %v1523 = vsub.f32 %v1467, %v1485
  %v1524 = vsub.f32 %v1468, %v1488
  %v1525 = vsub.f32 %v1469, %v1491
  %v1526 = vsub.f32 %v1470, %v1494
  %v1527 = vsub.f32 %v1471, %v1497
  %v1528 = vsub.f32 %v1472, %v1500
  %v1529 = vsub.f32 %v1473, %v1503
  %v1530 = vsub.f32 %v1474, %v1506
  %v1531 = vsub.f32 %v1475, %v1509
  %v1532 = vsub.f32 %v1476, %v1512
  %v1533 = vsub.f32 %v1477, %v1515
  %v1534 = vsub.f32 %v1478, %v1518
  %v1535 = vsub.f32 %v1479, %v1521
  %v1536 = vmul.f32 %v1522, 1.442695
  %v1537 = vpow.pop %v1536
  %v1538 = vmul.f32 %v1523, 1.442695
  %v1539 = vpow.pop %v1538
  %v1540 = vmul.f32 %v1524, 1.442695
  %v1541 = vpow.pop %v1540
  %v1542 = vmul.f32 %v1525, 1.442695
  %v1543 = vpow.pop %v1542
  %v1544 = vmul.f32 %v1526, 1.442695
  %v1545 = vpow.pop %v1544
  %v1546 = vmul.f32 %v1527, 1.442695
  %v1547 = vpow.pop %v1546
  %v1548 = vmul.f32 %v1528, 1.442695
  %v1549 = vpow.pop %v1548
  %v1550 = vmul.f32 %v1529, 1.442695
  %v1551 = vpow.pop %v1550
  %v1552 = vmul.f32 %v1530, 1.442695
  %v1553 = vpow.pop %v1552
  %v1554 = vmul.f32 %v1531, 1.442695
  %v1555 = vpow.pop %v1554
  %v1556 = vmul.f32 %v1532, 1.442695
  %v1557 = vpow.pop %v1556
  %v1558 = vmul.f32 %v1533, 1.442695
  %v1559 = vpow.pop %v1558
  %v1560 = vmul.f32 %v1534, 1.442695
  %v1561 = vpow.pop %v1560
  %v1562 = vmul.f32 %v1535, 1.442695
  %v1563 = vpow.pop %v1562
  %v1564 = vsel %vm300, %v1537, 0.0
  %1565 = vadd.xlane.f32.xlu0 %v1564
  %v1566 = vpop.xlane.xlu0 %1565
  %v1567 = vsel %vm300, %v1539, 0.0
  %1568 = vadd.xlane.f32.xlu0 %v1567
  %v1569 = vpop.xlane.xlu0 %1568
  %v1570 = vsel %vm300, %v1541, 0.0
  %1571 = vadd.xlane.f32.xlu0 %v1570
  %v1572 = vpop.xlane.xlu0 %1571
  %v1573 = vsel %vm300, %v1543, 0.0
  %1574 = vadd.xlane.f32.xlu0 %v1573
  %v1575 = vpop.xlane.xlu0 %1574
  %v1576 = vsel %vm300, %v1545, 0.0
  %1577 = vadd.xlane.f32.xlu0 %v1576
  %v1578 = vpop.xlane.xlu0 %1577
  %v1579 = vsel %vm300, %v1547, 0.0
  %1580 = vadd.xlane.f32.xlu0 %v1579
  %v1581 = vpop.xlane.xlu0 %1580
  %v1582 = vsel %vm300, %v1549, 0.0
  %1583 = vadd.xlane.f32.xlu0 %v1582
  %v1584 = vpop.xlane.xlu0 %1583
  %v1585 = vsel %vm300, %v1551, 0.0
  %1586 = vadd.xlane.f32.xlu0 %v1585
  %v1587 = vpop.xlane.xlu0 %1586
  %v1588 = vsel %vm300, %v1553, 0.0
  %1589 = vadd.xlane.f32.xlu0 %v1588
  %v1590 = vpop.xlane.xlu0 %1589
  %v1591 = vsel %vm300, %v1555, 0.0
  %1592 = vadd.xlane.f32.xlu0 %v1591
  %v1593 = vpop.xlane.xlu0 %1592
  %v1594 = vsel %vm300, %v1557, 0.0
  %1595 = vadd.xlane.f32.xlu0 %v1594
  %v1596 = vpop.xlane.xlu0 %1595
  %v1597 = vsel %vm300, %v1559, 0.0
  %1598 = vadd.xlane.f32.xlu0 %v1597
  %v1599 = vpop.xlane.xlu0 %1598
  %v1600 = vsel %vm300, %v1561, 0.0
  %1601 = vadd.xlane.f32.xlu0 %v1600
  %v1602 = vpop.xlane.xlu0 %1601
  %v1603 = vsel %vm300, %v1563, 0.0
  %1604 = vadd.xlane.f32.xlu0 %v1603
  %v1605 = vpop.xlane.xlu0 %1604
  %v1606 = vrcp.pop %v1566
  %v1607 = vmul.f32 %v1537, %v1606
  %v1608 = vrcp.pop %v1569
  %v1609 = vmul.f32 %v1539, %v1608
  %v1610 = vrcp.pop %v1572
  %v1611 = vmul.f32 %v1541, %v1610
  %v1612 = vrcp.pop %v1575
  %v1613 = vmul.f32 %v1543, %v1612
  %v1614 = vrcp.pop %v1578
  %v1615 = vmul.f32 %v1545, %v1614
  %v1616 = vrcp.pop %v1581
  %v1617 = vmul.f32 %v1547, %v1616
  %v1618 = vrcp.pop %v1584
  %v1619 = vmul.f32 %v1549, %v1618
  %v1620 = vrcp.pop %v1587
  %v1621 = vmul.f32 %v1551, %v1620
  %v1622 = vrcp.pop %v1590
  %v1623 = vmul.f32 %v1553, %v1622
  %v1624 = vrcp.pop %v1593
  %v1625 = vmul.f32 %v1555, %v1624
  %v1626 = vrcp.pop %v1596
  %v1627 = vmul.f32 %v1557, %v1626
  %v1628 = vrcp.pop %v1599
  %v1629 = vmul.f32 %v1559, %v1628
  %v1630 = vrcp.pop %v1602
  %v1631 = vmul.f32 %v1561, %v1630
  %v1632 = vrcp.pop %v1605
  %v1633 = vmul.f32 %v1563, %v1632
  %v1634 = vpack.c.bf16 %v1609, %v1607
  %v1635 = vpack.c.bf16 %v1613, %v1611
  %v1636 = vpack.c.bf16 %v1617, %v1615
  %v1637 = vpack.c.bf16 %v1621, %v1619
  %v1638 = vpack.c.bf16 %v1625, %v1623
  %v1639 = vpack.c.bf16 %v1629, %v1627
  %v1640 = vpack.c.bf16 %v1633, %v1631
  %1641 = vrot.lane.b32.xlu0 %v490, 96
  %v1642 = vpop.permute.xlu0 %1641
  %1643 = vrot.lane.b32.xlu0 %v491, 96
  %v1644 = vpop.permute.xlu0 %1643
  %1645 = vrot.lane.b32.xlu0 %v492, 96
  %v1646 = vpop.permute.xlu0 %1645
  %1647 = vrot.lane.b32.xlu0 %v493, 96
  %v1648 = vpop.permute.xlu0 %1647
  %1649 = vrot.lane.b32.xlu0 %v494, 96
  %v1650 = vpop.permute.xlu0 %1649
  %1651 = vrot.lane.b32.xlu0 %v495, 96
  %v1652 = vpop.permute.xlu0 %1651
  %1653 = vrot.lane.b32.xlu0 %v496, 96
  %v1654 = vpop.permute.xlu0 %1653
  %v1663 = vsel %vm300, %v1634, 0
  %v1666 = vsel %vm300, %v1635, 0
  %v1669 = vsel %vm300, %v1636, 0
  %v1672 = vsel %vm300, %v1637, 0
  %v1675 = vsel %vm300, %v1638, 0
  %v1678 = vsel %vm300, %v1639, 0
  %v1681 = vsel %vm300, %v1640, 0
  %1683 = vmatprep.subr.bf16.mxu0 0
  %1684 = vmatpush1.bf16.msra.mxu0 %v1642
  %1685 = vmatprep.subr.bf16.mxu0 0
  %1686 = vmatpush1.bf16.msra.mxu0 %v1644
  %1687 = vmatprep.subr.bf16.mxu0 0
  %1688 = vmatpush1.bf16.msra.mxu0 %v1646
  %1689 = vmatprep.subr.bf16.mxu0 0
  %1690 = vmatpush1.bf16.msra.mxu0 %v1648
  %1691 = vmatprep.subr.bf16.mxu0 0
  %1692 = vmatpush1.bf16.msra.mxu0 %v1650
  %1693 = vmatprep.subr.bf16.mxu0 0
  %1694 = vmatpush1.bf16.msra.mxu0 %v1652
  %1695 = vmatprep.subr.bf16.mxu0 0
  %1696 = vmatpush1.bf16.msra.mxu0 %v1654
  %1697 = vmatprep.subr.bf16.mxu0 0
  %1698 = vmatpush1.bf16.msra.mxu0 0
  %1699 = vmatprep.subr.bf16.mxu0 0
  %1700 = vmatpush1.bf16.msra.mxu0 0
  %1701 = vmatprep.subr.bf16.mxu0 0
  %1702 = vmatpush1.bf16.msra.mxu0 0
  %1703 = vmatprep.subr.bf16.mxu0 0
  %1704 = vmatpush1.bf16.msra.mxu0 0
  %1705 = vmatprep.subr.bf16.mxu0 0
  %1706 = vmatpush1.bf16.msra.mxu0 0
  %1707 = vmatprep.subr.bf16.mxu0 0
  %1708 = vmatpush1.bf16.msra.mxu0 0
  %1709 = vmatprep.subr.bf16.mxu0 0
  %1710 = vmatpush1.bf16.msra.mxu0 0
  %1711 = vmatprep.subr.bf16.mxu0 0
  %1712 = vmatpush1.bf16.msra.mxu0 0
  %1713 = vmatprep.subr.bf16.mxu0 0
  %1714 = vmatpush1.bf16.msra.mxu0 0
  %1715 = vmatprep.mubr.bf16.mxu0 0
  %1716 = vmatmul.mubr.bf16.gmra.mrb[0].mxu0 %v1663
  %v1717 = vpop.f32.mrb[0].mxu0
  %v1718 = vadd.f32 0.0, %v1717
  %v1719 = vpop.f32.mrb[0].mxu0
  %v1720 = vpop.f32.mrb[0].mxu0
  %v1721 = vadd.f32 0.0, %v1720
  %v1722 = vpop.f32.mrb[0].mxu0
  %1723 = vmatprep.mubr.bf16.mxu0 0
  %1724 = vmatmul.mubr.bf16.gmra.mrb[0].mxu0 %v1666
  %v1725 = vpop.f32.mrb[0].mxu0
  %v1726 = vadd.f32 0.0, %v1725
  %v1727 = vpop.f32.mrb[0].mxu0
  %v1728 = vpop.f32.mrb[0].mxu0
  %v1729 = vadd.f32 0.0, %v1728
  %v1730 = vpop.f32.mrb[0].mxu0
  %1731 = vmatprep.mubr.bf16.mxu0 0
  %1732 = vmatmul.mubr.bf16.gmra.mrb[0].mxu0 %v1669
  %v1733 = vpop.f32.mrb[0].mxu0
  %v1734 = vadd.f32 0.0, %v1733
  %v1735 = vpop.f32.mrb[0].mxu0
  %v1736 = vpop.f32.mrb[0].mxu0
  %v1737 = vadd.f32 0.0, %v1736
  %v1738 = vpop.f32.mrb[0].mxu0
  %1739 = vmatprep.mubr.bf16.mxu0 0
  %1740 = vmatmul.mubr.bf16.gmra.mrb[0].mxu0 %v1672
  %v1741 = vpop.f32.mrb[0].mxu0
  %v1742 = vadd.f32 0.0, %v1741
  %v1743 = vpop.f32.mrb[0].mxu0
  %v1744 = vpop.f32.mrb[0].mxu0
  %v1745 = vadd.f32 0.0, %v1744
  %v1746 = vpop.f32.mrb[0].mxu0
  %1747 = vmatprep.mubr.bf16.mxu0 0
  %1748 = vmatmul.mubr.bf16.gmra.mrb[0].mxu0 %v1675
  %v1749 = vpop.f32.mrb[0].mxu0
  %v1750 = vadd.f32 0.0, %v1749
  %v1751 = vpop.f32.mrb[0].mxu0
  %v1752 = vpop.f32.mrb[0].mxu0
  %v1753 = vadd.f32 0.0, %v1752
  %v1754 = vpop.f32.mrb[0].mxu0
  %1755 = vmatprep.mubr.bf16.mxu0 0
  %1756 = vmatmul.mubr.bf16.gmra.mrb[0].mxu0 %v1678
  %v1757 = vpop.f32.mrb[0].mxu0
  %v1758 = vadd.f32 0.0, %v1757
  %v1759 = vpop.f32.mrb[0].mxu0
  %v1760 = vpop.f32.mrb[0].mxu0
  %v1761 = vadd.f32 0.0, %v1760
  %v1762 = vpop.f32.mrb[0].mxu0
  %1763 = vmatprep.mubr.bf16.mxu0 0
  %1764 = vmatmul.mubr.bf16.gmra.mrb[0].mxu0 %v1681
  %v1765 = vpop.f32.mrb[0].mxu0
  %v1766 = vadd.f32 0.0, %v1765
  %v1767 = vpop.f32.mrb[0].mxu0
  %v1768 = vpop.f32.mrb[0].mxu0
  %v1769 = vadd.f32 0.0, %v1768
  %v1770 = vpop.f32.mrb[0].mxu0
  %1771 = vdwg.mxu0
  %v1772 = vpack.c.bf16 %v1721, %v1718
  %v1773 = vpack.c.bf16 %v1729, %v1726
  %v1774 = vpack.c.bf16 %v1737, %v1734
  %v1775 = vpack.c.bf16 %v1745, %v1742
  %v1776 = vpack.c.bf16 %v1753, %v1750
  %v1777 = vpack.c.bf16 %v1761, %v1758
  %v1778 = vpack.c.bf16 %v1769, %v1766
  %v1786 = vunpack.c.l.b16 %v1772
  %v1787 = vunpack.c.h.b16 %v1772
  %v1788 = vunpack.c.l.b16 %v1773
  %v1789 = vunpack.c.h.b16 %v1773
  %v1790 = vunpack.c.l.b16 %v1774
  %v1791 = vunpack.c.h.b16 %v1774
  %v1792 = vunpack.c.l.b16 %v1775
  %v1793 = vunpack.c.h.b16 %v1775
  %v1794 = vunpack.c.l.b16 %v1776
  %v1795 = vunpack.c.h.b16 %v1776
  %v1796 = vunpack.c.l.b16 %v1777
  %v1797 = vunpack.c.h.b16 %v1777
  %v1798 = vunpack.c.l.b16 %v1778
  %v1799 = vunpack.c.h.b16 %v1778
  %v1800 = vpack.c.b16 %v1786, %v1786
  %v1801 = vpack.c.b16 %v1787, %v1787
  %v1802 = vpack.c.b16 %v1788, %v1788
  %v1803 = vpack.c.b16 %v1789, %v1789
  %v1804 = vpack.c.b16 %v1790, %v1790
  %v1805 = vpack.c.b16 %v1791, %v1791
  %v1806 = vpack.c.b16 %v1792, %v1792
  %v1807 = vpack.c.b16 %v1793, %v1793
  %v1808 = vpack.c.b16 %v1794, %v1794
  %v1809 = vpack.c.b16 %v1795, %v1795
  %v1810 = vpack.c.b16 %v1796, %v1796
  %v1811 = vpack.c.b16 %v1797, %v1797
  %v1812 = vpack.c.b16 %v1798, %v1798
  %v1813 = vpack.c.b16 %v1799, %v1799
  %1814 = vrot.lane.b32.xlu0 %v1800, 32
  %v1815 = vpop.permute.xlu0 %1814
  %1816 = vrot.lane.b32.xlu0 %v1801, 32
  %v1817 = vpop.permute.xlu0 %1816
  %1818 = vrot.lane.b32.xlu0 %v1802, 32
  %v1819 = vpop.permute.xlu0 %1818
  %1820 = vrot.lane.b32.xlu0 %v1803, 32
  %v1821 = vpop.permute.xlu0 %1820
  %1822 = vrot.lane.b32.xlu0 %v1804, 32
  %v1823 = vpop.permute.xlu0 %1822
  %1824 = vrot.lane.b32.xlu0 %v1805, 32
  %v1825 = vpop.permute.xlu0 %1824
  %1826 = vrot.lane.b32.xlu0 %v1806, 32
  %v1827 = vpop.permute.xlu0 %1826
  %1828 = vrot.lane.b32.xlu0 %v1807, 32
  %v1829 = vpop.permute.xlu0 %1828
  %1830 = vrot.lane.b32.xlu0 %v1808, 32
  %v1831 = vpop.permute.xlu0 %1830
  %1832 = vrot.lane.b32.xlu0 %v1809, 32
  %v1833 = vpop.permute.xlu0 %1832
  %1834 = vrot.lane.b32.xlu0 %v1810, 32
  %v1835 = vpop.permute.xlu0 %1834
  %1836 = vrot.lane.b32.xlu0 %v1811, 32
  %v1837 = vpop.permute.xlu0 %1836
  %1838 = vrot.lane.b32.xlu0 %v1812, 32
  %v1839 = vpop.permute.xlu0 %1838
  %1840 = vrot.lane.b32.xlu0 %v1813, 32
  %v1841 = vpop.permute.xlu0 %1840
  %vm1856 = vcmask 388352
  %1857 = vst.msk [vmem:[%s2] sm:$0xf] %vm1856, %v1815
  %1858 = vst.msk [vmem:[%s2 + $0x4] sm:$0xf] %vm1856, %v1817
  %1859 = vst.msk [vmem:[%s2 + $0x8] sm:$0xf] %vm1856, %v1819
  %1860 = vst.msk [vmem:[%s2 + $0xc] sm:$0xf] %vm1856, %v1821
  %1861 = vst.msk [vmem:[%s2 + $0x10] sm:$0xf] %vm1856, %v1823
  %1862 = vst.msk [vmem:[%s2 + $0x14] sm:$0xf] %vm1856, %v1825
  %1863 = vst.msk [vmem:[%s2 + $0x18] sm:$0xf] %vm1856, %v1827
  %1864 = vst.msk [vmem:[%s2 + $0x1c] sm:$0xf] %vm1856, %v1829
  %1865 = vst.msk [vmem:[%s2 + $0x20] sm:$0xf] %vm1856, %v1831
  %1866 = vst.msk [vmem:[%s2 + $0x24] sm:$0xf] %vm1856, %v1833
  %1867 = vst.msk [vmem:[%s2 + $0x28] sm:$0xf] %vm1856, %v1835
  %1868 = vst.msk [vmem:[%s2 + $0x2c] sm:$0xf] %vm1856, %v1837
  %1869 = vst.msk [vmem:[%s2 + $0x30] sm:$0xf] %vm1856, %v1839
  %1870 = vst.msk [vmem:[%s2 + $0x34] sm:$0xf] %vm1856, %v1841
  %1871 = vrot.lane.b32.xlu0 %v84, 80
  %v1872 = vpop.permute.xlu0 %1871
  %1873 = vrot.lane.b32.xlu0 %v85, 80
  %v1874 = vpop.permute.xlu0 %1873
  %1875 = vrot.lane.b32.xlu0 %v86, 80
  %v1876 = vpop.permute.xlu0 %1875
  %1877 = vrot.lane.b32.xlu0 %v87, 80
  %v1878 = vpop.permute.xlu0 %1877
  %1879 = vrot.lane.b32.xlu0 %v88, 80
  %v1880 = vpop.permute.xlu0 %1879
  %1881 = vrot.lane.b32.xlu0 %v89, 80
  %v1882 = vpop.permute.xlu0 %1881
  %1883 = vrot.lane.b32.xlu0 %v90, 80
  %v1884 = vpop.permute.xlu0 %1883
  %1885 = vrot.lane.b32.xlu0 %v119, 80
  %v1886 = vpop.permute.xlu0 %1885
  %1887 = vrot.lane.b32.xlu0 %v120, 80
  %v1888 = vpop.permute.xlu0 %1887
  %1889 = vrot.lane.b32.xlu0 %v121, 80
  %v1890 = vpop.permute.xlu0 %1889
  %1891 = vrot.lane.b32.xlu0 %v122, 80
  %v1892 = vpop.permute.xlu0 %1891
  %1893 = vrot.lane.b32.xlu0 %v123, 80
  %v1894 = vpop.permute.xlu0 %1893
  %1895 = vrot.lane.b32.xlu0 %v124, 80
  %v1896 = vpop.permute.xlu0 %1895
  %1897 = vrot.lane.b32.xlu0 %v125, 80
  %v1898 = vpop.permute.xlu0 %1897
  %v1900 = vsel %vm126, %v1872, 0
  %v1903 = vsel %vm126, %v1874, 0
  %v1906 = vsel %vm126, %v1876, 0
  %v1909 = vsel %vm126, %v1878, 0
  %v1912 = vsel %vm126, %v1880, 0
  %v1915 = vsel %vm126, %v1882, 0
  %v1918 = vsel %vm126, %v1884, 0
  %v1921 = vsel %vm126, %v1886, 0
  %v1924 = vsel %vm126, %v1888, 0
  %v1927 = vsel %vm126, %v1890, 0
  %v1930 = vsel %vm126, %v1892, 0
  %v1933 = vsel %vm126, %v1894, 0
  %v1936 = vsel %vm126, %v1896, 0
  %v1939 = vsel %vm126, %v1898, 0
  %1941 = vmatprep.subr.bf16.mxu0 0
  %1942 = vmatpush1.bf16.xpose.msra.mxu0 %v1921
  %1943 = vmatprep.subr.bf16.mxu0 0
  %1944 = vmatpush1.bf16.xpose.msra.mxu0 %v1924
  %1945 = vmatprep.subr.bf16.mxu0 0
  %1946 = vmatpush1.bf16.xpose.msra.mxu0 %v1927
  %1947 = vmatprep.subr.bf16.mxu0 0
  %1948 = vmatpush1.bf16.xpose.msra.mxu0 %v1930
  %1949 = vmatprep.subr.bf16.mxu0 0
  %1950 = vmatpush1.bf16.xpose.msra.mxu0 %v1933
  %1951 = vmatprep.subr.bf16.mxu0 0
  %1952 = vmatpush1.bf16.xpose.msra.mxu0 %v1936
  %1953 = vmatprep.subr.bf16.mxu0 0
  %1954 = vmatpush1.bf16.xpose.msra.mxu0 %v1939
  %1955 = vmatprep.subr.bf16.mxu0 0
  %1956 = vmatpush1.bf16.xpose.msra.mxu0 0
  %1957 = vmatprep.subr.bf16.mxu0 0
  %1958 = vmatpush1.bf16.xpose.msra.mxu0 0
  %1959 = vmatprep.subr.bf16.mxu0 0
  %1960 = vmatpush1.bf16.xpose.msra.mxu0 0
  %1961 = vmatprep.subr.bf16.mxu0 0
  %1962 = vmatpush1.bf16.xpose.msra.mxu0 0
  %1963 = vmatprep.subr.bf16.mxu0 0
  %1964 = vmatpush1.bf16.xpose.msra.mxu0 0
  %1965 = vmatprep.subr.bf16.mxu0 0
  %1966 = vmatpush1.bf16.xpose.msra.mxu0 0
  %1967 = vmatprep.subr.bf16.mxu0 0
  %1968 = vmatpush1.bf16.xpose.msra.mxu0 0
  %1969 = vmatprep.subr.bf16.mxu0 0
  %1970 = vmatpush1.bf16.xpose.msra.mxu0 0
  %1971 = vmatprep.subr.bf16.mxu0 0
  %1972 = vmatpush1.bf16.xpose.msra.mxu0 0
  %1973 = vmatprep.mubr.bf16.mxu0 0
  %1974 = vmatmul.mubr.bf16.gmra.mrb[0].mxu0 %v1900
  %v1975 = vpop.f32.mrb[0].mxu0
  %v1976 = vadd.f32 0.0, %v1975
  %v1977 = vpop.f32.mrb[0].mxu0
  %v1978 = vpop.f32.mrb[0].mxu0
  %v1979 = vadd.f32 0.0, %v1978
  %v1980 = vpop.f32.mrb[0].mxu0
  %1981 = vmatprep.mubr.bf16.mxu0 0
  %1982 = vmatmul.mubr.bf16.gmra.mrb[0].mxu0 %v1903
  %v1983 = vpop.f32.mrb[0].mxu0
  %v1984 = vadd.f32 0.0, %v1983
  %v1985 = vpop.f32.mrb[0].mxu0
  %v1986 = vpop.f32.mrb[0].mxu0
  %v1987 = vadd.f32 0.0, %v1986
  %v1988 = vpop.f32.mrb[0].mxu0
  %1989 = vmatprep.mubr.bf16.mxu0 0
  %1990 = vmatmul.mubr.bf16.gmra.mrb[0].mxu0 %v1906
  %v1991 = vpop.f32.mrb[0].mxu0
  %v1992 = vadd.f32 0.0, %v1991
  %v1993 = vpop.f32.mrb[0].mxu0
  %v1994 = vpop.f32.mrb[0].mxu0
  %v1995 = vadd.f32 0.0, %v1994
  %v1996 = vpop.f32.mrb[0].mxu0
  %1997 = vmatprep.mubr.bf16.mxu0 0
  %1998 = vmatmul.mubr.bf16.gmra.mrb[0].mxu0 %v1909
  %v1999 = vpop.f32.mrb[0].mxu0
  %v2000 = vadd.f32 0.0, %v1999
  %v2001 = vpop.f32.mrb[0].mxu0
  %v2002 = vpop.f32.mrb[0].mxu0
  %v2003 = vadd.f32 0.0, %v2002
  %v2004 = vpop.f32.mrb[0].mxu0
  %2005 = vmatprep.mubr.bf16.mxu0 0
  %2006 = vmatmul.mubr.bf16.gmra.mrb[0].mxu0 %v1912
  %v2007 = vpop.f32.mrb[0].mxu0
  %v2008 = vadd.f32 0.0, %v2007
  %v2009 = vpop.f32.mrb[0].mxu0
  %v2010 = vpop.f32.mrb[0].mxu0
  %v2011 = vadd.f32 0.0, %v2010
  %v2012 = vpop.f32.mrb[0].mxu0
  %2013 = vmatprep.mubr.bf16.mxu0 0
  %2014 = vmatmul.mubr.bf16.gmra.mrb[0].mxu0 %v1915
  %v2015 = vpop.f32.mrb[0].mxu0
  %v2016 = vadd.f32 0.0, %v2015
  %v2017 = vpop.f32.mrb[0].mxu0
  %v2018 = vpop.f32.mrb[0].mxu0
  %v2019 = vadd.f32 0.0, %v2018
  %v2020 = vpop.f32.mrb[0].mxu0
  %2021 = vmatprep.mubr.bf16.mxu0 0
  %2022 = vmatmul.mubr.bf16.gmra.mrb[0].mxu0 %v1918
  %v2023 = vpop.f32.mrb[0].mxu0
  %v2024 = vadd.f32 0.0, %v2023
  %v2025 = vpop.f32.mrb[0].mxu0
  %v2026 = vpop.f32.mrb[0].mxu0
  %v2027 = vadd.f32 0.0, %v2026
  %v2028 = vpop.f32.mrb[0].mxu0
  %2029 = vdwg.mxu0
  %v2030 = vmul.f32 %v1976, 0.25
  %v2031 = vmul.f32 %v1979, 0.25
  %v2032 = vmul.f32 %v1984, 0.25
  %v2033 = vmul.f32 %v1987, 0.25
  %v2034 = vmul.f32 %v1992, 0.25
  %v2035 = vmul.f32 %v1995, 0.25
  %v2036 = vmul.f32 %v2000, 0.25
  %v2037 = vmul.f32 %v2003, 0.25
  %v2038 = vmul.f32 %v2008, 0.25
  %v2039 = vmul.f32 %v2011, 0.25
  %v2040 = vmul.f32 %v2016, 0.25
  %v2041 = vmul.f32 %v2019, 0.25
  %v2042 = vmul.f32 %v2024, 0.25
  %v2043 = vmul.f32 %v2027, 0.25
  %s2044 = scalar_lea.vmem %s1, 336
  %v2045 = vld [vmem:[%s2044] sm:$0xff]
  %v2046 = vld [vmem:[%s2044 + $0x8] sm:$0xff]
  %v2047 = vld [vmem:[%s2044 + $0x10] sm:$0xff]
  %v2048 = vld [vmem:[%s2044 + $0x18] sm:$0xff]
  %v2049 = vld [vmem:[%s2044 + $0x20] sm:$0xff]
  %v2050 = vld [vmem:[%s2044 + $0x28] sm:$0xff]
  %v2051 = vld [vmem:[%s2044 + $0x30] sm:$0xff]
  %v2052 = vld [vmem:[%s2044 + $0x38] sm:$0xff]
  %v2053 = vld [vmem:[%s2044 + $0x40] sm:$0xff]
  %v2054 = vld [vmem:[%s2044 + $0x48] sm:$0xff]
  %v2055 = vld [vmem:[%s2044 + $0x50] sm:$0xff]
  %v2056 = vld [vmem:[%s2044 + $0x58] sm:$0xff]
  %v2057 = vld [vmem:[%s2044 + $0x60] sm:$0xff]
  %v2058 = vld [vmem:[%s2044 + $0x68] sm:$0xff]
  %v2059 = vadd.f32 %v2030, %v2045
  %v2060 = vadd.f32 %v2031, %v2046
  %v2061 = vadd.f32 %v2032, %v2047
  %v2062 = vadd.f32 %v2033, %v2048
  %v2063 = vadd.f32 %v2034, %v2049
  %v2064 = vadd.f32 %v2035, %v2050
  %v2065 = vadd.f32 %v2036, %v2051
  %v2066 = vadd.f32 %v2037, %v2052
  %v2067 = vadd.f32 %v2038, %v2053
  %v2068 = vadd.f32 %v2039, %v2054
  %v2069 = vadd.f32 %v2040, %v2055
  %v2070 = vadd.f32 %v2041, %v2056
  %v2071 = vadd.f32 %v2042, %v2057
  %v2072 = vadd.f32 %v2043, %v2058
  %v2073 = vsel %vm300, %v2059, -inf
  %2074 = vmax.xlane.f32.xlu0 %v2073
  %v2075 = vpop.xlane.xlu0 %2074
  %v2076 = vsel %vm300, %v2060, -inf
  %2077 = vmax.xlane.f32.xlu0 %v2076
  %v2078 = vpop.xlane.xlu0 %2077
  %v2079 = vsel %vm300, %v2061, -inf
  %2080 = vmax.xlane.f32.xlu0 %v2079
  %v2081 = vpop.xlane.xlu0 %2080
  %v2082 = vsel %vm300, %v2062, -inf
  %2083 = vmax.xlane.f32.xlu0 %v2082
  %v2084 = vpop.xlane.xlu0 %2083
  %v2085 = vsel %vm300, %v2063, -inf
  %2086 = vmax.xlane.f32.xlu0 %v2085
  %v2087 = vpop.xlane.xlu0 %2086
  %v2088 = vsel %vm300, %v2064, -inf
  %2089 = vmax.xlane.f32.xlu0 %v2088
  %v2090 = vpop.xlane.xlu0 %2089
  %v2091 = vsel %vm300, %v2065, -inf
  %2092 = vmax.xlane.f32.xlu0 %v2091
  %v2093 = vpop.xlane.xlu0 %2092
  %v2094 = vsel %vm300, %v2066, -inf
  %2095 = vmax.xlane.f32.xlu0 %v2094
  %v2096 = vpop.xlane.xlu0 %2095
  %v2097 = vsel %vm300, %v2067, -inf
  %2098 = vmax.xlane.f32.xlu0 %v2097
  %v2099 = vpop.xlane.xlu0 %2098
  %v2100 = vsel %vm300, %v2068, -inf
  %2101 = vmax.xlane.f32.xlu0 %v2100
  %v2102 = vpop.xlane.xlu0 %2101
  %v2103 = vsel %vm300, %v2069, -inf
  %2104 = vmax.xlane.f32.xlu0 %v2103
  %v2105 = vpop.xlane.xlu0 %2104
  %v2106 = vsel %vm300, %v2070, -inf
  %2107 = vmax.xlane.f32.xlu0 %v2106
  %v2108 = vpop.xlane.xlu0 %2107
  %v2109 = vsel %vm300, %v2071, -inf
  %2110 = vmax.xlane.f32.xlu0 %v2109
  %v2111 = vpop.xlane.xlu0 %2110
  %v2112 = vsel %vm300, %v2072, -inf
  %2113 = vmax.xlane.f32.xlu0 %v2112
  %v2114 = vpop.xlane.xlu0 %2113
  %v2115 = vsub.f32 %v2059, %v2075
  %v2116 = vsub.f32 %v2060, %v2078
  %v2117 = vsub.f32 %v2061, %v2081
  %v2118 = vsub.f32 %v2062, %v2084
  %v2119 = vsub.f32 %v2063, %v2087
  %v2120 = vsub.f32 %v2064, %v2090
  %v2121 = vsub.f32 %v2065, %v2093
  %v2122 = vsub.f32 %v2066, %v2096
  %v2123 = vsub.f32 %v2067, %v2099
  %v2124 = vsub.f32 %v2068, %v2102
  %v2125 = vsub.f32 %v2069, %v2105
  %v2126 = vsub.f32 %v2070, %v2108
  %v2127 = vsub.f32 %v2071, %v2111
  %v2128 = vsub.f32 %v2072, %v2114
  %v2129 = vmul.f32 %v2115, 1.442695
  %v2130 = vpow.pop %v2129
  %v2131 = vmul.f32 %v2116, 1.442695
  %v2132 = vpow.pop %v2131
  %v2133 = vmul.f32 %v2117, 1.442695
  %v2134 = vpow.pop %v2133
  %v2135 = vmul.f32 %v2118, 1.442695
  %v2136 = vpow.pop %v2135
  %v2137 = vmul.f32 %v2119, 1.442695
  %v2138 = vpow.pop %v2137
  %v2139 = vmul.f32 %v2120, 1.442695
  %v2140 = vpow.pop %v2139
  %v2141 = vmul.f32 %v2121, 1.442695
  %v2142 = vpow.pop %v2141
  %v2143 = vmul.f32 %v2122, 1.442695
  %v2144 = vpow.pop %v2143
  %v2145 = vmul.f32 %v2123, 1.442695
  %v2146 = vpow.pop %v2145
  %v2147 = vmul.f32 %v2124, 1.442695
  %v2148 = vpow.pop %v2147
  %v2149 = vmul.f32 %v2125, 1.442695
  %v2150 = vpow.pop %v2149
  %v2151 = vmul.f32 %v2126, 1.442695
  %v2152 = vpow.pop %v2151
  %v2153 = vmul.f32 %v2127, 1.442695
  %v2154 = vpow.pop %v2153
  %v2155 = vmul.f32 %v2128, 1.442695
  %v2156 = vpow.pop %v2155
  %v2157 = vsel %vm300, %v2130, 0.0
  %2158 = vadd.xlane.f32.xlu0 %v2157
  %v2159 = vpop.xlane.xlu0 %2158
  %v2160 = vsel %vm300, %v2132, 0.0
  %2161 = vadd.xlane.f32.xlu0 %v2160
  %v2162 = vpop.xlane.xlu0 %2161
  %v2163 = vsel %vm300, %v2134, 0.0
  %2164 = vadd.xlane.f32.xlu0 %v2163
  %v2165 = vpop.xlane.xlu0 %2164
  %v2166 = vsel %vm300, %v2136, 0.0
  %2167 = vadd.xlane.f32.xlu0 %v2166
  %v2168 = vpop.xlane.xlu0 %2167
  %v2169 = vsel %vm300, %v2138, 0.0
  %2170 = vadd.xlane.f32.xlu0 %v2169
  %v2171 = vpop.xlane.xlu0 %2170
  %v2172 = vsel %vm300, %v2140, 0.0
  %2173 = vadd.xlane.f32.xlu0 %v2172
  %v2174 = vpop.xlane.xlu0 %2173
  %v2175 = vsel %vm300, %v2142, 0.0
  %2176 = vadd.xlane.f32.xlu0 %v2175
  %v2177 = vpop.xlane.xlu0 %2176
  %v2178 = vsel %vm300, %v2144, 0.0
  %2179 = vadd.xlane.f32.xlu0 %v2178
  %v2180 = vpop.xlane.xlu0 %2179
  %v2181 = vsel %vm300, %v2146, 0.0
  %2182 = vadd.xlane.f32.xlu0 %v2181
  %v2183 = vpop.xlane.xlu0 %2182
  %v2184 = vsel %vm300, %v2148, 0.0
  %2185 = vadd.xlane.f32.xlu0 %v2184
  %v2186 = vpop.xlane.xlu0 %2185
  %v2187 = vsel %vm300, %v2150, 0.0
  %2188 = vadd.xlane.f32.xlu0 %v2187
  %v2189 = vpop.xlane.xlu0 %2188
  %v2190 = vsel %vm300, %v2152, 0.0
  %2191 = vadd.xlane.f32.xlu0 %v2190
  %v2192 = vpop.xlane.xlu0 %2191
  %v2193 = vsel %vm300, %v2154, 0.0
  %2194 = vadd.xlane.f32.xlu0 %v2193
  %v2195 = vpop.xlane.xlu0 %2194
  %v2196 = vsel %vm300, %v2156, 0.0
  %2197 = vadd.xlane.f32.xlu0 %v2196
  %v2198 = vpop.xlane.xlu0 %2197
  %v2199 = vrcp.pop %v2159
  %v2200 = vmul.f32 %v2130, %v2199
  %v2201 = vrcp.pop %v2162
  %v2202 = vmul.f32 %v2132, %v2201
  %v2203 = vrcp.pop %v2165
  %v2204 = vmul.f32 %v2134, %v2203
  %v2205 = vrcp.pop %v2168
  %v2206 = vmul.f32 %v2136, %v2205
  %v2207 = vrcp.pop %v2171
  %v2208 = vmul.f32 %v2138, %v2207
  %v2209 = vrcp.pop %v2174
  %v2210 = vmul.f32 %v2140, %v2209
  %v2211 = vrcp.pop %v2177
  %v2212 = vmul.f32 %v2142, %v2211
  %v2213 = vrcp.pop %v2180
  %v2214 = vmul.f32 %v2144, %v2213
  %v2215 = vrcp.pop %v2183
  %v2216 = vmul.f32 %v2146, %v2215
  %v2217 = vrcp.pop %v2186
  %v2218 = vmul.f32 %v2148, %v2217
  %v2219 = vrcp.pop %v2189
  %v2220 = vmul.f32 %v2150, %v2219
  %v2221 = vrcp.pop %v2192
  %v2222 = vmul.f32 %v2152, %v2221
  %v2223 = vrcp.pop %v2195
  %v2224 = vmul.f32 %v2154, %v2223
  %v2225 = vrcp.pop %v2198
  %v2226 = vmul.f32 %v2156, %v2225
  %v2227 = vpack.c.bf16 %v2202, %v2200
  %v2228 = vpack.c.bf16 %v2206, %v2204
  %v2229 = vpack.c.bf16 %v2210, %v2208
  %v2230 = vpack.c.bf16 %v2214, %v2212
  %v2231 = vpack.c.bf16 %v2218, %v2216
  %v2232 = vpack.c.bf16 %v2222, %v2220
  %v2233 = vpack.c.bf16 %v2226, %v2224
  %2234 = vrot.lane.b32.xlu0 %v490, 80
  %v2235 = vpop.permute.xlu0 %2234
  %2236 = vrot.lane.b32.xlu0 %v491, 80
  %v2237 = vpop.permute.xlu0 %2236
  %2238 = vrot.lane.b32.xlu0 %v492, 80
  %v2239 = vpop.permute.xlu0 %2238
  %2240 = vrot.lane.b32.xlu0 %v493, 80
  %v2241 = vpop.permute.xlu0 %2240
  %2242 = vrot.lane.b32.xlu0 %v494, 80
  %v2243 = vpop.permute.xlu0 %2242
  %2244 = vrot.lane.b32.xlu0 %v495, 80
  %v2245 = vpop.permute.xlu0 %2244
  %2246 = vrot.lane.b32.xlu0 %v496, 80
  %v2247 = vpop.permute.xlu0 %2246
  %v2256 = vsel %vm300, %v2227, 0
  %v2259 = vsel %vm300, %v2228, 0
  %v2262 = vsel %vm300, %v2229, 0
  %v2265 = vsel %vm300, %v2230, 0
  %v2268 = vsel %vm300, %v2231, 0
  %v2271 = vsel %vm300, %v2232, 0
  %v2274 = vsel %vm300, %v2233, 0
  %2276 = vmatprep.subr.bf16.mxu0 0
  %2277 = vmatpush1.bf16.msra.mxu0 %v2235
  %2278 = vmatprep.subr.bf16.mxu0 0
  %2279 = vmatpush1.bf16.msra.mxu0 %v2237
  %2280 = vmatprep.subr.bf16.mxu0 0
  %2281 = vmatpush1.bf16.msra.mxu0 %v2239
  %2282 = vmatprep.subr.bf16.mxu0 0
  %2283 = vmatpush1.bf16.msra.mxu0 %v2241
  %2284 = vmatprep.subr.bf16.mxu0 0
  %2285 = vmatpush1.bf16.msra.mxu0 %v2243
  %2286 = vmatprep.subr.bf16.mxu0 0
  %2287 = vmatpush1.bf16.msra.mxu0 %v2245
  %2288 = vmatprep.subr.bf16.mxu0 0
  %2289 = vmatpush1.bf16.msra.mxu0 %v2247
  %2290 = vmatprep.subr.bf16.mxu0 0
  %2291 = vmatpush1.bf16.msra.mxu0 0
  %2292 = vmatprep.subr.bf16.mxu0 0
  %2293 = vmatpush1.bf16.msra.mxu0 0
  %2294 = vmatprep.subr.bf16.mxu0 0
  %2295 = vmatpush1.bf16.msra.mxu0 0
  %2296 = vmatprep.subr.bf16.mxu0 0
  %2297 = vmatpush1.bf16.msra.mxu0 0
  %2298 = vmatprep.subr.bf16.mxu0 0
  %2299 = vmatpush1.bf16.msra.mxu0 0
  %2300 = vmatprep.subr.bf16.mxu0 0
  %2301 = vmatpush1.bf16.msra.mxu0 0
  %2302 = vmatprep.subr.bf16.mxu0 0
  %2303 = vmatpush1.bf16.msra.mxu0 0
  %2304 = vmatprep.subr.bf16.mxu0 0
  %2305 = vmatpush1.bf16.msra.mxu0 0
  %2306 = vmatprep.subr.bf16.mxu0 0
  %2307 = vmatpush1.bf16.msra.mxu0 0
  %2308 = vmatprep.mubr.bf16.mxu0 0
  %2309 = vmatmul.mubr.bf16.gmra.mrb[0].mxu0 %v2256
  %v2310 = vpop.f32.mrb[0].mxu0
  %v2311 = vadd.f32 0.0, %v2310
  %v2312 = vpop.f32.mrb[0].mxu0
  %v2313 = vpop.f32.mrb[0].mxu0
  %v2314 = vadd.f32 0.0, %v2313
  %v2315 = vpop.f32.mrb[0].mxu0
  %2316 = vmatprep.mubr.bf16.mxu0 0
  %2317 = vmatmul.mubr.bf16.gmra.mrb[0].mxu0 %v2259
  %v2318 = vpop.f32.mrb[0].mxu0
  %v2319 = vadd.f32 0.0, %v2318
  %v2320 = vpop.f32.mrb[0].mxu0
  %v2321 = vpop.f32.mrb[0].mxu0
  %v2322 = vadd.f32 0.0, %v2321
  %v2323 = vpop.f32.mrb[0].mxu0
  %2324 = vmatprep.mubr.bf16.mxu0 0
  %2325 = vmatmul.mubr.bf16.gmra.mrb[0].mxu0 %v2262
  %v2326 = vpop.f32.mrb[0].mxu0
  %v2327 = vadd.f32 0.0, %v2326
  %v2328 = vpop.f32.mrb[0].mxu0
  %v2329 = vpop.f32.mrb[0].mxu0
  %v2330 = vadd.f32 0.0, %v2329
  %v2331 = vpop.f32.mrb[0].mxu0
  %2332 = vmatprep.mubr.bf16.mxu0 0
  %2333 = vmatmul.mubr.bf16.gmra.mrb[0].mxu0 %v2265
  %v2334 = vpop.f32.mrb[0].mxu0
  %v2335 = vadd.f32 0.0, %v2334
  %v2336 = vpop.f32.mrb[0].mxu0
  %v2337 = vpop.f32.mrb[0].mxu0
  %v2338 = vadd.f32 0.0, %v2337
  %v2339 = vpop.f32.mrb[0].mxu0
  %2340 = vmatprep.mubr.bf16.mxu0 0
  %2341 = vmatmul.mubr.bf16.gmra.mrb[0].mxu0 %v2268
  %v2342 = vpop.f32.mrb[0].mxu0
  %v2343 = vadd.f32 0.0, %v2342
  %v2344 = vpop.f32.mrb[0].mxu0
  %v2345 = vpop.f32.mrb[0].mxu0
  %v2346 = vadd.f32 0.0, %v2345
  %v2347 = vpop.f32.mrb[0].mxu0
  %2348 = vmatprep.mubr.bf16.mxu0 0
  %2349 = vmatmul.mubr.bf16.gmra.mrb[0].mxu0 %v2271
  %v2350 = vpop.f32.mrb[0].mxu0
  %v2351 = vadd.f32 0.0, %v2350
  %v2352 = vpop.f32.mrb[0].mxu0
  %v2353 = vpop.f32.mrb[0].mxu0
  %v2354 = vadd.f32 0.0, %v2353
  %v2355 = vpop.f32.mrb[0].mxu0
  %2356 = vmatprep.mubr.bf16.mxu0 0
  %2357 = vmatmul.mubr.bf16.gmra.mrb[0].mxu0 %v2274
  %v2358 = vpop.f32.mrb[0].mxu0
  %v2359 = vadd.f32 0.0, %v2358
  %v2360 = vpop.f32.mrb[0].mxu0
  %v2361 = vpop.f32.mrb[0].mxu0
  %v2362 = vadd.f32 0.0, %v2361
  %v2363 = vpop.f32.mrb[0].mxu0
  %2364 = vdwg.mxu0
  %v2365 = vpack.c.bf16 %v2314, %v2311
  %v2366 = vpack.c.bf16 %v2322, %v2319
  %v2367 = vpack.c.bf16 %v2330, %v2327
  %v2368 = vpack.c.bf16 %v2338, %v2335
  %v2369 = vpack.c.bf16 %v2346, %v2343
  %v2370 = vpack.c.bf16 %v2354, %v2351
  %v2371 = vpack.c.bf16 %v2362, %v2359
  %v2379 = vunpack.c.l.b16 %v2365
  %v2380 = vunpack.c.h.b16 %v2365
  %v2381 = vunpack.c.l.b16 %v2366
  %v2382 = vunpack.c.h.b16 %v2366
  %v2383 = vunpack.c.l.b16 %v2367
  %v2384 = vunpack.c.h.b16 %v2367
  %v2385 = vunpack.c.l.b16 %v2368
  %v2386 = vunpack.c.h.b16 %v2368
  %v2387 = vunpack.c.l.b16 %v2369
  %v2388 = vunpack.c.h.b16 %v2369
  %v2389 = vunpack.c.l.b16 %v2370
  %v2390 = vunpack.c.h.b16 %v2370
  %v2391 = vunpack.c.l.b16 %v2371
  %v2392 = vunpack.c.h.b16 %v2371
  %v2393 = vpack.c.b16 %v2379, %v2379
  %v2394 = vpack.c.b16 %v2380, %v2380
  %v2395 = vpack.c.b16 %v2381, %v2381
  %v2396 = vpack.c.b16 %v2382, %v2382
  %v2397 = vpack.c.b16 %v2383, %v2383
  %v2398 = vpack.c.b16 %v2384, %v2384
  %v2399 = vpack.c.b16 %v2385, %v2385
  %v2400 = vpack.c.b16 %v2386, %v2386
  %v2401 = vpack.c.b16 %v2387, %v2387
  %v2402 = vpack.c.b16 %v2388, %v2388
  %v2403 = vpack.c.b16 %v2389, %v2389
  %v2404 = vpack.c.b16 %v2390, %v2390
  %v2405 = vpack.c.b16 %v2391, %v2391
  %v2406 = vpack.c.b16 %v2392, %v2392
  %2407 = vrot.lane.b32.xlu0 %v2393, 48
  %v2408 = vpop.permute.xlu0 %2407
  %2409 = vrot.lane.b32.xlu0 %v2394, 48
  %v2410 = vpop.permute.xlu0 %2409
  %2411 = vrot.lane.b32.xlu0 %v2395, 48
  %v2412 = vpop.permute.xlu0 %2411
  %2413 = vrot.lane.b32.xlu0 %v2396, 48
  %v2414 = vpop.permute.xlu0 %2413
  %2415 = vrot.lane.b32.xlu0 %v2397, 48
  %v2416 = vpop.permute.xlu0 %2415
  %2417 = vrot.lane.b32.xlu0 %v2398, 48
  %v2418 = vpop.permute.xlu0 %2417
  %2419 = vrot.lane.b32.xlu0 %v2399, 48
  %v2420 = vpop.permute.xlu0 %2419
  %2421 = vrot.lane.b32.xlu0 %v2400, 48
  %v2422 = vpop.permute.xlu0 %2421
  %2423 = vrot.lane.b32.xlu0 %v2401, 48
  %v2424 = vpop.permute.xlu0 %2423
  %2425 = vrot.lane.b32.xlu0 %v2402, 48
  %v2426 = vpop.permute.xlu0 %2425
  %2427 = vrot.lane.b32.xlu0 %v2403, 48
  %v2428 = vpop.permute.xlu0 %2427
  %2429 = vrot.lane.b32.xlu0 %v2404, 48
  %v2430 = vpop.permute.xlu0 %2429
  %2431 = vrot.lane.b32.xlu0 %v2405, 48
  %v2432 = vpop.permute.xlu0 %2431
  %2433 = vrot.lane.b32.xlu0 %v2406, 48
  %v2434 = vpop.permute.xlu0 %2433
  %vm2449 = vcmask 519552
  %2450 = vst.msk [vmem:[%s2] sm:$0xf] %vm2449, %v2408
  %2451 = vst.msk [vmem:[%s2 + $0x4] sm:$0xf] %vm2449, %v2410
  %2452 = vst.msk [vmem:[%s2 + $0x8] sm:$0xf] %vm2449, %v2412
  %2453 = vst.msk [vmem:[%s2 + $0xc] sm:$0xf] %vm2449, %v2414
  %2454 = vst.msk [vmem:[%s2 + $0x10] sm:$0xf] %vm2449, %v2416
  %2455 = vst.msk [vmem:[%s2 + $0x14] sm:$0xf] %vm2449, %v2418
  %2456 = vst.msk [vmem:[%s2 + $0x18] sm:$0xf] %vm2449, %v2420
  %2457 = vst.msk [vmem:[%s2 + $0x1c] sm:$0xf] %vm2449, %v2422
  %2458 = vst.msk [vmem:[%s2 + $0x20] sm:$0xf] %vm2449, %v2424
  %2459 = vst.msk [vmem:[%s2 + $0x24] sm:$0xf] %vm2449, %v2426
  %2460 = vst.msk [vmem:[%s2 + $0x28] sm:$0xf] %vm2449, %v2428
  %2461 = vst.msk [vmem:[%s2 + $0x2c] sm:$0xf] %vm2449, %v2430
  %2462 = vst.msk [vmem:[%s2 + $0x30] sm:$0xf] %vm2449, %v2432
  %2463 = vst.msk [vmem:[%s2 + $0x34] sm:$0xf] %vm2449, %v2434
  // Predicated region
  $region10: #{swin_block_1d_forward.5} parent=0 // pred_check
    _
  $region11: #{swin_block_1d_forward.5} parent=0 // pred_check_branch
    %2465 = sbr.rel (0) target = $region13
  $region12: #{swin_block_1d_forward.5} parent=0 // pred_region
    _
  $region13: #{swin_block_1d_forward.5} parent=0 // pred_fallthru
    _
  // Predicated region
  $region14: #{swin_block_1d_forward.5} parent=0 // pred_check
    _
  $region15: #{swin_block_1d_forward.5} parent=0 // pred_check_branch
    %2467 = sbr.rel (0) target = $region17
  $region16: #{swin_block_1d_forward.5} parent=0 // pred_region
    _
  $region17: #{swin_block_1d_forward.5} parent=0 // pred_fallthru
    _

// kernel: swin_block_1d_forward.7
$region0: #{swin_block_1d_forward.7}
  #allocation0 [shape = 'u32[]', space=smem, size = 0x4, offset = 0x4, fixed_abs, tag = 'smem constant byte address 0x4 - core index']
  #allocation1 [shape = 'u32[144,128]{1,0:T(1,128)}', space=vmem, size = 0x12000, scoped, tag = 'internal scratch']
  %s0 = inlined_call_operand.vmem [shape: f32[100,64], index: 0, kind: input, shape index: {}]
  %s1 = inlined_call_operand.vmem [shape: f32[1,64], index: 1, kind: input, shape index: {}]
  %s2 = inlined_call_operand.vmem [shape: f32[1,64], index: 2, kind: input, shape index: {}]
  %s3 = inlined_call_operand.vmem [shape: bf16[64,256], index: 3, kind: input, shape index: {}]
  %s4 = inlined_call_operand.vmem [shape: f32[1,256], index: 4, kind: input, shape index: {}]
  %s5 = inlined_call_operand.vmem [shape: bf16[256,64], index: 5, kind: input, shape index: {}]
  %s6 = inlined_call_operand.vmem [shape: f32[1,64], index: 6, kind: input, shape index: {}]
  %s7 = inlined_call_operand.vmem [shape: f32[100,64], index: 7, kind: output, shape index: {}]
  %s8 = sld [smem:[#allocation0]]
  $region38: #{swin_block_1d_forward.7} parent=0
    _
  %s10 = ssub.s32 1, %s8
  %s11 = scalar_select 0, %s10, %s8
  // Predicated region
  $region2: #{swin_block_1d_forward.7} parent=0 // pred_check
    _
  $region3: #{swin_block_1d_forward.7} parent=0 // pred_check_branch
    %13 = sbr.rel (0) target = $region5
  $region4: #{swin_block_1d_forward.7} parent=0 // pred_region
    _
  $region5: #{swin_block_1d_forward.7} parent=0 // pred_fallthru
    _
  // Predicated region
  $region6: #{swin_block_1d_forward.7} parent=0 // pred_check
    _
  $region7: #{swin_block_1d_forward.7} parent=0 // pred_check_branch
    %15 = sbr.rel (0) target = $region9
  $region8: #{swin_block_1d_forward.7} parent=0 // pred_region
    _
  $region9: #{swin_block_1d_forward.7} parent=0 // pred_fallthru
    _
  // Predicated region
  $region10: #{swin_block_1d_forward.7} parent=0 // pred_check
    _
  $region11: #{swin_block_1d_forward.7} parent=0 // pred_check_branch
    %17 = sbr.rel (0) target = $region13
  $region12: #{swin_block_1d_forward.7} parent=0 // pred_region
    _
  $region13: #{swin_block_1d_forward.7} parent=0 // pred_fallthru
    _
  // Predicated region
  $region14: #{swin_block_1d_forward.7} parent=0 // pred_check
    _
  $region15: #{swin_block_1d_forward.7} parent=0 // pred_check_branch
    %19 = sbr.rel (0) target = $region17
  $region16: #{swin_block_1d_forward.7} parent=0 // pred_region
    _
  $region17: #{swin_block_1d_forward.7} parent=0 // pred_fallthru
    _
  // Predicated region
  $region18: #{swin_block_1d_forward.7} parent=0 // pred_check
    _
  $region19: #{swin_block_1d_forward.7} parent=0 // pred_check_branch
    %21 = sbr.rel (0) target = $region21
  $region20: #{swin_block_1d_forward.7} parent=0 // pred_region
    _
  $region21: #{swin_block_1d_forward.7} parent=0 // pred_fallthru
    _
  // Predicated region
  $region22: #{swin_block_1d_forward.7} parent=0 // pred_check
    _
  $region23: #{swin_block_1d_forward.7} parent=0 // pred_check_branch
    %23 = sbr.rel (0) target = $region25
  $region24: #{swin_block_1d_forward.7} parent=0 // pred_region
    _
  $region25: #{swin_block_1d_forward.7} parent=0 // pred_fallthru
    _
  // Predicated region
  $region26: #{swin_block_1d_forward.7} parent=0 // pred_check
    _
  $region27: #{swin_block_1d_forward.7} parent=0 // pred_check_branch
    %25 = sbr.rel (0) target = $region29
  $region28: #{swin_block_1d_forward.7} parent=0 // pred_region
    _
  $region29: #{swin_block_1d_forward.7} parent=0 // pred_fallthru
    _
  %v27 = vld [vmem:[%s0] sm:$0xff]
  %v28 = vld [vmem:[%s0 + $0x8] sm:$0xff]
  %v29 = vld [vmem:[%s0 + $0x10] sm:$0xff]
  %v30 = vld [vmem:[%s0 + $0x18] sm:$0xff]
  %v31 = vld [vmem:[%s0 + $0x20] sm:$0xff]
  %v32 = vld [vmem:[%s0 + $0x28] sm:$0xff]
  %v33 = vld [vmem:[%s0 + $0x30] sm:$0xff]
  %v34 = vld [vmem:[%s0 + $0x38] sm:$0xff]
  %v35 = vld [vmem:[%s0 + $0x40] sm:$0xff]
  %v36 = vld [vmem:[%s0 + $0x48] sm:$0xff]
  %v37 = vld [vmem:[%s0 + $0x50] sm:$0xff]
  %v38 = vld [vmem:[%s0 + $0x58] sm:$0xff]
  %v39 = vld [vmem:[%s0 + $0x60] sm:$0xf]
  %vm40 = vcmask 523264
  %v41 = vsel %vm40, %v27, 0.0
  %42 = vadd.xlane.f32.xlu0 %v41
  %v43 = vpop.xlane.xlu0 %42
  %v44 = vsel %vm40, %v28, 0.0
  %45 = vadd.xlane.f32.xlu0 %v44
  %v46 = vpop.xlane.xlu0 %45
  %v47 = vsel %vm40, %v29, 0.0
  %48 = vadd.xlane.f32.xlu0 %v47
  %v49 = vpop.xlane.xlu0 %48
  %v50 = vsel %vm40, %v30, 0.0
  %51 = vadd.xlane.f32.xlu0 %v50
  %v52 = vpop.xlane.xlu0 %51
  %v53 = vsel %vm40, %v31, 0.0
  %54 = vadd.xlane.f32.xlu0 %v53
  %v55 = vpop.xlane.xlu0 %54
  %v56 = vsel %vm40, %v32, 0.0
  %57 = vadd.xlane.f32.xlu0 %v56
  %v58 = vpop.xlane.xlu0 %57
  %v59 = vsel %vm40, %v33, 0.0
  %60 = vadd.xlane.f32.xlu0 %v59
  %v61 = vpop.xlane.xlu0 %60
  %v62 = vsel %vm40, %v34, 0.0
  %63 = vadd.xlane.f32.xlu0 %v62
  %v64 = vpop.xlane.xlu0 %63
  %v65 = vsel %vm40, %v35, 0.0
  %66 = vadd.xlane.f32.xlu0 %v65
  %v67 = vpop.xlane.xlu0 %66
  %v68 = vsel %vm40, %v36, 0.0
  %69 = vadd.xlane.f32.xlu0 %v68
  %v70 = vpop.xlane.xlu0 %69
  %v71 = vsel %vm40, %v37, 0.0
  %72 = vadd.xlane.f32.xlu0 %v71
  %v73 = vpop.xlane.xlu0 %72
  %v74 = vsel %vm40, %v38, 0.0
  %75 = vadd.xlane.f32.xlu0 %v74
  %v76 = vpop.xlane.xlu0 %75
  %vm77 = vcmask 519168
  %v78 = vsel %vm77, %v39, 0.0
  %79 = vadd.xlane.f32.xlu0 %v78
  %v80 = vpop.xlane.xlu0 %79
  %v81 = vrcp.pop 64.0
  %v82 = vmul.f32 %v43, %v81
  %v83 = vmul.f32 %v46, %v81
  %v84 = vmul.f32 %v49, %v81
  %v85 = vmul.f32 %v52, %v81
  %v86 = vmul.f32 %v55, %v81
  %v87 = vmul.f32 %v58, %v81
  %v88 = vmul.f32 %v61, %v81
  %v89 = vmul.f32 %v64, %v81
  %v90 = vmul.f32 %v67, %v81
  %v91 = vmul.f32 %v70, %v81
  %v92 = vmul.f32 %v73, %v81
  %v93 = vmul.f32 %v76, %v81
  %v94 = vmul.f32 %v80, %v81
  %v95 = vsub.f32 %v27, %v82
  %v96 = vsub.f32 %v28, %v83
  %v97 = vsub.f32 %v29, %v84
  %v98 = vsub.f32 %v30, %v85
  %v99 = vsub.f32 %v31, %v86
  %v100 = vsub.f32 %v32, %v87
  %v101 = vsub.f32 %v33, %v88
  %v102 = vsub.f32 %v34, %v89
  %v103 = vsub.f32 %v35, %v90
  %v104 = vsub.f32 %v36, %v91
  %v105 = vsub.f32 %v37, %v92
  %v106 = vsub.f32 %v38, %v93
  %v107 = vsub.f32 %v39, %v94
  %v108 = vmul.f32 %v95, %v95
  %v109 = vmul.f32 %v96, %v96
  %v110 = vmul.f32 %v97, %v97
  %v111 = vmul.f32 %v98, %v98
  %v112 = vmul.f32 %v99, %v99
  %v113 = vmul.f32 %v100, %v100
  %v114 = vmul.f32 %v101, %v101
  %v115 = vmul.f32 %v102, %v102
  %v116 = vmul.f32 %v103, %v103
  %v117 = vmul.f32 %v104, %v104
  %v118 = vmul.f32 %v105, %v105
  %v119 = vmul.f32 %v106, %v106
  %v120 = vmul.f32 %v107, %v107
  %v121 = vsel %vm40, %v108, 0.0
  %122 = vadd.xlane.f32.xlu0 %v121
  %v123 = vpop.xlane.xlu0 %122
  %v124 = vsel %vm40, %v109, 0.0
  %125 = vadd.xlane.f32.xlu0 %v124
  %v126 = vpop.xlane.xlu0 %125
  %v127 = vsel %vm40, %v110, 0.0
  %128 = vadd.xlane.f32.xlu0 %v127
  %v129 = vpop.xlane.xlu0 %128
  %v130 = vsel %vm40, %v111, 0.0
  %131 = vadd.xlane.f32.xlu0 %v130
  %v132 = vpop.xlane.xlu0 %131
  %v133 = vsel %vm40, %v112, 0.0
  %134 = vadd.xlane.f32.xlu0 %v133
  %v135 = vpop.xlane.xlu0 %134
  %v136 = vsel %vm40, %v113, 0.0
  %137 = vadd.xlane.f32.xlu0 %v136
  %v138 = vpop.xlane.xlu0 %137
  %v139 = vsel %vm40, %v114, 0.0
  %140 = vadd.xlane.f32.xlu0 %v139
  %v141 = vpop.xlane.xlu0 %140
  %v142 = vsel %vm40, %v115, 0.0
  %143 = vadd.xlane.f32.xlu0 %v142
  %v144 = vpop.xlane.xlu0 %143
  %v145 = vsel %vm40, %v116, 0.0
  %146 = vadd.xlane.f32.xlu0 %v145
  %v147 = vpop.xlane.xlu0 %146
  %v148 = vsel %vm40, %v117, 0.0
  %149 = vadd.xlane.f32.xlu0 %v148
  %v150 = vpop.xlane.xlu0 %149
  %v151 = vsel %vm40, %v118, 0.0
  %152 = vadd.xlane.f32.xlu0 %v151
  %v153 = vpop.xlane.xlu0 %152
  %v154 = vsel %vm40, %v119, 0.0
  %155 = vadd.xlane.f32.xlu0 %v154
  %v156 = vpop.xlane.xlu0 %155
  %v157 = vsel %vm77, %v120, 0.0
  %158 = vadd.xlane.f32.xlu0 %v157
  %v159 = vpop.xlane.xlu0 %158
  %v160 = vmul.f32 %v123, %v81
  %v161 = vmul.f32 %v126, %v81
  %v162 = vmul.f32 %v129, %v81
  %v163 = vmul.f32 %v132, %v81
  %v164 = vmul.f32 %v135, %v81
  %v165 = vmul.f32 %v138, %v81
  %v166 = vmul.f32 %v141, %v81
  %v167 = vmul.f32 %v144, %v81
  %v168 = vmul.f32 %v147, %v81
  %v169 = vmul.f32 %v150, %v81
  %v170 = vmul.f32 %v153, %v81
  %v171 = vmul.f32 %v156, %v81
  %v172 = vmul.f32 %v159, %v81
  %v173 = vadd.f32 %v160, 1e-05
  %v174 = vadd.f32 %v161, 1e-05
  %v175 = vadd.f32 %v162, 1e-05
  %v176 = vadd.f32 %v163, 1e-05
  %v177 = vadd.f32 %v164, 1e-05
  %v178 = vadd.f32 %v165, 1e-05
  %v179 = vadd.f32 %v166, 1e-05
  %v180 = vadd.f32 %v167, 1e-05
  %v181 = vadd.f32 %v168, 1e-05
  %v182 = vadd.f32 %v169, 1e-05
  %v183 = vadd.f32 %v170, 1e-05
  %v184 = vadd.f32 %v171, 1e-05
  %v185 = vadd.f32 %v172, 1e-05
  %v186 = vrsqrt.pop %v173
  %v187 = vrsqrt.pop %v174
  %v188 = vrsqrt.pop %v175
  %v189 = vrsqrt.pop %v176
  %v190 = vrsqrt.pop %v177
  %v191 = vrsqrt.pop %v178
  %v192 = vrsqrt.pop %v179
  %v193 = vrsqrt.pop %v180
  %v194 = vrsqrt.pop %v181
  %v195 = vrsqrt.pop %v182
  %v196 = vrsqrt.pop %v183
  %v197 = vrsqrt.pop %v184
  %v198 = vrsqrt.pop %v185
  %v199 = vmul.f32 %v95, %v186
  %v200 = vmul.f32 %v96, %v187
  %v201 = vmul.f32 %v97, %v188
  %v202 = vmul.f32 %v98, %v189
  %v203 = vmul.f32 %v99, %v190
  %v204 = vmul.f32 %v100, %v191
  %v205 = vmul.f32 %v101, %v192
  %v206 = vmul.f32 %v102, %v193
  %v207 = vmul.f32 %v103, %v194
  %v208 = vmul.f32 %v104, %v195
  %v209 = vmul.f32 %v105, %v196
  %v210 = vmul.f32 %v106, %v197
  %v211 = vmul.f32 %v107, %v198
  %v212 = vld [vmem:[%s1] sm:$0x1]
  %v214 = vlaneseq
  %v215 = vshrl.u32 %v214, 7
  %v216 = vsub.s32 0, %v215
  %v217 = vrot.slane %v212, %v216
  %v219 = vmul.f32 %v199, %v217
  %v220 = vmul.f32 %v200, %v217
  %v221 = vmul.f32 %v201, %v217
  %v222 = vmul.f32 %v202, %v217
  %v223 = vmul.f32 %v203, %v217
  %v224 = vmul.f32 %v204, %v217
  %v225 = vmul.f32 %v205, %v217
  %v226 = vmul.f32 %v206, %v217
  %v227 = vmul.f32 %v207, %v217
  %v228 = vmul.f32 %v208, %v217
  %v229 = vmul.f32 %v209, %v217
  %v230 = vmul.f32 %v210, %v217
  %v231 = vmul.f32 %v211, %v217
  %v232 = vld [vmem:[%s2] sm:$0x1]
  %v234 = vlaneseq
  %v235 = vshrl.u32 %v234, 7
  %v236 = vsub.s32 0, %v235
  %v237 = vrot.slane %v232, %v236
  %v239 = vadd.f32 %v219, %v237
  %v240 = vadd.f32 %v220, %v237
  %v241 = vadd.f32 %v221, %v237
  %v242 = vadd.f32 %v222, %v237
  %v243 = vadd.f32 %v223, %v237
  %v244 = vadd.f32 %v224, %v237
  %v245 = vadd.f32 %v225, %v237
  %v246 = vadd.f32 %v226, %v237
  %v247 = vadd.f32 %v227, %v237
  %v248 = vadd.f32 %v228, %v237
  %v249 = vadd.f32 %v229, %v237
  %v250 = vadd.f32 %v230, %v237
  %v251 = vadd.f32 %v231, %v237
  %v252 = vpack.c.bf16 %v240, %v239
  %v253 = vpack.c.bf16 %v242, %v241
  %v254 = vpack.c.bf16 %v244, %v243
  %v255 = vpack.c.bf16 %v246, %v245
  %v256 = vpack.c.bf16 %v248, %v247
  %v257 = vpack.c.bf16 %v250, %v249
  %v258 = vpack.c.bf16 %v251, %v251
  %v259 = vld [vmem:[%s3] sm:$0xff]
  %v260 = vld [vmem:[%s3 + $0x8] sm:$0xff]
  %v261 = vld [vmem:[%s3 + $0x10] sm:$0xff]
  %v262 = vld [vmem:[%s3 + $0x18] sm:$0xff]
  %v263 = vld [vmem:[%s3 + $0x20] sm:$0xff]
  %v264 = vld [vmem:[%s3 + $0x28] sm:$0xff]
  %v265 = vld [vmem:[%s3 + $0x30] sm:$0xff]
  %v266 = vld [vmem:[%s3 + $0x38] sm:$0xff]
  %v267 = vld [vmem:[%s4] sm:$0x3]
  %v269 = vlaneseq
  %v270 = vshrl.u32 %v269, 7
  %v271 = vsub.s32 0, %v270
  %v272 = vrot.slane %v267, %v271
  %v273 = vlaneseq
  %v274 = vshrl.u32 %v273, 7
  %v275 = vsub.s32 1, %v274
  %v276 = vrot.slane %v267, %v275
  %v287 = vunpack.c.l.b16 %v259
  %v288 = vunpack.c.h.b16 %v259
  %v289 = vunpack.c.l.b16 %v260
  %v290 = vunpack.c.h.b16 %v260
  %v291 = vunpack.c.l.b16 %v261
  %v292 = vunpack.c.h.b16 %v261
  %v293 = vunpack.c.l.b16 %v262
  %v294 = vunpack.c.h.b16 %v262
  %v295 = vunpack.c.l.b16 %v263
  %v296 = vunpack.c.h.b16 %v263
  %v297 = vunpack.c.l.b16 %v264
  %v298 = vunpack.c.h.b16 %v264
  %v299 = vunpack.c.l.b16 %v265
  %v300 = vunpack.c.h.b16 %v265
  %v301 = vunpack.c.l.b16 %v266
  %v302 = vunpack.c.h.b16 %v266
  %v303 = vpack.c.b16 %v289, %v287
  %v304 = vpack.c.b16 %v290, %v288
  %v305 = vpack.c.b16 %v293, %v291
  %v306 = vpack.c.b16 %v294, %v292
  %v307 = vpack.c.b16 %v297, %v295
  %v308 = vpack.c.b16 %v298, %v296
  %v309 = vpack.c.b16 %v301, %v299
  %v310 = vpack.c.b16 %v302, %v300
  %v320 = vsel %vm40, %v252, 0
  %v323 = vsel %vm40, %v253, 0
  %v326 = vsel %vm40, %v254, 0
  %v329 = vsel %vm40, %v255, 0
  %v332 = vsel %vm40, %v256, 0
  %v335 = vsel %vm40, %v257, 0
  %v338 = vsel %vm40, %v258, 0
  %340 = vmatprep.subr.bf16.mxu0 %v304
  %341 = vmatpush1.bf16.msra.mxu0 %v303
  %342 = vmatprep.subr.bf16.mxu0 %v306
  %343 = vmatpush1.bf16.msra.mxu0 %v305
  %344 = vmatprep.subr.bf16.mxu0 %v308
  %345 = vmatpush1.bf16.msra.mxu0 %v307
  %346 = vmatprep.subr.bf16.mxu0 %v310
  %347 = vmatpush1.bf16.msra.mxu0 %v309
  %348 = vmatprep.subr.bf16.mxu0 0
  %349 = vmatpush1.bf16.msra.mxu0 0
  %350 = vmatprep.subr.bf16.mxu0 0
  %351 = vmatpush1.bf16.msra.mxu0 0
  %352 = vmatprep.subr.bf16.mxu0 0
  %353 = vmatpush1.bf16.msra.mxu0 0
  %354 = vmatprep.subr.bf16.mxu0 0
  %355 = vmatpush1.bf16.msra.mxu0 0
  %356 = vmatprep.subr.bf16.mxu0 0
  %357 = vmatpush1.bf16.msra.mxu0 0
  %358 = vmatprep.subr.bf16.mxu0 0
  %359 = vmatpush1.bf16.msra.mxu0 0
  %360 = vmatprep.subr.bf16.mxu0 0
  %361 = vmatpush1.bf16.msra.mxu0 0
  %362 = vmatprep.subr.bf16.mxu0 0
  %363 = vmatpush1.bf16.msra.mxu0 0
  %364 = vmatprep.subr.bf16.mxu0 0
  %365 = vmatpush1.bf16.msra.mxu0 0
  %366 = vmatprep.subr.bf16.mxu0 0
  %367 = vmatpush1.bf16.msra.mxu0 0
  %368 = vmatprep.subr.bf16.mxu0 0
  %369 = vmatpush1.bf16.msra.mxu0 0
  %370 = vmatprep.subr.bf16.mxu0 0
  %371 = vmatpush1.bf16.msra.mxu0 0
  %372 = vmatprep.mubr.bf16.mxu0 0
  %373 = vmatmul.mubr.bf16.gmra.mrb[0].mxu0 %v320
  %v374 = vpop.f32.mrb[0].mxu0
  %v375 = vadd.f32 %v272, %v374
  %v376 = vpop.f32.mrb[0].mxu0
  %v377 = vadd.f32 %v276, %v376
  %v378 = vpop.f32.mrb[0].mxu0
  %v379 = vadd.f32 %v272, %v378
  %v380 = vpop.f32.mrb[0].mxu0
  %v381 = vadd.f32 %v276, %v380
  %382 = vmatprep.mubr.bf16.mxu0 0
  %383 = vmatmul.mubr.bf16.gmra.mrb[0].mxu0 %v323
  %v384 = vpop.f32.mrb[0].mxu0
  %v385 = vadd.f32 %v272, %v384
  %v386 = vpop.f32.mrb[0].mxu0
  %v387 = vadd.f32 %v276, %v386
  %v388 = vpop.f32.mrb[0].mxu0
  %v389 = vadd.f32 %v272, %v388
  %v390 = vpop.f32.mrb[0].mxu0
  %v391 = vadd.f32 %v276, %v390
  %392 = vmatprep.mubr.bf16.mxu0 0
  %393 = vmatmul.mubr.bf16.gmra.mrb[0].mxu0 %v326
  %v394 = vpop.f32.mrb[0].mxu0
  %v395 = vadd.f32 %v272, %v394
  %v396 = vpop.f32.mrb[0].mxu0
  %v397 = vadd.f32 %v276, %v396
  %v398 = vpop.f32.mrb[0].mxu0
  %v399 = vadd.f32 %v272, %v398
  %v400 = vpop.f32.mrb[0].mxu0
  %v401 = vadd.f32 %v276, %v400
  %402 = vmatprep.mubr.bf16.mxu0 0
  %403 = vmatmul.mubr.bf16.gmra.mrb[0].mxu0 %v329
  %v404 = vpop.f32.mrb[0].mxu0
  %v405 = vadd.f32 %v272, %v404
  %v406 = vpop.f32.mrb[0].mxu0
  %v407 = vadd.f32 %v276, %v406
  %v408 = vpop.f32.mrb[0].mxu0
  %v409 = vadd.f32 %v272, %v408
  %v410 = vpop.f32.mrb[0].mxu0
  %v411 = vadd.f32 %v276, %v410
  %412 = vmatprep.mubr.bf16.mxu0 0
  %413 = vmatmul.mubr.bf16.gmra.mrb[0].mxu0 %v332
  %v414 = vpop.f32.mrb[0].mxu0
  %v415 = vadd.f32 %v272, %v414
  %v416 = vpop.f32.mrb[0].mxu0
  %v417 = vadd.f32 %v276, %v416
  %v418 = vpop.f32.mrb[0].mxu0
  %v419 = vadd.f32 %v272, %v418
  %v420 = vpop.f32.mrb[0].mxu0
  %v421 = vadd.f32 %v276, %v420
  %422 = vmatprep.mubr.bf16.mxu0 0
  %423 = vmatmul.mubr.bf16.gmra.mrb[0].mxu0 %v335
  %v424 = vpop.f32.mrb[0].mxu0
  %v425 = vadd.f32 %v272, %v424
  %v426 = vpop.f32.mrb[0].mxu0
  %v427 = vadd.f32 %v276, %v426
  %v428 = vpop.f32.mrb[0].mxu0
  %v429 = vadd.f32 %v272, %v428
  %v430 = vpop.f32.mrb[0].mxu0
  %v431 = vadd.f32 %v276, %v430
  %432 = vmatprep.mubr.bf16.mxu0 0
  %433 = vmatmul.mubr.bf16.gmra.mrb[0].mxu0 %v338
  %v434 = vpop.f32.mrb[0].mxu0
  %v435 = vadd.f32 %v272, %v434
  %v436 = vpop.f32.mrb[0].mxu0
  %v437 = vadd.f32 %v276, %v436
  %v438 = vpop.f32.mrb[0].mxu0
  %v439 = vpop.f32.mrb[0].mxu0
  %440 = vdwg.mxu0
  %v441 = vmul.f32 %v375, 0.5
  %v442 = vmul.f32 %v377, 0.5
  %v443 = vmul.f32 %v379, 0.5
  %v444 = vmul.f32 %v381, 0.5
  %v445 = vmul.f32 %v385, 0.5
  %v446 = vmul.f32 %v387, 0.5
  %v447 = vmul.f32 %v389, 0.5
  %v448 = vmul.f32 %v391, 0.5
  %v449 = vmul.f32 %v395, 0.5
  %v450 = vmul.f32 %v397, 0.5
  %v451 = vmul.f32 %v399, 0.5
  %v452 = vmul.f32 %v401, 0.5
  %v453 = vmul.f32 %v405, 0.5
  %v454 = vmul.f32 %v407, 0.5
  %v455 = vmul.f32 %v409, 0.5
  %v456 = vmul.f32 %v411, 0.5
  %v457 = vmul.f32 %v415, 0.5
  %v458 = vmul.f32 %v417, 0.5
  %v459 = vmul.f32 %v419, 0.5
  %v460 = vmul.f32 %v421, 0.5
  %v461 = vmul.f32 %v425, 0.5
  %v462 = vmul.f32 %v427, 0.5
  %v463 = vmul.f32 %v429, 0.5
  %v464 = vmul.f32 %v431, 0.5
  %v465 = vmul.f32 %v435, 0.5
  %v466 = vmul.f32 %v437, 0.5
  %v467 = vmul.f32 %v375, 0.70710677
  %v468 = vmul.f32 %v377, 0.70710677
  %v469 = vmul.f32 %v379, 0.70710677
  %v470 = vmul.f32 %v381, 0.70710677
  %v471 = vmul.f32 %v385, 0.70710677
  %v472 = vmul.f32 %v387, 0.70710677
  %v473 = vmul.f32 %v389, 0.70710677
  %v474 = vmul.f32 %v391, 0.70710677
  %v475 = vmul.f32 %v395, 0.70710677
  %v476 = vmul.f32 %v397, 0.70710677
  %v477 = vmul.f32 %v399, 0.70710677
  %v478 = vmul.f32 %v401, 0.70710677
  %v479 = vmul.f32 %v405, 0.70710677
  %v480 = vmul.f32 %v407, 0.70710677
  %v481 = vmul.f32 %v409, 0.70710677
  %v482 = vmul.f32 %v411, 0.70710677
  %v483 = vmul.f32 %v415, 0.70710677
  %v484 = vmul.f32 %v417, 0.70710677
  %v485 = vmul.f32 %v419, 0.70710677
  %v486 = vmul.f32 %v421, 0.70710677
  %v487 = vmul.f32 %v425, 0.70710677
  %v488 = vmul.f32 %v427, 0.70710677
  %v489 = vmul.f32 %v429, 0.70710677
  %v490 = vmul.f32 %v431, 0.70710677
  %v491 = vmul.f32 %v435, 0.70710677
  %v492 = vmul.f32 %v437, 0.70710677
  %v493 = vand.u32 2147483647, %v467
  %v494 = vand.u32 2147483647, %v468
  %v495 = vand.u32 2147483647, %v469
  %v496 = vand.u32 2147483647, %v470
  %v497 = vand.u32 2147483647, %v471
  %v498 = vand.u32 2147483647, %v472
  %v499 = vand.u32 2147483647, %v473
  %v500 = vand.u32 2147483647, %v474
  %v501 = vand.u32 2147483647, %v475
  %v502 = vand.u32 2147483647, %v476
  %v503 = vand.u32 2147483647, %v477
  %v504 = vand.u32 2147483647, %v478
  %v505 = vand.u32 2147483647, %v479
  %v506 = vand.u32 2147483647, %v480
  %v507 = vand.u32 2147483647, %v481
  %v508 = vand.u32 2147483647, %v482
  %v509 = vand.u32 2147483647, %v483
  %v510 = vand.u32 2147483647, %v484
  %v511 = vand.u32 2147483647, %v485
  %v512 = vand.u32 2147483647, %v486
  %v513 = vand.u32 2147483647, %v487
  %v514 = vand.u32 2147483647, %v488
  %v515 = vand.u32 2147483647, %v489
  %v516 = vand.u32 2147483647, %v490
  %v517 = vand.u32 2147483647, %v491
  %v518 = vand.u32 2147483647, %v492
  %v519 = vmul.f32 %v493, 0.3275911
  %v520 = vmul.f32 %v494, 0.3275911
  %v521 = vmul.f32 %v495, 0.3275911
  %v522 = vmul.f32 %v496, 0.3275911
  %v523 = vmul.f32 %v497, 0.3275911
  %v524 = vmul.f32 %v498, 0.3275911
  %v525 = vmul.f32 %v499, 0.3275911
  %v526 = vmul.f32 %v500, 0.3275911
  %v527 = vmul.f32 %v501, 0.3275911
  %v528 = vmul.f32 %v502, 0.3275911
  %v529 = vmul.f32 %v503, 0.3275911
  %v530 = vmul.f32 %v504, 0.3275911
  %v531 = vmul.f32 %v505, 0.3275911
  %v532 = vmul.f32 %v506, 0.3275911
  %v533 = vmul.f32 %v507, 0.3275911
  %v534 = vmul.f32 %v508, 0.3275911
  %v535 = vmul.f32 %v509, 0.3275911
  %v536 = vmul.f32 %v510, 0.3275911
  %v537 = vmul.f32 %v511, 0.3275911
  %v538 = vmul.f32 %v512, 0.3275911
  %v539 = vmul.f32 %v513, 0.3275911
  %v540 = vmul.f32 %v514, 0.3275911
  %v541 = vmul.f32 %v515, 0.3275911
  %v542 = vmul.f32 %v516, 0.3275911
  %v543 = vmul.f32 %v517, 0.3275911
  %v544 = vmul.f32 %v518, 0.3275911
  %v545 = vadd.f32 %v519, 1.0
  %v546 = vadd.f32 %v520, 1.0
  %v547 = vadd.f32 %v521, 1.0
  %v548 = vadd.f32 %v522, 1.0
  %v549 = vadd.f32 %v523, 1.0
  %v550 = vadd.f32 %v524, 1.0
  %v551 = vadd.f32 %v525, 1.0
  %v552 = vadd.f32 %v526, 1.0
  %v553 = vadd.f32 %v527, 1.0
  %v554 = vadd.f32 %v528, 1.0
  %v555 = vadd.f32 %v529, 1.0
  %v556 = vadd.f32 %v530, 1.0
  %v557 = vadd.f32 %v531, 1.0
  %v558 = vadd.f32 %v532, 1.0
  %v559 = vadd.f32 %v533, 1.0
  %v560 = vadd.f32 %v534, 1.0
  %v561 = vadd.f32 %v535, 1.0
  %v562 = vadd.f32 %v536, 1.0
  %v563 = vadd.f32 %v537, 1.0
  %v564 = vadd.f32 %v538, 1.0
  %v565 = vadd.f32 %v539, 1.0
  %v566 = vadd.f32 %v540, 1.0
  %v567 = vadd.f32 %v541, 1.0
  %v568 = vadd.f32 %v542, 1.0
  %v569 = vadd.f32 %v543, 1.0
  %v570 = vadd.f32 %v544, 1.0
  %v571 = vrcp.pop %v545
  %v572 = vmul.f32 1.0, %v571
  %v573 = vrcp.pop %v546
  %v574 = vmul.f32 1.0, %v573
  %v575 = vrcp.pop %v547
  %v576 = vmul.f32 1.0, %v575
  %v577 = vrcp.pop %v548
  %v578 = vmul.f32 1.0, %v577
  %v579 = vrcp.pop %v549
  %v580 = vmul.f32 1.0, %v579
  %v581 = vrcp.pop %v550
  %v582 = vmul.f32 1.0, %v581
  %v583 = vrcp.pop %v551
  %v584 = vmul.f32 1.0, %v583
  %v585 = vrcp.pop %v552
  %v586 = vmul.f32 1.0, %v585
  %v587 = vrcp.pop %v553
  %v588 = vmul.f32 1.0, %v587
  %v589 = vrcp.pop %v554
  %v590 = vmul.f32 1.0, %v589
  %v591 = vrcp.pop %v555
  %v592 = vmul.f32 1.0, %v591
  %v593 = vrcp.pop %v556
  %v594 = vmul.f32 1.0, %v593
  %v595 = vrcp.pop %v557
  %v596 = vmul.f32 1.0, %v595
  %v597 = vrcp.pop %v558
  %v598 = vmul.f32 1.0, %v597
  %v599 = vrcp.pop %v559
  %v600 = vmul.f32 1.0, %v599
  %v601 = vrcp.pop %v560
  %v602 = vmul.f32 1.0, %v601
  %v603 = vrcp.pop %v561
  %v604 = vmul.f32 1.0, %v603
  %v605 = vrcp.pop %v562
  %v606 = vmul.f32 1.0, %v605
  %v607 = vrcp.pop %v563
  %v608 = vmul.f32 1.0, %v607
  %v609 = vrcp.pop %v564
  %v610 = vmul.f32 1.0, %v609
  %v611 = vrcp.pop %v565
  %v612 = vmul.f32 1.0, %v611
  %v613 = vrcp.pop %v566
  %v614 = vmul.f32 1.0, %v613
  %v615 = vrcp.pop %v567
  %v616 = vmul.f32 1.0, %v615
  %v617 = vrcp.pop %v568
  %v618 = vmul.f32 1.0, %v617
  %v619 = vrcp.pop %v569
  %v620 = vmul.f32 1.0, %v619
  %v621 = vrcp.pop %v570
  %v622 = vmul.f32 1.0, %v621
  %v623 = vmul.f32 %v572, 1.0614054
  %v624 = vmul.f32 %v574, 1.0614054
  %v625 = vmul.f32 %v576, 1.0614054
  %v626 = vmul.f32 %v578, 1.0614054
  %v627 = vmul.f32 %v580, 1.0614054
  %v628 = vmul.f32 %v582, 1.0614054
  %v629 = vmul.f32 %v584, 1.0614054
  %v630 = vmul.f32 %v586, 1.0614054
  %v631 = vmul.f32 %v588, 1.0614054
  %v632 = vmul.f32 %v590, 1.0614054
  %v633 = vmul.f32 %v592, 1.0614054
  %v634 = vmul.f32 %v594, 1.0614054
  %v635 = vmul.f32 %v596, 1.0614054
  %v636 = vmul.f32 %v598, 1.0614054
  %v637 = vmul.f32 %v600, 1.0614054
  %v638 = vmul.f32 %v602, 1.0614054
  %v639 = vmul.f32 %v604, 1.0614054
  %v640 = vmul.f32 %v606, 1.0614054
  %v641 = vmul.f32 %v608, 1.0614054
  %v642 = vmul.f32 %v610, 1.0614054
  %v643 = vmul.f32 %v612, 1.0614054
  %v644 = vmul.f32 %v614, 1.0614054
  %v645 = vmul.f32 %v616, 1.0614054
  %v646 = vmul.f32 %v618, 1.0614054
  %v647 = vmul.f32 %v620, 1.0614054
  %v648 = vmul.f32 %v622, 1.0614054
  %v649 = vadd.f32 %v623, -1.4531521
  %v650 = vadd.f32 %v624, -1.4531521
  %v651 = vadd.f32 %v625, -1.4531521
  %v652 = vadd.f32 %v626, -1.4531521
  %v653 = vadd.f32 %v627, -1.4531521
  %v654 = vadd.f32 %v628, -1.4531521
  %v655 = vadd.f32 %v629, -1.4531521
  %v656 = vadd.f32 %v630, -1.4531521
  %v657 = vadd.f32 %v631, -1.4531521
  %v658 = vadd.f32 %v632, -1.4531521
  %v659 = vadd.f32 %v633, -1.4531521
  %v660 = vadd.f32 %v634, -1.4531521
  %v661 = vadd.f32 %v635, -1.4531521
  %v662 = vadd.f32 %v636, -1.4531521
  %v663 = vadd.f32 %v637, -1.4531521
  %v664 = vadd.f32 %v638, -1.4531521
  %v665 = vadd.f32 %v639, -1.4531521
  %v666 = vadd.f32 %v640, -1.4531521
  %v667 = vadd.f32 %v641, -1.4531521
  %v668 = vadd.f32 %v642, -1.4531521
  %v669 = vadd.f32 %v643, -1.4531521
  %v670 = vadd.f32 %v644, -1.4531521
  %v671 = vadd.f32 %v645, -1.4531521
  %v672 = vadd.f32 %v646, -1.4531521
  %v673 = vadd.f32 %v647, -1.4531521
  %v674 = vadd.f32 %v648, -1.4531521
  %v675 = vmul.f32 %v649, %v572
  %v676 = vmul.f32 %v650, %v574
  %v677 = vmul.f32 %v651, %v576
  %v678 = vmul.f32 %v652, %v578
  %v679 = vmul.f32 %v653, %v580
  %v680 = vmul.f32 %v654, %v582
  %v681 = vmul.f32 %v655, %v584
  %v682 = vmul.f32 %v656, %v586
  %v683 = vmul.f32 %v657, %v588
  %v684 = vmul.f32 %v658, %v590
  %v685 = vmul.f32 %v659, %v592
  %v686 = vmul.f32 %v660, %v594
  %v687 = vmul.f32 %v661, %v596
  %v688 = vmul.f32 %v662, %v598
  %v689 = vmul.f32 %v663, %v600
  %v690 = vmul.f32 %v664, %v602
  %v691 = vmul.f32 %v665, %v604
  %v692 = vmul.f32 %v666, %v606
  %v693 = vmul.f32 %v667, %v608
  %v694 = vmul.f32 %v668, %v610
  %v695 = vmul.f32 %v669, %v612
  %v696 = vmul.f32 %v670, %v614
  %v697 = vmul.f32 %v671, %v616
  %v698 = vmul.f32 %v672, %v618
  %v699 = vmul.f32 %v673, %v620
  %v700 = vmul.f32 %v674, %v622
  %v701 = vadd.f32 %v675, 1.4214138
  %v702 = vadd.f32 %v676, 1.4214138
  %v703 = vadd.f32 %v677, 1.4214138
  %v704 = vadd.f32 %v678, 1.4214138
  %v705 = vadd.f32 %v679, 1.4214138
  %v706 = vadd.f32 %v680, 1.4214138
  %v707 = vadd.f32 %v681, 1.4214138
  %v708 = vadd.f32 %v682, 1.4214138
  %v709 = vadd.f32 %v683, 1.4214138
  %v710 = vadd.f32 %v684, 1.4214138
  %v711 = vadd.f32 %v685, 1.4214138
  %v712 = vadd.f32 %v686, 1.4214138
  %v713 = vadd.f32 %v687, 1.4214138
  %v714 = vadd.f32 %v688, 1.4214138
  %v715 = vadd.f32 %v689, 1.4214138
  %v716 = vadd.f32 %v690, 1.4214138
  %v717 = vadd.f32 %v691, 1.4214138
  %v718 = vadd.f32 %v692, 1.4214138
  %v719 = vadd.f32 %v693, 1.4214138
  %v720 = vadd.f32 %v694, 1.4214138
  %v721 = vadd.f32 %v695, 1.4214138
  %v722 = vadd.f32 %v696, 1.4214138
  %v723 = vadd.f32 %v697, 1.4214138
  %v724 = vadd.f32 %v698, 1.4214138
  %v725 = vadd.f32 %v699, 1.4214138
  %v726 = vadd.f32 %v700, 1.4214138
  %v727 = vmul.f32 %v701, %v572
  %v728 = vmul.f32 %v702, %v574
  %v729 = vmul.f32 %v703, %v576
  %v730 = vmul.f32 %v704, %v578
  %v731 = vmul.f32 %v705, %v580
  %v732 = vmul.f32 %v706, %v582
  %v733 = vmul.f32 %v707, %v584
  %v734 = vmul.f32 %v708, %v586
  %v735 = vmul.f32 %v709, %v588
  %v736 = vmul.f32 %v710, %v590
  %v737 = vmul.f32 %v711, %v592
  %v738 = vmul.f32 %v712, %v594
  %v739 = vmul.f32 %v713, %v596
  %v740 = vmul.f32 %v714, %v598
  %v741 = vmul.f32 %v715, %v600
  %v742 = vmul.f32 %v716, %v602
  %v743 = vmul.f32 %v717, %v604
  %v744 = vmul.f32 %v718, %v606
  %v745 = vmul.f32 %v719, %v608
  %v746 = vmul.f32 %v720, %v610
  %v747 = vmul.f32 %v721, %v612
  %v748 = vmul.f32 %v722, %v614
  %v749 = vmul.f32 %v723, %v616
  %v750 = vmul.f32 %v724, %v618
  %v751 = vmul.f32 %v725, %v620
  %v752 = vmul.f32 %v726, %v622
  %v753 = vadd.f32 %v727, -0.28449672
  %v754 = vadd.f32 %v728, -0.28449672
  %v755 = vadd.f32 %v729, -0.28449672
  %v756 = vadd.f32 %v730, -0.28449672
  %v757 = vadd.f32 %v731, -0.28449672
  %v758 = vadd.f32 %v732, -0.28449672
  %v759 = vadd.f32 %v733, -0.28449672
  %v760 = vadd.f32 %v734, -0.28449672
  %v761 = vadd.f32 %v735, -0.28449672
  %v762 = vadd.f32 %v736, -0.28449672
  %v763 = vadd.f32 %v737, -0.28449672
  %v764 = vadd.f32 %v738, -0.28449672
  %v765 = vadd.f32 %v739, -0.28449672
  %v766 = vadd.f32 %v740, -0.28449672
  %v767 = vadd.f32 %v741, -0.28449672
  %v768 = vadd.f32 %v742, -0.28449672
  %v769 = vadd.f32 %v743, -0.28449672
  %v770 = vadd.f32 %v744, -0.28449672
  %v771 = vadd.f32 %v745, -0.28449672
  %v772 = vadd.f32 %v746, -0.28449672
  %v773 = vadd.f32 %v747, -0.28449672
  %v774 = vadd.f32 %v748, -0.28449672
  %v775 = vadd.f32 %v749, -0.28449672
  %v776 = vadd.f32 %v750, -0.28449672
  %v777 = vadd.f32 %v751, -0.28449672
  %v778 = vadd.f32 %v752, -0.28449672
  %v779 = vmul.f32 %v753, %v572
  %v780 = vmul.f32 %v754, %v574
  %v781 = vmul.f32 %v755, %v576
  %v782 = vmul.f32 %v756, %v578
  %v783 = vmul.f32 %v757, %v580
  %v784 = vmul.f32 %v758, %v582
  %v785 = vmul.f32 %v759, %v584
  %v786 = vmul.f32 %v760, %v586
  %v787 = vmul.f32 %v761, %v588
  %v788 = vmul.f32 %v762, %v590
  %v789 = vmul.f32 %v763, %v592
  %v790 = vmul.f32 %v764, %v594
  %v791 = vmul.f32 %v765, %v596
  %v792 = vmul.f32 %v766, %v598
  %v793 = vmul.f32 %v767, %v600
  %v794 = vmul.f32 %v768, %v602
  %v795 = vmul.f32 %v769, %v604
  %v796 = vmul.f32 %v770, %v606
  %v797 = vmul.f32 %v771, %v608
  %v798 = vmul.f32 %v772, %v610
  %v799 = vmul.f32 %v773, %v612
  %v800 = vmul.f32 %v774, %v614
  %v801 = vmul.f32 %v775, %v616
  %v802 = vmul.f32 %v776, %v618
  %v803 = vmul.f32 %v777, %v620
  %v804 = vmul.f32 %v778, %v622
  %v805 = vadd.f32 %v779, 0.2548296
  %v806 = vadd.f32 %v780, 0.2548296
  %v807 = vadd.f32 %v781, 0.2548296
  %v808 = vadd.f32 %v782, 0.2548296
  %v809 = vadd.f32 %v783, 0.2548296
  %v810 = vadd.f32 %v784, 0.2548296
  %v811 = vadd.f32 %v785, 0.2548296
  %v812 = vadd.f32 %v786, 0.2548296
  %v813 = vadd.f32 %v787, 0.2548296
  %v814 = vadd.f32 %v788, 0.2548296
  %v815 = vadd.f32 %v789, 0.2548296
  %v816 = vadd.f32 %v790, 0.2548296
  %v817 = vadd.f32 %v791, 0.2548296
  %v818 = vadd.f32 %v792, 0.2548296
  %v819 = vadd.f32 %v793, 0.2548296
  %v820 = vadd.f32 %v794, 0.2548296
  %v821 = vadd.f32 %v795, 0.2548296
  %v822 = vadd.f32 %v796, 0.2548296
  %v823 = vadd.f32 %v797, 0.2548296
  %v824 = vadd.f32 %v798, 0.2548296
  %v825 = vadd.f32 %v799, 0.2548296
  %v826 = vadd.f32 %v800, 0.2548296
  %v827 = vadd.f32 %v801, 0.2548296
  %v828 = vadd.f32 %v802, 0.2548296
  %v829 = vadd.f32 %v803, 0.2548296
  %v830 = vadd.f32 %v804, 0.2548296
  %v831 = vmul.f32 %v805, %v572
  %v832 = vmul.f32 %v806, %v574
  %v833 = vmul.f32 %v807, %v576
  %v834 = vmul.f32 %v808, %v578
  %v835 = vmul.f32 %v809, %v580
  %v836 = vmul.f32 %v810, %v582
  %v837 = vmul.f32 %v811, %v584
  %v838 = vmul.f32 %v812, %v586
  %v839 = vmul.f32 %v813, %v588
  %v840 = vmul.f32 %v814, %v590
  %v841 = vmul.f32 %v815, %v592
  %v842 = vmul.f32 %v816, %v594
  %v843 = vmul.f32 %v817, %v596
  %v844 = vmul.f32 %v818, %v598
  %v845 = vmul.f32 %v819, %v600
  %v846 = vmul.f32 %v820, %v602
  %v847 = vmul.f32 %v821, %v604
  %v848 = vmul.f32 %v822, %v606
  %v849 = vmul.f32 %v823, %v608
  %v850 = vmul.f32 %v824, %v610
  %v851 = vmul.f32 %v825, %v612
  %v852 = vmul.f32 %v826, %v614
  %v853 = vmul.f32 %v827, %v616
  %v854 = vmul.f32 %v828, %v618
  %v855 = vmul.f32 %v829, %v620
  %v856 = vmul.f32 %v830, %v622
  %v857 = vsub.f32 0.0, %v493
  %v858 = vsub.f32 0.0, %v494
  %v859 = vsub.f32 0.0, %v495
  %v860 = vsub.f32 0.0, %v496
  %v861 = vsub.f32 0.0, %v497
  %v862 = vsub.f32 0.0, %v498
  %v863 = vsub.f32 0.0, %v499
  %v864 = vsub.f32 0.0, %v500
  %v865 = vsub.f32 0.0, %v501
  %v866 = vsub.f32 0.0, %v502
  %v867 = vsub.f32 0.0, %v503
  %v868 = vsub.f32 0.0, %v504
  %v869 = vsub.f32 0.0, %v505
  %v870 = vsub.f32 0.0, %v506
  %v871 = vsub.f32 0.0, %v507
  %v872 = vsub.f32 0.0, %v508
  %v873 = vsub.f32 0.0, %v509
  %v874 = vsub.f32 0.0, %v510
  %v875 = vsub.f32 0.0, %v511
  %v876 = vsub.f32 0.0, %v512
  %v877 = vsub.f32 0.0, %v513
  %v878 = vsub.f32 0.0, %v514
  %v879 = vsub.f32 0.0, %v515
  %v880 = vsub.f32 0.0, %v516
  %v881 = vsub.f32 0.0, %v517
  %v882 = vsub.f32 0.0, %v518
  %v883 = vmul.f32 %v857, %v493
  %v884 = vmul.f32 %v858, %v494
  %v885 = vmul.f32 %v859, %v495
  %v886 = vmul.f32 %v860, %v496
  %v887 = vmul.f32 %v861, %v497
  %v888 = vmul.f32 %v862, %v498
  %v889 = vmul.f32 %v863, %v499
  %v890 = vmul.f32 %v864, %v500
  %v891 = vmul.f32 %v865, %v501
  %v892 = vmul.f32 %v866, %v502
  %v893 = vmul.f32 %v867, %v503
  %v894 = vmul.f32 %v868, %v504
  %v895 = vmul.f32 %v869, %v505
  %v896 = vmul.f32 %v870, %v506
  %v897 = vmul.f32 %v871, %v507
  %v898 = vmul.f32 %v872, %v508
  %v899 = vmul.f32 %v873, %v509
  %v900 = vmul.f32 %v874, %v510
  %v901 = vmul.f32 %v875, %v511
  %v902 = vmul.f32 %v876, %v512
  %v903 = vmul.f32 %v877, %v513
  %v904 = vmul.f32 %v878, %v514
  %v905 = vmul.f32 %v879, %v515
  %v906 = vmul.f32 %v880, %v516
  %v907 = vmul.f32 %v881, %v517
  %v908 = vmul.f32 %v882, %v518
  %v909 = vmul.f32 %v883, 1.442695
  %v910 = vpow.pop %v909
  %v911 = vmul.f32 %v884, 1.442695
  %v912 = vpow.pop %v911
  %v913 = vmul.f32 %v885, 1.442695
  %v914 = vpow.pop %v913
  %v915 = vmul.f32 %v886, 1.442695
  %v916 = vpow.pop %v915
  %v917 = vmul.f32 %v887, 1.442695
  %v918 = vpow.pop %v917
  %v919 = vmul.f32 %v888, 1.442695
  %v920 = vpow.pop %v919
  %v921 = vmul.f32 %v889, 1.442695
  %v922 = vpow.pop %v921
  %v923 = vmul.f32 %v890, 1.442695
  %v924 = vpow.pop %v923
  %v925 = vmul.f32 %v891, 1.442695
  %v926 = vpow.pop %v925
  %v927 = vmul.f32 %v892, 1.442695
  %v928 = vpow.pop %v927
  %v929 = vmul.f32 %v893, 1.442695
  %v930 = vpow.pop %v929
  %v931 = vmul.f32 %v894, 1.442695
  %v932 = vpow.pop %v931
  %v933 = vmul.f32 %v895, 1.442695
  %v934 = vpow.pop %v933
  %v935 = vmul.f32 %v896, 1.442695
  %v936 = vpow.pop %v935
  %v937 = vmul.f32 %v897, 1.442695
  %v938 = vpow.pop %v937
  %v939 = vmul.f32 %v898, 1.442695
  %v940 = vpow.pop %v939
  %v941 = vmul.f32 %v899, 1.442695
  %v942 = vpow.pop %v941
  %v943 = vmul.f32 %v900, 1.442695
  %v944 = vpow.pop %v943
  %v945 = vmul.f32 %v901, 1.442695
  %v946 = vpow.pop %v945
  %v947 = vmul.f32 %v902, 1.442695
  %v948 = vpow.pop %v947
  %v949 = vmul.f32 %v903, 1.442695
  %v950 = vpow.pop %v949
  %v951 = vmul.f32 %v904, 1.442695
  %v952 = vpow.pop %v951
  %v953 = vmul.f32 %v905, 1.442695
  %v954 = vpow.pop %v953
  %v955 = vmul.f32 %v906, 1.442695
  %v956 = vpow.pop %v955
  %v957 = vmul.f32 %v907, 1.442695
  %v958 = vpow.pop %v957
  %v959 = vmul.f32 %v908, 1.442695
  %v960 = vpow.pop %v959
  %v961 = vmul.f32 %v831, %v910
  %v962 = vmul.f32 %v832, %v912
  %v963 = vmul.f32 %v833, %v914
  %v964 = vmul.f32 %v834, %v916
  %v965 = vmul.f32 %v835, %v918
  %v966 = vmul.f32 %v836, %v920
  %v967 = vmul.f32 %v837, %v922
  %v968 = vmul.f32 %v838, %v924
  %v969 = vmul.f32 %v839, %v926
  %v970 = vmul.f32 %v840, %v928
  %v971 = vmul.f32 %v841, %v930
  %v972 = vmul.f32 %v842, %v932
  %v973 = vmul.f32 %v843, %v934
  %v974 = vmul.f32 %v844, %v936
  %v975 = vmul.f32 %v845, %v938
  %v976 = vmul.f32 %v846, %v940
  %v977 = vmul.f32 %v847, %v942
  %v978 = vmul.f32 %v848, %v944
  %v979 = vmul.f32 %v849, %v946
  %v980 = vmul.f32 %v850, %v948
  %v981 = vmul.f32 %v851, %v950
  %v982 = vmul.f32 %v852, %v952
  %v983 = vmul.f32 %v853, %v954
  %v984 = vmul.f32 %v854, %v956
  %v985 = vmul.f32 %v855, %v958
  %v986 = vmul.f32 %v856, %v960
  %v987 = vsub.f32 1.0, %v961
  %v988 = vsub.f32 1.0, %v962
  %v989 = vsub.f32 1.0, %v963
  %v990 = vsub.f32 1.0, %v964
  %v991 = vsub.f32 1.0, %v965
  %v992 = vsub.f32 1.0, %v966
  %v993 = vsub.f32 1.0, %v967
  %v994 = vsub.f32 1.0, %v968
  %v995 = vsub.f32 1.0, %v969
  %v996 = vsub.f32 1.0, %v970
  %v997 = vsub.f32 1.0, %v971
  %v998 = vsub.f32 1.0, %v972
  %v999 = vsub.f32 1.0, %v973
  %v1000 = vsub.f32 1.0, %v974
  %v1001 = vsub.f32 1.0, %v975
  %v1002 = vsub.f32 1.0, %v976
  %v1003 = vsub.f32 1.0, %v977
  %v1004 = vsub.f32 1.0, %v978
  %v1005 = vsub.f32 1.0, %v979
  %v1006 = vsub.f32 1.0, %v980
  %v1007 = vsub.f32 1.0, %v981
  %v1008 = vsub.f32 1.0, %v982
  %v1009 = vsub.f32 1.0, %v983
  %v1010 = vsub.f32 1.0, %v984
  %v1011 = vsub.f32 1.0, %v985
  %v1012 = vsub.f32 1.0, %v986
  %vm1013 = vcmp.lt.f32.partialorder %v467, 0.0
  %vm1014 = vcmp.lt.f32.partialorder %v468, 0.0
  %vm1015 = vcmp.lt.f32.partialorder %v469, 0.0
  %vm1016 = vcmp.lt.f32.partialorder %v470, 0.0
  %vm1017 = vcmp.lt.f32.partialorder %v471, 0.0
  %vm1018 = vcmp.lt.f32.partialorder %v472, 0.0
  %vm1019 = vcmp.lt.f32.partialorder %v473, 0.0
  %vm1020 = vcmp.lt.f32.partialorder %v474, 0.0
  %vm1021 = vcmp.lt.f32.partialorder %v475, 0.0
  %vm1022 = vcmp.lt.f32.partialorder %v476, 0.0
  %vm1023 = vcmp.lt.f32.partialorder %v477, 0.0
  %vm1024 = vcmp.lt.f32.partialorder %v478, 0.0
  %vm1025 = vcmp.lt.f32.partialorder %v479, 0.0
  %vm1026 = vcmp.lt.f32.partialorder %v480, 0.0
  %vm1027 = vcmp.lt.f32.partialorder %v481, 0.0
  %vm1028 = vcmp.lt.f32.partialorder %v482, 0.0
  %vm1029 = vcmp.lt.f32.partialorder %v483, 0.0
  %vm1030 = vcmp.lt.f32.partialorder %v484, 0.0
  %vm1031 = vcmp.lt.f32.partialorder %v485, 0.0
  %vm1032 = vcmp.lt.f32.partialorder %v486, 0.0
  %vm1033 = vcmp.lt.f32.partialorder %v487, 0.0
  %vm1034 = vcmp.lt.f32.partialorder %v488, 0.0
  %vm1035 = vcmp.lt.f32.partialorder %v489, 0.0
  %vm1036 = vcmp.lt.f32.partialorder %v490, 0.0
  %vm1037 = vcmp.lt.f32.partialorder %v491, 0.0
  %vm1038 = vcmp.lt.f32.partialorder %v492, 0.0
  %v1039 = vsub.f32 0.0, %v987
  %v1040 = vsub.f32 0.0, %v988
  %v1041 = vsub.f32 0.0, %v989
  %v1042 = vsub.f32 0.0, %v990
  %v1043 = vsub.f32 0.0, %v991
  %v1044 = vsub.f32 0.0, %v992
  %v1045 = vsub.f32 0.0, %v993
  %v1046 = vsub.f32 0.0, %v994
  %v1047 = vsub.f32 0.0, %v995
  %v1048 = vsub.f32 0.0, %v996
  %v1049 = vsub.f32 0.0, %v997
  %v1050 = vsub.f32 0.0, %v998
  %v1051 = vsub.f32 0.0, %v999
  %v1052 = vsub.f32 0.0, %v1000
  %v1053 = vsub.f32 0.0, %v1001
  %v1054 = vsub.f32 0.0, %v1002
  %v1055 = vsub.f32 0.0, %v1003
  %v1056 = vsub.f32 0.0, %v1004
  %v1057 = vsub.f32 0.0, %v1005
  %v1058 = vsub.f32 0.0, %v1006
  %v1059 = vsub.f32 0.0, %v1007
  %v1060 = vsub.f32 0.0, %v1008
  %v1061 = vsub.f32 0.0, %v1009
  %v1062 = vsub.f32 0.0, %v1010
  %v1063 = vsub.f32 0.0, %v1011
  %v1064 = vsub.f32 0.0, %v1012
  %v1065 = vsel %vm1013, %v1039, %v987
  %v1066 = vsel %vm1014, %v1040, %v988
  %v1067 = vsel %vm1015, %v1041, %v989
  %v1068 = vsel %vm1016, %v1042, %v990
  %v1069 = vsel %vm1017, %v1043, %v991
  %v1070 = vsel %vm1018, %v1044, %v992
  %v1071 = vsel %vm1019, %v1045, %v993
  %v1072 = vsel %vm1020, %v1046, %v994
  %v1073 = vsel %vm1021, %v1047, %v995
  %v1074 = vsel %vm1022, %v1048, %v996
  %v1075 = vsel %vm1023, %v1049, %v997
  %v1076 = vsel %vm1024, %v1050, %v998
  %v1077 = vsel %vm1025, %v1051, %v999
  %v1078 = vsel %vm1026, %v1052, %v1000
  %v1079 = vsel %vm1027, %v1053, %v1001
  %v1080 = vsel %vm1028, %v1054, %v1002
  %v1081 = vsel %vm1029, %v1055, %v1003
  %v1082 = vsel %vm1030, %v1056, %v1004
  %v1083 = vsel %vm1031, %v1057, %v1005
  %v1084 = vsel %vm1032, %v1058, %v1006
  %v1085 = vsel %vm1033, %v1059, %v1007
  %v1086 = vsel %vm1034, %v1060, %v1008
  %v1087 = vsel %vm1035, %v1061, %v1009
  %v1088 = vsel %vm1036, %v1062, %v1010
  %v1089 = vsel %vm1037, %v1063, %v1011
  %v1090 = vsel %vm1038, %v1064, %v1012
  %v1091 = vadd.f32 %v1065, 1.0
  %v1092 = vadd.f32 %v1066, 1.0
  %v1093 = vadd.f32 %v1067, 1.0
  %v1094 = vadd.f32 %v1068, 1.0
  %v1095 = vadd.f32 %v1069, 1.0
  %v1096 = vadd.f32 %v1070, 1.0
  %v1097 = vadd.f32 %v1071, 1.0
  %v1098 = vadd.f32 %v1072, 1.0
  %v1099 = vadd.f32 %v1073, 1.0
  %v1100 = vadd.f32 %v1074, 1.0
  %v1101 = vadd.f32 %v1075, 1.0
  %v1102 = vadd.f32 %v1076, 1.0
  %v1103 = vadd.f32 %v1077, 1.0
  %v1104 = vadd.f32 %v1078, 1.0
  %v1105 = vadd.f32 %v1079, 1.0
  %v1106 = vadd.f32 %v1080, 1.0
  %v1107 = vadd.f32 %v1081, 1.0
  %v1108 = vadd.f32 %v1082, 1.0
  %v1109 = vadd.f32 %v1083, 1.0
  %v1110 = vadd.f32 %v1084, 1.0
  %v1111 = vadd.f32 %v1085, 1.0
  %v1112 = vadd.f32 %v1086, 1.0
  %v1113 = vadd.f32 %v1087, 1.0
  %v1114 = vadd.f32 %v1088, 1.0
  %v1115 = vadd.f32 %v1089, 1.0
  %v1116 = vadd.f32 %v1090, 1.0
  %v1117 = vmul.f32 %v441, %v1091
  %v1118 = vmul.f32 %v442, %v1092
  %v1119 = vmul.f32 %v443, %v1093
  %v1120 = vmul.f32 %v444, %v1094
  %v1121 = vmul.f32 %v445, %v1095
  %v1122 = vmul.f32 %v446, %v1096
  %v1123 = vmul.f32 %v447, %v1097
  %v1124 = vmul.f32 %v448, %v1098
  %v1125 = vmul.f32 %v449, %v1099
  %v1126 = vmul.f32 %v450, %v1100
  %v1127 = vmul.f32 %v451, %v1101
  %v1128 = vmul.f32 %v452, %v1102
  %v1129 = vmul.f32 %v453, %v1103
  %v1130 = vmul.f32 %v454, %v1104
  %v1131 = vmul.f32 %v455, %v1105
  %v1132 = vmul.f32 %v456, %v1106
  %v1133 = vmul.f32 %v457, %v1107
  %v1134 = vmul.f32 %v458, %v1108
  %v1135 = vmul.f32 %v459, %v1109
  %v1136 = vmul.f32 %v460, %v1110
  %v1137 = vmul.f32 %v461, %v1111
  %v1138 = vmul.f32 %v462, %v1112
  %v1139 = vmul.f32 %v463, %v1113
  %v1140 = vmul.f32 %v464, %v1114
  %v1141 = vmul.f32 %v465, %v1115
  %v1142 = vmul.f32 %v466, %v1116
  %v1143 = vpack.c.bf16 %v1119, %v1117
  %v1144 = vpack.c.bf16 %v1120, %v1118
  %v1145 = vpack.c.bf16 %v1123, %v1121
  %v1146 = vpack.c.bf16 %v1124, %v1122
  %v1147 = vpack.c.bf16 %v1127, %v1125
  %v1148 = vpack.c.bf16 %v1128, %v1126
  %v1149 = vpack.c.bf16 %v1131, %v1129
  %v1150 = vpack.c.bf16 %v1132, %v1130
  %v1151 = vpack.c.bf16 %v1135, %v1133
  %v1152 = vpack.c.bf16 %v1136, %v1134
  %v1153 = vpack.c.bf16 %v1139, %v1137
  %v1154 = vpack.c.bf16 %v1140, %v1138
  %v1155 = vpack.c.bf16 %v1141, %v1141
  %v1156 = vpack.c.bf16 %v1142, %v1142
  %v1157 = vld [vmem:[%s5] sm:$0xf]
  %v1158 = vld [vmem:[%s5 + $0x4] sm:$0xf]
  %v1159 = vld [vmem:[%s5 + $0x8] sm:$0xf]
  %v1160 = vld [vmem:[%s5 + $0xc] sm:$0xf]
  %v1161 = vld [vmem:[%s5 + $0x10] sm:$0xf]
  %v1162 = vld [vmem:[%s5 + $0x14] sm:$0xf]
  %v1163 = vld [vmem:[%s5 + $0x18] sm:$0xf]
  %v1164 = vld [vmem:[%s5 + $0x1c] sm:$0xf]
  %v1165 = vld [vmem:[%s5 + $0x20] sm:$0xf]
  %v1166 = vld [vmem:[%s5 + $0x24] sm:$0xf]
  %v1167 = vld [vmem:[%s5 + $0x28] sm:$0xf]
  %v1168 = vld [vmem:[%s5 + $0x2c] sm:$0xf]
  %v1169 = vld [vmem:[%s5 + $0x30] sm:$0xf]
  %v1170 = vld [vmem:[%s5 + $0x34] sm:$0xf]
  %v1171 = vld [vmem:[%s5 + $0x38] sm:$0xf]
  %v1172 = vld [vmem:[%s5 + $0x3c] sm:$0xf]
  %v1173 = vld [vmem:[%s5 + $0x40] sm:$0xf]
  %v1174 = vld [vmem:[%s5 + $0x44] sm:$0xf]
  %v1175 = vld [vmem:[%s5 + $0x48] sm:$0xf]
  %v1176 = vld [vmem:[%s5 + $0x4c] sm:$0xf]
  %v1177 = vld [vmem:[%s5 + $0x50] sm:$0xf]
  %v1178 = vld [vmem:[%s5 + $0x54] sm:$0xf]
  %v1179 = vld [vmem:[%s5 + $0x58] sm:$0xf]
  %v1180 = vld [vmem:[%s5 + $0x5c] sm:$0xf]
  %v1181 = vld [vmem:[%s5 + $0x60] sm:$0xf]
  %v1182 = vld [vmem:[%s5 + $0x64] sm:$0xf]
  %v1183 = vld [vmem:[%s5 + $0x68] sm:$0xf]
  %v1184 = vld [vmem:[%s5 + $0x6c] sm:$0xf]
  %v1185 = vld [vmem:[%s5 + $0x70] sm:$0xf]
  %v1186 = vld [vmem:[%s5 + $0x74] sm:$0xf]
  %v1187 = vld [vmem:[%s5 + $0x78] sm:$0xf]
  %v1188 = vld [vmem:[%s5 + $0x7c] sm:$0xf]
  %v1189 = vld [vmem:[%s6] sm:$0x1]
  %v1191 = vlaneseq
  %v1192 = vshrl.u32 %v1191, 7
  %v1193 = vsub.s32 0, %v1192
  %v1194 = vrot.slane %v1189, %v1193
  %v1228 = vunpack.c.l.b16 %v1157
  %v1229 = vunpack.c.l.b16 %v1158
  %v1230 = vunpack.c.l.b16 %v1159
  %v1231 = vunpack.c.l.b16 %v1160
  %v1232 = vunpack.c.l.b16 %v1161
  %v1233 = vunpack.c.l.b16 %v1162
  %v1234 = vunpack.c.l.b16 %v1163
  %v1235 = vunpack.c.l.b16 %v1164
  %v1236 = vunpack.c.l.b16 %v1165
  %v1237 = vunpack.c.l.b16 %v1166
  %v1238 = vunpack.c.l.b16 %v1167
  %v1239 = vunpack.c.l.b16 %v1168
  %v1240 = vunpack.c.l.b16 %v1169
  %v1241 = vunpack.c.l.b16 %v1170
  %v1242 = vunpack.c.l.b16 %v1171
  %v1243 = vunpack.c.l.b16 %v1172
  %v1244 = vunpack.c.l.b16 %v1173
  %v1245 = vunpack.c.l.b16 %v1174
  %v1246 = vunpack.c.l.b16 %v1175
  %v1247 = vunpack.c.l.b16 %v1176
  %v1248 = vunpack.c.l.b16 %v1177
  %v1249 = vunpack.c.l.b16 %v1178
  %v1250 = vunpack.c.l.b16 %v1179
  %v1251 = vunpack.c.l.b16 %v1180
  %v1252 = vunpack.c.l.b16 %v1181
  %v1253 = vunpack.c.l.b16 %v1182
  %v1254 = vunpack.c.l.b16 %v1183
  %v1255 = vunpack.c.l.b16 %v1184
  %v1256 = vunpack.c.l.b16 %v1185
  %v1257 = vunpack.c.l.b16 %v1186
  %v1258 = vunpack.c.l.b16 %v1187
  %v1259 = vunpack.c.l.b16 %v1188
  %v1260 = vpack.c.b16 %v1229, %v1228
  %v1261 = vpack.c.b16 %v1231, %v1230
  %v1262 = vpack.c.b16 %v1233, %v1232
  %v1263 = vpack.c.b16 %v1235, %v1234
  %v1264 = vpack.c.b16 %v1237, %v1236
  %v1265 = vpack.c.b16 %v1239, %v1238
  %v1266 = vpack.c.b16 %v1241, %v1240
  %v1267 = vpack.c.b16 %v1243, %v1242
  %v1268 = vpack.c.b16 %v1245, %v1244
  %v1269 = vpack.c.b16 %v1247, %v1246
  %v1270 = vpack.c.b16 %v1249, %v1248
  %v1271 = vpack.c.b16 %v1251, %v1250
  %v1272 = vpack.c.b16 %v1253, %v1252
  %v1273 = vpack.c.b16 %v1255, %v1254
  %v1274 = vpack.c.b16 %v1257, %v1256
  %v1275 = vpack.c.b16 %v1259, %v1258
  %1292 = vmatprep.subr.bf16.mxu0 0
  %1293 = vmatpush1.bf16.msra.mxu0 %v1260
  %1294 = vmatprep.subr.bf16.mxu0 0
  %1295 = vmatpush1.bf16.msra.mxu0 %v1261
  %1296 = vmatprep.subr.bf16.mxu0 0
  %1297 = vmatpush1.bf16.msra.mxu0 %v1262
  %1298 = vmatprep.subr.bf16.mxu0 0
  %1299 = vmatpush1.bf16.msra.mxu0 %v1263
  %1300 = vmatprep.subr.bf16.mxu0 0
  %1301 = vmatpush1.bf16.msra.mxu0 %v1264
  %1302 = vmatprep.subr.bf16.mxu0 0
  %1303 = vmatpush1.bf16.msra.mxu0 %v1265
  %1304 = vmatprep.subr.bf16.mxu0 0
  %1305 = vmatpush1.bf16.msra.mxu0 %v1266
  %1306 = vmatprep.subr.bf16.mxu0 0
  %1307 = vmatpush1.bf16.msra.mxu0 %v1267
  %1308 = vmatprep.subr.bf16.mxu0 0
  %1309 = vmatpush1.bf16.msra.mxu0 %v1268
  %1310 = vmatprep.subr.bf16.mxu0 0
  %1311 = vmatpush1.bf16.msra.mxu0 %v1269
  %1312 = vmatprep.subr.bf16.mxu0 0
  %1313 = vmatpush1.bf16.msra.mxu0 %v1270
  %1314 = vmatprep.subr.bf16.mxu0 0
  %1315 = vmatpush1.bf16.msra.mxu0 %v1271
  %1316 = vmatprep.subr.bf16.mxu0 0
  %1317 = vmatpush1.bf16.msra.mxu0 %v1272
  %1318 = vmatprep.subr.bf16.mxu0 0
  %1319 = vmatpush1.bf16.msra.mxu0 %v1273
  %1320 = vmatprep.subr.bf16.mxu0 0
  %1321 = vmatpush1.bf16.msra.mxu0 %v1274
  %1322 = vmatprep.subr.bf16.mxu0 0
  %1323 = vmatpush1.bf16.msra.mxu0 %v1275
  %1324 = vmatprep.mubr.bf16.mxu0 %v1144
  %1325 = vmatmul.mubr.bf16.gmra.mrb[0].mxu0 %v1143
  %v1326 = vpop.f32.mrb[0].mxu0
  %v1327 = vadd.f32 %v1194, %v1326
  %v1328 = vpop.f32.mrb[0].mxu0
  %v1329 = vpop.f32.mrb[0].mxu0
  %v1330 = vadd.f32 %v1194, %v1329
  %v1331 = vpop.f32.mrb[0].mxu0
  %1332 = vmatprep.mubr.bf16.mxu0 %v1146
  %1333 = vmatmul.mubr.bf16.gmra.mrb[0].mxu0 %v1145
  %v1334 = vpop.f32.mrb[0].mxu0
  %v1335 = vadd.f32 %v1194, %v1334
  %v1336 = vpop.f32.mrb[0].mxu0
  %v1337 = vpop.f32.mrb[0].mxu0
  %v1338 = vadd.f32 %v1194, %v1337
  %v1339 = vpop.f32.mrb[0].mxu0
  %1340 = vmatprep.mubr.bf16.mxu0 %v1148
  %1341 = vmatmul.mubr.bf16.gmra.mrb[0].mxu0 %v1147
  %v1342 = vpop.f32.mrb[0].mxu0
  %v1343 = vadd.f32 %v1194, %v1342
  %v1344 = vpop.f32.mrb[0].mxu0
  %v1345 = vpop.f32.mrb[0].mxu0
  %v1346 = vadd.f32 %v1194, %v1345
  %v1347 = vpop.f32.mrb[0].mxu0
  %1348 = vmatprep.mubr.bf16.mxu0 %v1150
  %1349 = vmatmul.mubr.bf16.gmra.mrb[0].mxu0 %v1149
  %v1350 = vpop.f32.mrb[0].mxu0
  %v1351 = vadd.f32 %v1194, %v1350
  %v1352 = vpop.f32.mrb[0].mxu0
  %v1353 = vpop.f32.mrb[0].mxu0
  %v1354 = vadd.f32 %v1194, %v1353
  %v1355 = vpop.f32.mrb[0].mxu0
  %1356 = vmatprep.mubr.bf16.mxu0 %v1152
  %1357 = vmatmul.mubr.bf16.gmra.mrb[0].mxu0 %v1151
  %v1358 = vpop.f32.mrb[0].mxu0
  %v1359 = vadd.f32 %v1194, %v1358
  %v1360 = vpop.f32.mrb[0].mxu0
  %v1361 = vpop.f32.mrb[0].mxu0
  %v1362 = vadd.f32 %v1194, %v1361
  %v1363 = vpop.f32.mrb[0].mxu0
  %1364 = vmatprep.mubr.bf16.mxu0 %v1154
  %1365 = vmatmul.mubr.bf16.gmra.mrb[0].mxu0 %v1153
  %v1366 = vpop.f32.mrb[0].mxu0
  %v1367 = vadd.f32 %v1194, %v1366
  %v1368 = vpop.f32.mrb[0].mxu0
  %v1369 = vpop.f32.mrb[0].mxu0
  %v1370 = vadd.f32 %v1194, %v1369
  %v1371 = vpop.f32.mrb[0].mxu0
  %1372 = vmatprep.mubr.bf16.mxu0 %v1156
  %1373 = vmatmul.mubr.bf16.gmra.mrb[0].mxu0 %v1155
  %v1374 = vpop.f32.mrb[0].mxu0
  %v1375 = vadd.f32 %v1194, %v1374
  %v1376 = vpop.f32.mrb[0].mxu0
  %v1377 = vpop.f32.mrb[0].mxu0
  %v1378 = vpop.f32.mrb[0].mxu0
  %1379 = vdwg.mxu0
  %v1380 = vadd.f32 %v27, %v1327
  %v1381 = vadd.f32 %v28, %v1330
  %v1382 = vadd.f32 %v29, %v1335
  %v1383 = vadd.f32 %v30, %v1338
  %v1384 = vadd.f32 %v31, %v1343
  %v1385 = vadd.f32 %v32, %v1346
  %v1386 = vadd.f32 %v33, %v1351
  %v1387 = vadd.f32 %v34, %v1354
  %v1388 = vadd.f32 %v35, %v1359
  %v1389 = vadd.f32 %v36, %v1362
  %v1390 = vadd.f32 %v37, %v1367
  %v1391 = vadd.f32 %v38, %v1370
  %v1392 = vadd.f32 %v39, %v1375
  %1393 = vst.msk [vmem:[%s7] sm:$0xff] %vm40, %v1380
  %1394 = vst.msk [vmem:[%s7 + $0x8] sm:$0xff] %vm40, %v1381
  %1395 = vst.msk [vmem:[%s7 + $0x10] sm:$0xff] %vm40, %v1382
  %1396 = vst.msk [vmem:[%s7 + $0x18] sm:$0xff] %vm40, %v1383
  %1397 = vst.msk [vmem:[%s7 + $0x20] sm:$0xff] %vm40, %v1384
  %1398 = vst.msk [vmem:[%s7 + $0x28] sm:$0xff] %vm40, %v1385
  %1399 = vst.msk [vmem:[%s7 + $0x30] sm:$0xff] %vm40, %v1386
  %1400 = vst.msk [vmem:[%s7 + $0x38] sm:$0xff] %vm40, %v1387
  %1401 = vst.msk [vmem:[%s7 + $0x40] sm:$0xff] %vm40, %v1388
  %1402 = vst.msk [vmem:[%s7 + $0x48] sm:$0xff] %vm40, %v1389
  %1403 = vst.msk [vmem:[%s7 + $0x50] sm:$0xff] %vm40, %v1390
  %1404 = vst.msk [vmem:[%s7 + $0x58] sm:$0xff] %vm40, %v1391
  %1405 = vst.msk [vmem:[%s7 + $0x60] sm:$0xf] %vm77, %v1392
  // Predicated region
  $region30: #{swin_block_1d_forward.7} parent=0 // pred_check
    _
  $region31: #{swin_block_1d_forward.7} parent=0 // pred_check_branch
    %1407 = sbr.rel (0) target = $region33
  $region32: #{swin_block_1d_forward.7} parent=0 // pred_region
    _
  $region33: #{swin_block_1d_forward.7} parent=0 // pred_fallthru
    _
  // Predicated region
  $region34: #{swin_block_1d_forward.7} parent=0 // pred_check
    _
  $region35: #{swin_block_1d_forward.7} parent=0 // pred_check_branch
    %1409 = sbr.rel (0) target = $region37
  $region36: #{swin_block_1d_forward.7} parent=0 // pred_region
    _
  $region37: #{swin_block_1d_forward.7} parent=0 // pred_fallthru
    _

</llo_original>
